<compile_context>
chip_gen: v6e
topology: v6e:2x2x1
jax: 0.10.0
libtpu: 0.0.40
codegen_flags: <defaults>
</compile_context>

<pallas_src>
import functools

import jax
import jax.numpy as jnp
from jax.experimental import pallas as pl
from jax.experimental.pallas import tpu as pltpu


# ---------------------------------------------------------------------------
# small helpers
# ---------------------------------------------------------------------------
def _round_up(x, m):
    return (x + m - 1) // m * m


def _pick_tile(full, cap):
    """Largest tile <= cap dividing `full`, preferring multiples of 128."""
    if full <= cap:
        return full
    for cand in (cap, 512, 256, 128):
        if cand <= cap and full % cand == 0:
            return cand
    return full  # single block


def _vmem_limit(block_bytes):
    # explicit scoped-VMEM budget (feedback item); generous but bounded.
    need = 2 * block_bytes + (4 << 20)
    return int(min(64 << 20, max(32 << 20, need)))


def fold_bn_padded(gamma, beta, mean, var, cout_pad, eps=1e-5):
    """Fold BN running stats into scale/bias, zero-padded to cout_pad lanes."""
    scale = gamma / jnp.sqrt(var + eps)
    bias = beta - mean * scale
    pad = cout_pad - scale.shape[0]
    scale = jnp.pad(scale, (0, pad))
    bias = jnp.pad(bias, (0, pad))
    return scale[None, :].astype(jnp.float32), bias[None, :].astype(jnp.float32)


# ---------------------------------------------------------------------------
# Kernel 1: generic tiled GEMM + BN affine (+ReLU), K-tiled with f32 scratch
# (used by the 1x1 projection shortcut and the strided conv1 fallback)
# ---------------------------------------------------------------------------
def _gemm_bn_kernel(x_ref, w_ref, s_ref, b_ref, o_ref, acc_ref, *, relu):
    @pl.when(pl.program_id(2) == 0)
    def _():
        acc_ref[...] = jnp.zeros_like(acc_ref)

    acc_ref[...] += jnp.dot(x_ref[...], w_ref[...],
                            preferred_element_type=jnp.float32)

    @pl.when(pl.program_id(2) == pl.num_programs(2) - 1)
    def _():
        y = acc_ref[...] * s_ref[...] + b_ref[...]
        if relu:
            y = jnp.maximum(y, 0.0)
        o_ref[...] = y.astype(o_ref.dtype)


def gemm_bn(lhs, w, scale, bias, *, relu, out_dtype=jnp.bfloat16):
    """out[M, Cp] = maybe_relu((lhs @ w) * scale + bias), lane-dense Cp."""
    M, K = lhs.shape
    Kw, Cp = w.shape
    assert Kw == K and Cp % 128 == 0

    tm = min(256, _round_up(M, 8))
    Mp = _round_up(M, tm)
    if Mp != M:
        lhs = jnp.pad(lhs, ((0, Mp - M), (0, 0)))
    tk = _pick_tile(K, 512)
    tc = _pick_tile(Cp, 256)
    grid = (Mp // tm, Cp // tc, K // tk)

    out_isz = jnp.dtype(out_dtype).itemsize
    flops = 2 * Mp * K * Cp
    bytes_acc = Mp * K * 2 + K * Cp * 2 + Mp * Cp * out_isz + 2 * Cp * 4
    block_bytes = tm * tk * 2 + tk * tc * 2 + tm * tc * out_isz + tm * tc * 4

    out = pl.pallas_call(
        functools.partial(_gemm_bn_kernel, relu=relu),
        out_shape=jax.ShapeDtypeStruct((Mp, Cp), out_dtype),
        grid_spec=pltpu.PrefetchScalarGridSpec(
            num_scalar_prefetch=0,
            grid=grid,
            in_specs=[
                pl.BlockSpec((tm, tk), lambda i, j, k: (i, k)),
                pl.BlockSpec((tk, tc), lambda i, j, k: (k, j)),
                pl.BlockSpec((1, tc), lambda i, j, k: (0, j)),
                pl.BlockSpec((1, tc), lambda i, j, k: (0, j)),
            ],
            out_specs=pl.BlockSpec((tm, tc), lambda i, j, k: (i, j)),
            scratch_shapes=[pltpu.VMEM((tm, tc), jnp.float32)],
        ),
        compiler_params=pltpu.CompilerParams(
            dimension_semantics=("parallel", "parallel", "arbitrary"),
            vmem_limit_bytes=_vmem_limit(block_bytes),
        ),
        cost_estimate=pl.CostEstimate(
            flops=int(flops), transcendentals=0, bytes_accessed=int(bytes_acc)),
    )(lhs.astype(jnp.bfloat16), w, scale, bias)
    return out[:M]


# ---------------------------------------------------------------------------
# Kernel 2: 3x3 stride-1 conv + BN affine (+residual) (+ReLU), implicit GEMM.
# Input is the padded image flattened to [N, (H+3)*(W+2), C]; each of the 9
# taps is a contiguous flat shift (dy*Wp+dx) matmul'ed against its [C, Cout]
# weight slice and accumulated in a f32 VMEM scratch.  No im2col in HBM.
# ---------------------------------------------------------------------------
def _conv3x3_bn_kernel(x_ref, w_ref, s_ref, b_ref, *rest, Wp, relu, has_res):
    if has_res:
        r_ref, o_ref, acc_ref = rest
    else:
        o_ref, acc_ref = rest
    L = acc_ref.shape[0]

    acc_ref[...] = jnp.zeros_like(acc_ref)
    for dy in range(3):
        for dx in range(3):
            off = dy * Wp + dx  # flat shift of this tap (static)
            acc_ref[...] += jnp.dot(x_ref[0, pl.ds(off, L), :],
                                    w_ref[dy, dx],
                                    preferred_element_type=jnp.float32)
    y = acc_ref[...] * s_ref[...] + b_ref[...]
    if has_res:
        y = y + r_ref[0].astype(jnp.float32)
    if relu:
        y = jnp.maximum(y, 0.0)
    o_ref[0] = y.astype(o_ref.dtype)


def conv3x3_bn(x_nhwc, w_oihw, scale, bias, *, relu, residual=None,
               out_dtype=jnp.bfloat16):
    """3x3 / stride 1 / pad 1 conv + BN (+residual add) (+ReLU), NHWC."""
    N, H, W, Cin = x_nhwc.shape
    Cout = w_oihw.shape[0]
    Cp = scale.shape[1]                      # lane-dense padded channels
    Wp = W + 2
    Lin = (H + 3) * Wp                       # extra bottom row so shifted
    L = H * Wp                               # slices never run off the end

    # weight: [Cout, Cin, 3, 3] -> [3, 3, Cin, Cp] bf16 (zero-pad Cout)
    w = jnp.transpose(w_oihw, (2, 3, 1, 0))
    w = jnp.pad(w, ((0, 0), (0, 0), (0, 0), (0, Cp - Cout))).astype(jnp.bfloat16)

    # activation: pad H by (1,2), W by (1,1), flatten spatial -> [N, Lin, Cin]
    xp = jnp.pad(x_nhwc, ((0, 0), (1, 2), (1, 1), (0, 0)))
    xflat = xp.reshape(N, Lin, Cin).astype(jnp.bfloat16)

    tc = _pick_tile(Cp, 256)
    grid = (N, Cp // tc)

    in_specs = [
        pl.BlockSpec((1, Lin, Cin), lambda n, c: (n, 0, 0)),
        pl.BlockSpec((3, 3, Cin, tc), lambda n, c: (0, 0, 0, c)),
        pl.BlockSpec((1, tc), lambda n, c: (0, c)),
        pl.BlockSpec((1, tc), lambda n, c: (0, c)),
    ]
    args = [xflat, w, scale, bias]
    if residual is not None:
        # residual [N, H, W, Cp] -> padded-width flat layout [N, L, Cp] (bf16)
        res = jnp.pad(residual,
                      ((0, 0), (0, 0), (0, Wp - residual.shape[2]), (0, 0)))
        res = res.reshape(N, L, Cp).astype(jnp.bfloat16)
        in_specs.append(pl.BlockSpec((1, L, tc), lambda n, c: (n, 0, c)))
        args.append(res)

    out_isz = jnp.dtype(out_dtype).itemsize
    flops = 2 * N * L * 9 * Cin * Cp
    bytes_acc = N * Lin * Cin * 2 + 9 * Cin * Cp * 2 + N * L * Cp * out_isz
    block_bytes = (Lin * Cin * 2 + 9 * Cin * tc * 2 + L * tc * 4
                   + 2 * L * tc * out_isz)

    out = pl.pallas_call(
        functools.partial(_conv3x3_bn_kernel, Wp=Wp, relu=relu,
                          has_res=residual is not None),
        out_shape=jax.ShapeDtypeStruct((N, L, Cp), out_dtype),
        grid_spec=pltpu.PrefetchScalarGridSpec(
            num_scalar_prefetch=0,
            grid=grid,
            in_specs=in_specs,
            out_specs=pl.BlockSpec((1, L, tc), lambda n, c: (n, 0, c)),
            scratch_shapes=[pltpu.VMEM((L, tc), jnp.float32)],
        ),
        compiler_params=pltpu.CompilerParams(
            dimension_semantics=("parallel", "parallel"),
            vmem_limit_bytes=_vmem_limit(block_bytes),
        ),
        cost_estimate=pl.CostEstimate(
            flops=int(flops), transcendentals=0, bytes_accessed=int(bytes_acc)),
    )(*args)
    # drop the padded-width garbage columns: [N, L, Cp] -> [N, H, W, Cp]
    return out.reshape(N, H, Wp, Cp)[:, :, :W, :]


# ---------------------------------------------------------------------------
# Glue for the strided-conv1 fallback and the 1x1 shortcut (plain JAX)
# ---------------------------------------------------------------------------
def _im2col(x_nhwc, kh, kw, stride, pad):
    N, H, W, C = x_nhwc.shape
    xp = jnp.pad(x_nhwc, ((0, 0), (pad, pad), (pad, pad), (0, 0)))
    Ho = (H + 2 * pad - kh) // stride + 1
    Wo = (W + 2 * pad - kw) // stride + 1
    cols = []
    for dy in range(kh):
        for dx in range(kw):
            cols.append(jax.lax.slice(
                xp, (0, dy, dx, 0),
                (N, dy + (Ho - 1) * stride + 1, dx + (Wo - 1) * stride + 1, C),
                (1, stride, stride, 1)))
    patches = jnp.stack(cols, axis=3)        # [N, Ho, Wo, kh*kw, C]
    return patches.reshape(N * Ho * Wo, kh * kw * C), Ho, Wo


def _reshape_weight_matmul(w_oihw, cout_pad):
    Cout, Cin, kh, kw = w_oihw.shape
    w = jnp.transpose(w_oihw, (2, 3, 1, 0)).reshape(kh * kw * Cin, Cout)
    return jnp.pad(w, ((0, 0), (0, cout_pad - Cout))).astype(jnp.bfloat16)


# ---------------------------------------------------------------------------
# BasicBlock forward (NHWC internally; NCHW facade for PyTorch parity)
# ---------------------------------------------------------------------------
def basic_block_forward_nhwc(x, params, stride, eps=1e-5):
    N, H, W, Cin = x.shape
    Cout = params["w1"].shape[0]
    Cp = _round_up(Cout, 128)                 # lane-dense channel padding
    Ho = (H - 1) // stride + 1
    Wo = (W - 1) // stride + 1

    s1, b1 = fold_bn_padded(params["g1"], params["b1"], params["m1"],
                            params["v1"], Cp, eps)
    s2, b2 = fold_bn_padded(params["g2"], params["b2"], params["m2"],
                            params["v2"], Cp, eps)

    # ---- conv1 (SCSA stand-in: 3x3, stride, pad 1) + BN + ReLU ----
    if stride == 1:
        y1 = conv3x3_bn(x, params["w1"], s1, b1, relu=True,
                        out_dtype=jnp.bfloat16)            # [N, H, W, Cp]
    else:
        # TODO(synk): replace this mild im2col with a phase-split implicit GEMM.
        patches, Ho, Wo = _im2col(x.astype(jnp.bfloat16), 3, 3, stride, 1)
        y1 = gemm_bn(patches, _reshape_weight_matmul(params["w1"], Cp),
                     s1, b1, relu=True, out_dtype=jnp.bfloat16)
        y1 = y1.reshape(N, Ho, Wo, Cp)

    # ---- shortcut ----
    if stride != 1 or Cin != Cout:
        ss, bs = fold_bn_padded(params["gs"], params["bs"], params["ms"],
                                params["vs"], Cp, eps)
        xs = x[:, ::stride, ::stride, :].reshape(N * Ho * Wo, Cin)
        sc = gemm_bn(xs, _reshape_weight_matmul(params["ws"], Cp),
                     ss, bs, relu=False, out_dtype=jnp.bfloat16)
        sc = sc.reshape(N, Ho, Wo, Cp)
    else:
        sc = jnp.pad(x, ((0, 0), (0, 0), (0, 0), (0, Cp - Cin)))

    # ---- conv2 (3x3, stride 1, pad 1) + BN + shortcut add + ReLU ----
    w2 = jnp.pad(params["w2"], ((0, 0), (0, Cp - Cout), (0, 0), (0, 0)))
    out = conv3x3_bn(y1, w2, s2, b2, relu=True, residual=sc,
                     out_dtype=jnp.float32)                # [N, Ho, Wo, Cp]
    return out[:, :, :, :Cout]


def basic_block_forward(x_nchw, params, stride, eps=1e-5):
    # NOTE: per perf review, NCHW<->NHWC belongs at model I/O; it is kept here
    # only because the PyTorch-facing interface of this single block is NCHW.
    x = jnp.transpose(x_nchw, (0, 2, 3, 1))
    y = basic_block_forward_nhwc(x, params, stride, eps)
    return jnp.transpose(y, (0, 3, 1, 2))


# ---------------------------------------------------------------------------
# Pure-JAX f32 reference (lax.conv) for correctness checking
# ---------------------------------------------------------------------------
def _ref_forward(x, params, stride, eps=1e-5):
    def conv(x, w, s, pad):
        return jax.lax.conv_general_dilated(
            x, w, (s, s), [(pad, pad), (pad, pad)],
            dimension_numbers=("NCHW", "OIHW", "NCHW"))

    def bn(x, g, b, m, v):
        sc = (g / jnp.sqrt(v + eps))[None, :, None, None]
        return (x - m[None, :, None, None]) * sc + b[None, :, None, None]

    r = jax.nn.relu(bn(conv(x, params["w1"], stride, 1),
                       params["g1"], params["b1"], params["m1"], params["v1"]))
    r = bn(conv(r, params["w2"], 1, 1),
           params["g2"], params["b2"], params["m2"], params["v2"])
    Cin, Cout = params["w1"].shape[1], params["w1"].shape[0]
    if stride != 1 or Cin != Cout:
        s = bn(conv(x, params["ws"], stride, 0),
               params["gs"], params["bs"], params["ms"], params["vs"])
    else:
        s = x
    return jax.nn.relu(r + s)


# ---------------------------------------------------------------------------
if __name__ == "__main__":
    key = jax.random.PRNGKey(0)

    def make_params(k, cin, cout):
        ks = jax.random.split(k, 6)

        def bn_params(kk, c):
            k1, k2, k3, k4 = jax.random.split(kk, 4)
            return (1.0 + 0.1 * jax.random.normal(k1, (c,), jnp.float32),
                    0.1 * jax.random.normal(k2, (c,), jnp.float32),
                    0.1 * jax.random.normal(k3, (c,), jnp.float32),
                    jax.random.uniform(k4, (c,), jnp.float32, 0.5, 1.5))

        g1, b1, m1, v1 = bn_params(ks[0], cout)
        g2, b2, m2, v2 = bn_params(ks[1], cout)
        gs, bs, ms, vs = bn_params(ks[2], cout)
        return dict(
            w1=0.1 * jax.random.normal(ks[3], (cout, cin, 3, 3), jnp.float32),
            w2=0.1 * jax.random.normal(ks[4], (cout, cout, 3, 3), jnp.float32),
            ws=0.1 * jax.random.normal(ks[5], (cout, cin, 1, 1), jnp.float32),
            g1=g1, b1=b1, m1=m1, v1=v1,
            g2=g2, b2=b2, m2=m2, v2=v2,
            gs=gs, bs=bs, ms=ms, vs=vs)

    # (N, Cin, Cout, H, W, stride): identity shortcut, projection shortcut,
    # and a stride-2 downsampling block.
    configs = [
        (2, 8, 8, 16, 16, 1),
        (2, 4, 8, 16, 16, 1),
        (2, 4, 8, 16, 16, 2),
    ]
    for i, (N, Cin, Cout, H, W, stride) in enumerate(configs):
        kx, kp = jax.random.split(jax.random.fold_in(key, i))
        x = jax.random.normal(kx, (N, Cin, H, W), jnp.float32)
        params = make_params(kp, Cin, Cout)

        out = jax.block_until_ready(basic_block_forward(x, params, stride))
        ref = _ref_forward(x, params, stride)

        Ho = (H - 1) // stride + 1
        Wo = (W - 1) // stride + 1
        assert out.shape == (N, Cout, Ho, Wo), (out.shape, (N, Cout, Ho, Wo))
        assert out.shape == ref.shape, (out.shape, ref.shape)
        # bf16 inputs / f32 accumulation vs. full-f32 reference.
        err = float(jnp.max(jnp.abs(out - ref)))
        assert err < 5e-2, (i, err)

    print("KERNEL_OK")
</pallas_src>

<mosaic_0001>
module attributes {stable_mosaic.version = 11 : i64} {
  func.func @_conv3x3_bn_kernel(%arg0: i32, %arg1: i32, %arg2: memref<1x342x8xbf16, #tpu.memory_space<vmem>>, %arg3: memref<3x3x8x128xbf16, #tpu.memory_space<vmem>>, %arg4: memref<1x128xf32, #tpu.memory_space<vmem>>, %arg5: memref<1x128xf32, #tpu.memory_space<vmem>>, %arg6: memref<1x288x128xbf16, #tpu.memory_space<vmem>>, %arg7: memref<288x128xf32, #tpu.memory_space<vmem>>) attributes {dimension_semantics = [#tpu.dimension_semantics<parallel>, #tpu.dimension_semantics<parallel>], iteration_bounds = array<i64: 2, 1>, scalar_prefetch = 0 : i64, scratch_operands = 1 : i64, tpu.core_type = #tpu.core_type<tc>, window_params = [{transform_indices = @transform_0, window_bounds = array<i64: 1, 342, 8>}, {transform_indices = @transform_1, window_bounds = array<i64: 3, 3, 8, 128>}, {transform_indices = @transform_2, window_bounds = array<i64: 1, 128>}, {transform_indices = @transform_3, window_bounds = array<i64: 1, 128>}, {transform_indices = @transform_4, window_bounds = array<i64: 1, 288, 128>}]} {
    %cst = arith.constant 0.000000e+00 : f32
    %0 = vector.broadcast %cst : f32 to vector<288x128xf32>
    %c0 = arith.constant 0 : index
    %c0_0 = arith.constant 0 : index
    %1 = vector.load %arg7[%c0, %c0_0] : memref<288x128xf32, #tpu.memory_space<vmem>>, vector<288x128xf32>
    tpu.vector_store %arg7[%c0, %c0_0], %0 {strides = array<i32>} : memref<288x128xf32, #tpu.memory_space<vmem>>, vector<288x128xf32>,
    %c0_1 = arith.constant 0 : index
    %c0_2 = arith.constant 0 : index
    %2 = vector.load %arg7[%c0_1, %c0_2] : memref<288x128xf32, #tpu.memory_space<vmem>>, vector<288x128xf32>
    %c0_3 = arith.constant 0 : index
    %c0_4 = arith.constant 0 : index
    %c0_5 = arith.constant 0 : index
    %3 = vector.load %arg2[%c0_3, %c0_4, %c0_5] : memref<1x342x8xbf16, #tpu.memory_space<vmem>>, vector<1x288x8xbf16>
    %4 = vector.shape_cast %3 : vector<1x288x8xbf16> to vector<288x8xbf16>
    %c0_6 = arith.constant 0 : index
    %c0_7 = arith.constant 0 : index
    %c0_8 = arith.constant 0 : index
    %c0_9 = arith.constant 0 : index
    %5 = vector.load %arg3[%c0_6, %c0_7, %c0_8, %c0_9] : memref<3x3x8x128xbf16, #tpu.memory_space<vmem>>, vector<1x1x8x128xbf16>
    %6 = vector.shape_cast %5 : vector<1x1x8x128xbf16> to vector<8x128xbf16>
    %cst_10 = arith.constant dense<0.000000e+00> : vector<288x128xf32>
    %7 = tpu.matmul %4, %6, %cst_10 {dimension_numbers = #tpu.dot_dimension_numbers<[1], [0], [0], [1], [0, 0, 1, 1], [], []>} : vector<288x8xbf16>, vector<8x128xbf16>, vector<288x128xf32> -> vector<288x128xf32>
    %8 = arith.addf %2, %7 : vector<288x128xf32>
    %c0_11 = arith.constant 0 : index
    %c0_12 = arith.constant 0 : index
    %9 = vector.load %arg7[%c0_11, %c0_12] : memref<288x128xf32, #tpu.memory_space<vmem>>, vector<288x128xf32>
    tpu.vector_store %arg7[%c0_11, %c0_12], %8 {strides = array<i32>} : memref<288x128xf32, #tpu.memory_space<vmem>>, vector<288x128xf32>,
    %c0_13 = arith.constant 0 : index
    %c0_14 = arith.constant 0 : index
    %10 = vector.load %arg7[%c0_13, %c0_14] : memref<288x128xf32, #tpu.memory_space<vmem>>, vector<288x128xf32>
    %c0_15 = arith.constant 0 : index
    %c1 = arith.constant 1 : index
    %c0_16 = arith.constant 0 : index
    %11 = vector.load %arg2[%c0_15, %c1, %c0_16] : memref<1x342x8xbf16, #tpu.memory_space<vmem>>, vector<1x288x8xbf16>
    %12 = vector.shape_cast %11 : vector<1x288x8xbf16> to vector<288x8xbf16>
    %c0_17 = arith.constant 0 : index
    %c1_18 = arith.constant 1 : index
    %c0_19 = arith.constant 0 : index
    %c0_20 = arith.constant 0 : index
    %13 = vector.load %arg3[%c0_17, %c1_18, %c0_19, %c0_20] : memref<3x3x8x128xbf16, #tpu.memory_space<vmem>>, vector<1x1x8x128xbf16>
    %14 = vector.shape_cast %13 : vector<1x1x8x128xbf16> to vector<8x128xbf16>
    %cst_21 = arith.constant dense<0.000000e+00> : vector<288x128xf32>
    %15 = tpu.matmul %12, %14, %cst_21 {dimension_numbers = #tpu.dot_dimension_numbers<[1], [0], [0], [1], [0, 0, 1, 1], [], []>} : vector<288x8xbf16>, vector<8x128xbf16>, vector<288x128xf32> -> vector<288x128xf32>
    %16 = arith.addf %10, %15 : vector<288x128xf32>
    %c0_22 = arith.constant 0 : index
    %c0_23 = arith.constant 0 : index
    %17 = vector.load %arg7[%c0_22, %c0_23] : memref<288x128xf32, #tpu.memory_space<vmem>>, vector<288x128xf32>
    tpu.vector_store %arg7[%c0_22, %c0_23], %16 {strides = array<i32>} : memref<288x128xf32, #tpu.memory_space<vmem>>, vector<288x128xf32>,
    %c0_24 = arith.constant 0 : index
    %c0_25 = arith.constant 0 : index
    %18 = vector.load %arg7[%c0_24, %c0_25] : memref<288x128xf32, #tpu.memory_space<vmem>>, vector<288x128xf32>
    %c0_26 = arith.constant 0 : index
    %c2 = arith.constant 2 : index
    %c0_27 = arith.constant 0 : index
    %19 = vector.load %arg2[%c0_26, %c2, %c0_27] : memref<1x342x8xbf16, #tpu.memory_space<vmem>>, vector<1x288x8xbf16>
    %20 = vector.shape_cast %19 : vector<1x288x8xbf16> to vector<288x8xbf16>
    %c0_28 = arith.constant 0 : index
    %c2_29 = arith.constant 2 : index
    %c0_30 = arith.constant 0 : index
    %c0_31 = arith.constant 0 : index
    %21 = vector.load %arg3[%c0_28, %c2_29, %c0_30, %c0_31] : memref<3x3x8x128xbf16, #tpu.memory_space<vmem>>, vector<1x1x8x128xbf16>
    %22 = vector.shape_cast %21 : vector<1x1x8x128xbf16> to vector<8x128xbf16>
    %cst_32 = arith.constant dense<0.000000e+00> : vector<288x128xf32>
    %23 = tpu.matmul %20, %22, %cst_32 {dimension_numbers = #tpu.dot_dimension_numbers<[1], [0], [0], [1], [0, 0, 1, 1], [], []>} : vector<288x8xbf16>, vector<8x128xbf16>, vector<288x128xf32> -> vector<288x128xf32>
    %24 = arith.addf %18, %23 : vector<288x128xf32>
    %c0_33 = arith.constant 0 : index
    %c0_34 = arith.constant 0 : index
    %25 = vector.load %arg7[%c0_33, %c0_34] : memref<288x128xf32, #tpu.memory_space<vmem>>, vector<288x128xf32>
    tpu.vector_store %arg7[%c0_33, %c0_34], %24 {strides = array<i32>} : memref<288x128xf32, #tpu.memory_space<vmem>>, vector<288x128xf32>,
    %c0_35 = arith.constant 0 : index
    %c0_36 = arith.constant 0 : index
    %26 = vector.load %arg7[%c0_35, %c0_36] : memref<288x128xf32, #tpu.memory_space<vmem>>, vector<288x128xf32>
    %c0_37 = arith.constant 0 : index
    %c18 = arith.constant 18 : index
    %c0_38 = arith.constant 0 : index
    %27 = vector.load %arg2[%c0_37, %c18, %c0_38] : memref<1x342x8xbf16, #tpu.memory_space<vmem>>, vector<1x288x8xbf16>
    %28 = vector.shape_cast %27 : vector<1x288x8xbf16> to vector<288x8xbf16>
    %c1_39 = arith.constant 1 : index
    %c0_40 = arith.constant 0 : index
    %c0_41 = arith.constant 0 : index
    %c0_42 = arith.constant 0 : index
    %29 = vector.load %arg3[%c1_39, %c0_40, %c0_41, %c0_42] : memref<3x3x8x128xbf16, #tpu.memory_space<vmem>>, vector<1x1x8x128xbf16>
    %30 = vector.shape_cast %29 : vector<1x1x8x128xbf16> to vector<8x128xbf16>
    %cst_43 = arith.constant dense<0.000000e+00> : vector<288x128xf32>
    %31 = tpu.matmul %28, %30, %cst_43 {dimension_numbers = #tpu.dot_dimension_numbers<[1], [0], [0], [1], [0, 0, 1, 1], [], []>} : vector<288x8xbf16>, vector<8x128xbf16>, vector<288x128xf32> -> vector<288x128xf32>
    %32 = arith.addf %26, %31 : vector<288x128xf32>
    %c0_44 = arith.constant 0 : index
    %c0_45 = arith.constant 0 : index
    %33 = vector.load %arg7[%c0_44, %c0_45] : memref<288x128xf32, #tpu.memory_space<vmem>>, vector<288x128xf32>
    tpu.vector_store %arg7[%c0_44, %c0_45], %32 {strides = array<i32>} : memref<288x128xf32, #tpu.memory_space<vmem>>, vector<288x128xf32>,
    %c0_46 = arith.constant 0 : index
    %c0_47 = arith.constant 0 : index
    %34 = vector.load %arg7[%c0_46, %c0_47] : memref<288x128xf32, #tpu.memory_space<vmem>>, vector<288x128xf32>
    %c0_48 = arith.constant 0 : index
    %c19 = arith.constant 19 : index
    %c0_49 = arith.constant 0 : index
    %35 = vector.load %arg2[%c0_48, %c19, %c0_49] : memref<1x342x8xbf16, #tpu.memory_space<vmem>>, vector<1x288x8xbf16>
    %36 = vector.shape_cast %35 : vector<1x288x8xbf16> to vector<288x8xbf16>
    %c1_50 = arith.constant 1 : index
    %c1_51 = arith.constant 1 : index
    %c0_52 = arith.constant 0 : index
    %c0_53 = arith.constant 0 : index
    %37 = vector.load %arg3[%c1_50, %c1_51, %c0_52, %c0_53] : memref<3x3x8x128xbf16, #tpu.memory_space<vmem>>, vector<1x1x8x128xbf16>
    %38 = vector.shape_cast %37 : vector<1x1x8x128xbf16> to vector<8x128xbf16>
    %cst_54 = arith.constant dense<0.000000e+00> : vector<288x128xf32>
    %39 = tpu.matmul %36, %38, %cst_54 {dimension_numbers = #tpu.dot_dimension_numbers<[1], [0], [0], [1], [0, 0, 1, 1], [], []>} : vector<288x8xbf16>, vector<8x128xbf16>, vector<288x128xf32> -> vector<288x128xf32>
    %40 = arith.addf %34, %39 : vector<288x128xf32>
    %c0_55 = arith.constant 0 : index
    %c0_56 = arith.constant 0 : index
    %41 = vector.load %arg7[%c0_55, %c0_56] : memref<288x128xf32, #tpu.memory_space<vmem>>, vector<288x128xf32>
    tpu.vector_store %arg7[%c0_55, %c0_56], %40 {strides = array<i32>} : memref<288x128xf32, #tpu.memory_space<vmem>>, vector<288x128xf32>,
    %c0_57 = arith.constant 0 : index
    %c0_58 = arith.constant 0 : index
    %42 = vector.load %arg7[%c0_57, %c0_58] : memref<288x128xf32, #tpu.memory_space<vmem>>, vector<288x128xf32>
    %c0_59 = arith.constant 0 : index
    %c20 = arith.constant 20 : index
    %c0_60 = arith.constant 0 : index
    %43 = vector.load %arg2[%c0_59, %c20, %c0_60] : memref<1x342x8xbf16, #tpu.memory_space<vmem>>, vector<1x288x8xbf16>
    %44 = vector.shape_cast %43 : vector<1x288x8xbf16> to vector<288x8xbf16>
    %c1_61 = arith.constant 1 : index
    %c2_62 = arith.constant 2 : index
    %c0_63 = arith.constant 0 : index
    %c0_64 = arith.constant 0 : index
    %45 = vector.load %arg3[%c1_61, %c2_62, %c0_63, %c0_64] : memref<3x3x8x128xbf16, #tpu.memory_space<vmem>>, vector<1x1x8x128xbf16>
    %46 = vector.shape_cast %45 : vector<1x1x8x128xbf16> to vector<8x128xbf16>
    %cst_65 = arith.constant dense<0.000000e+00> : vector<288x128xf32>
    %47 = tpu.matmul %44, %46, %cst_65 {dimension_numbers = #tpu.dot_dimension_numbers<[1], [0], [0], [1], [0, 0, 1, 1], [], []>} : vector<288x8xbf16>, vector<8x128xbf16>, vector<288x128xf32> -> vector<288x128xf32>
    %48 = arith.addf %42, %47 : vector<288x128xf32>
    %c0_66 = arith.constant 0 : index
    %c0_67 = arith.constant 0 : index
    %49 = vector.load %arg7[%c0_66, %c0_67] : memref<288x128xf32, #tpu.memory_space<vmem>>, vector<288x128xf32>
    tpu.vector_store %arg7[%c0_66, %c0_67], %48 {strides = array<i32>} : memref<288x128xf32, #tpu.memory_space<vmem>>, vector<288x128xf32>,
    %c0_68 = arith.constant 0 : index
    %c0_69 = arith.constant 0 : index
    %50 = vector.load %arg7[%c0_68, %c0_69] : memref<288x128xf32, #tpu.memory_space<vmem>>, vector<288x128xf32>
    %c0_70 = arith.constant 0 : index
    %c36 = arith.constant 36 : index
    %c0_71 = arith.constant 0 : index
    %51 = vector.load %arg2[%c0_70, %c36, %c0_71] : memref<1x342x8xbf16, #tpu.memory_space<vmem>>, vector<1x288x8xbf16>
    %52 = vector.shape_cast %51 : vector<1x288x8xbf16> to vector<288x8xbf16>
    %c2_72 = arith.constant 2 : index
    %c0_73 = arith.constant 0 : index
    %c0_74 = arith.constant 0 : index
    %c0_75 = arith.constant 0 : index
    %53 = vector.load %arg3[%c2_72, %c0_73, %c0_74, %c0_75] : memref<3x3x8x128xbf16, #tpu.memory_space<vmem>>, vector<1x1x8x128xbf16>
    %54 = vector.shape_cast %53 : vector<1x1x8x128xbf16> to vector<8x128xbf16>
    %cst_76 = arith.constant dense<0.000000e+00> : vector<288x128xf32>
    %55 = tpu.matmul %52, %54, %cst_76 {dimension_numbers = #tpu.dot_dimension_numbers<[1], [0], [0], [1], [0, 0, 1, 1], [], []>} : vector<288x8xbf16>, vector<8x128xbf16>, vector<288x128xf32> -> vector<288x128xf32>
    %56 = arith.addf %50, %55 : vector<288x128xf32>
    %c0_77 = arith.constant 0 : index
    %c0_78 = arith.constant 0 : index
    %57 = vector.load %arg7[%c0_77, %c0_78] : memref<288x128xf32, #tpu.memory_space<vmem>>, vector<288x128xf32>
    tpu.vector_store %arg7[%c0_77, %c0_78], %56 {strides = array<i32>} : memref<288x128xf32, #tpu.memory_space<vmem>>, vector<288x128xf32>,
    %c0_79 = arith.constant 0 : index
    %c0_80 = arith.constant 0 : index
    %58 = vector.load %arg7[%c0_79, %c0_80] : memref<288x128xf32, #tpu.memory_space<vmem>>, vector<288x128xf32>
    %c0_81 = arith.constant 0 : index
    %c37 = arith.constant 37 : index
    %c0_82 = arith.constant 0 : index
    %59 = vector.load %arg2[%c0_81, %c37, %c0_82] : memref<1x342x8xbf16, #tpu.memory_space<vmem>>, vector<1x288x8xbf16>
    %60 = vector.shape_cast %59 : vector<1x288x8xbf16> to vector<288x8xbf16>
    %c2_83 = arith.constant 2 : index
    %c1_84 = arith.constant 1 : index
    %c0_85 = arith.constant 0 : index
    %c0_86 = arith.constant 0 : index
    %61 = vector.load %arg3[%c2_83, %c1_84, %c0_85, %c0_86] : memref<3x3x8x128xbf16, #tpu.memory_space<vmem>>, vector<1x1x8x128xbf16>
    %62 = vector.shape_cast %61 : vector<1x1x8x128xbf16> to vector<8x128xbf16>
    %cst_87 = arith.constant dense<0.000000e+00> : vector<288x128xf32>
    %63 = tpu.matmul %60, %62, %cst_87 {dimension_numbers = #tpu.dot_dimension_numbers<[1], [0], [0], [1], [0, 0, 1, 1], [], []>} : vector<288x8xbf16>, vector<8x128xbf16>, vector<288x128xf32> -> vector<288x128xf32>
    %64 = arith.addf %58, %63 : vector<288x128xf32>
    %c0_88 = arith.constant 0 : index
    %c0_89 = arith.constant 0 : index
    %65 = vector.load %arg7[%c0_88, %c0_89] : memref<288x128xf32, #tpu.memory_space<vmem>>, vector<288x128xf32>
    tpu.vector_store %arg7[%c0_88, %c0_89], %64 {strides = array<i32>} : memref<288x128xf32, #tpu.memory_space<vmem>>, vector<288x128xf32>,
    %c0_90 = arith.constant 0 : index
    %c0_91 = arith.constant 0 : index
    %66 = vector.load %arg7[%c0_90, %c0_91] : memref<288x128xf32, #tpu.memory_space<vmem>>, vector<288x128xf32>
    %c0_92 = arith.constant 0 : index
    %c38 = arith.constant 38 : index
    %c0_93 = arith.constant 0 : index
    %67 = vector.load %arg2[%c0_92, %c38, %c0_93] : memref<1x342x8xbf16, #tpu.memory_space<vmem>>, vector<1x288x8xbf16>
    %68 = vector.shape_cast %67 : vector<1x288x8xbf16> to vector<288x8xbf16>
    %c2_94 = arith.constant 2 : index
    %c2_95 = arith.constant 2 : index
    %c0_96 = arith.constant 0 : index
    %c0_97 = arith.constant 0 : index
    %69 = vector.load %arg3[%c2_94, %c2_95, %c0_96, %c0_97] : memref<3x3x8x128xbf16, #tpu.memory_space<vmem>>, vector<1x1x8x128xbf16>
    %70 = vector.shape_cast %69 : vector<1x1x8x128xbf16> to vector<8x128xbf16>
    %cst_98 = arith.constant dense<0.000000e+00> : vector<288x128xf32>
    %71 = tpu.matmul %68, %70, %cst_98 {dimension_numbers = #tpu.dot_dimension_numbers<[1], [0], [0], [1], [0, 0, 1, 1], [], []>} : vector<288x8xbf16>, vector<8x128xbf16>, vector<288x128xf32> -> vector<288x128xf32>
    %72 = arith.addf %66, %71 : vector<288x128xf32>
    %c0_99 = arith.constant 0 : index
    %c0_100 = arith.constant 0 : index
    %73 = vector.load %arg7[%c0_99, %c0_100] : memref<288x128xf32, #tpu.memory_space<vmem>>, vector<288x128xf32>
    tpu.vector_store %arg7[%c0_99, %c0_100], %72 {strides = array<i32>} : memref<288x128xf32, #tpu.memory_space<vmem>>, vector<288x128xf32>,
    %c0_101 = arith.constant 0 : index
    %c0_102 = arith.constant 0 : index
    %74 = vector.load %arg7[%c0_101, %c0_102] : memref<288x128xf32, #tpu.memory_space<vmem>>, vector<288x128xf32>
    %c0_103 = arith.constant 0 : index
    %c0_104 = arith.constant 0 : index
    %75 = vector.load %arg4[%c0_103, %c0_104] : memref<1x128xf32, #tpu.memory_space<vmem>>, vector<1x128xf32>
    %76 = vector.broadcast %75 : vector<1x128xf32> to vector<288x128xf32>
    %77 = arith.mulf %74, %76 : vector<288x128xf32>
    %c0_105 = arith.constant 0 : index
    %c0_106 = arith.constant 0 : index
    %78 = vector.load %arg5[%c0_105, %c0_106] : memref<1x128xf32, #tpu.memory_space<vmem>>, vector<1x128xf32>
    %79 = vector.broadcast %78 : vector<1x128xf32> to vector<288x128xf32>
    %80 = arith.addf %77, %79 : vector<288x128xf32>
    %cst_107 = arith.constant 0.000000e+00 : f32
    %81 = vector.broadcast %cst_107 : f32 to vector<288x128xf32>
    %82 = arith.maximumf %80, %81 : vector<288x128xf32>
    %83 = arith.truncf %82 : vector<288x128xf32> to vector<288x128xbf16>
    %c0_108 = arith.constant 0 : index
    %c0_109 = arith.constant 0 : index
    %c0_110 = arith.constant 0 : index
    %84 = vector.load %arg6[%c0_108, %c0_109, %c0_110] : memref<1x288x128xbf16, #tpu.memory_space<vmem>>, vector<1x288x128xbf16>
    %85 = vector.shape_cast %84 : vector<1x288x128xbf16> to vector<288x128xbf16>
    %86 = vector.shape_cast %83 : vector<288x128xbf16> to vector<1x288x128xbf16>
    tpu.vector_store %arg6[%c0_108, %c0_109, %c0_110], %86 {strides = array<i32>} : memref<1x288x128xbf16, #tpu.memory_space<vmem>>, vector<1x288x128xbf16>,
    return
  }
  func.func @transform_0(%arg0: i32, %arg1: i32) -> (i32, i32, i32) {
    %c0_i32 = arith.constant 0 : i32
    %c0_i32_0 = arith.constant 0 : i32
    %c0_i32_1 = arith.constant 0 : i32
    return %arg0, %c0_i32, %c0_i32_0 : i32, i32, i32
  }
  func.func @transform_1(%arg0: i32, %arg1: i32) -> (i32, i32, i32, i32) {
    %c0_i32 = arith.constant 0 : i32
    %c0_i32_0 = arith.constant 0 : i32
    %c0_i32_1 = arith.constant 0 : i32
    %c0_i32_2 = arith.constant 0 : i32
    return %c0_i32, %c0_i32_0, %c0_i32_1, %arg1 : i32, i32, i32, i32
  }
  func.func @transform_2(%arg0: i32, %arg1: i32) -> (i32, i32) {
    %c0_i32 = arith.constant 0 : i32
    %c0_i32_0 = arith.constant 0 : i32
    return %c0_i32, %arg1 : i32, i32
  }
  func.func @transform_3(%arg0: i32, %arg1: i32) -> (i32, i32) {
    %c0_i32 = arith.constant 0 : i32
    %c0_i32_0 = arith.constant 0 : i32
    return %c0_i32, %arg1 : i32, i32
  }
  func.func @transform_4(%arg0: i32, %arg1: i32) -> (i32, i32, i32) {
    %c0_i32 = arith.constant 0 : i32
    %c0_i32_0 = arith.constant 0 : i32
    return %arg0, %c0_i32, %arg1 : i32, i32, i32
  }
}

</mosaic_0001>

<llo_original>
// kernel: tpu_custom_call.1
$region0: #{tpu_custom_call.1}
  #allocation0 [shape = 'u32[]', space=smem, size = 0x4, offset = 0x4, fixed_abs, tag = 'smem constant byte address 0x4 - core index']
  #allocation1 [shape = 'u32[144,128]{1,0:T(1,128)}', space=vmem, size = 0x12000, scoped, tag = 'internal scratch']
  #allocation2 [shape = 'f32[288,128]{1,0:T(8,128)}', space=vmem, size = 0x24000, scoped, tag = 'scratch operand']
  %s0 = inlined_call_operand.vmem [shape: bf16[2,342,8], index: 0, kind: input, shape index: {}]
  %s1 = inlined_call_operand.vmem [shape: bf16[3,3,8,128], index: 1, kind: input, shape index: {}]
  %s2 = inlined_call_operand.vmem [shape: f32[1,128], index: 2, kind: input, shape index: {}]
  %s3 = inlined_call_operand.vmem [shape: f32[1,128], index: 3, kind: input, shape index: {}]
  %s4 = inlined_call_operand.hbm [shape: bf16[2,288,128], index: 4, kind: output, shape index: {}]
  %s5 = sld [smem:[#allocation0]]
  $region49: #{tpu_custom_call.1} parent=0
    _
  %s7 = ssub.s32 1, %s5
  %s8 = scalar_select 0, %s7, %s5
  $region1: #{tpu_custom_call.1} parent=0
    #allocation3 [shape = 'u8[147456]{0}', space=vmem, size = 0x24000, scoped, tag = 'output window, operand 0']
    #allocation4 [shape = 's32[2]{0}', space=sflag, size = 0x8, scoped, tag = 'scoped memory for tpu_custom_call.1']
    %9 = vsyncpa [#allocation4], 0
    %s10 = scalar_lea.sflag [#allocation4], 1
    %11 = vsyncpa %s10, 0
    loop: start=0, step=1, limit=4
    $region2: #{tpu_custom_call.1} parent=1 // loop_pre_header
      _
    $region3: #{tpu_custom_call.1} parent=1 // loop_header
      %s13 = sphi 0, %s17
      %p14 = scmp.ge.s32.totalorder %s13, 4
      %s20 = sphi 0, %s32
      %s21 = sphi 0, %s28
      %s22 = sphi 0, %s20
      %s23 = sphi 0, %s21
      %s24 = sphi 0, %s22
      %s25 = sphi 0, %s23
      %s35 = sphi 0, %s37
      %s38 = sphi 0, %s35
      %s39 = sphi 0, %s38
      %s55 = sphi 0, %s39
      %s61 = sphi 0, %s63
      %s64 = sphi 0, %s61
      %s65 = sphi 0, %s64
      %s81 = sphi 0, %s65
      %s87 = sphi 0, %s89
      %s90 = sphi 0, %s87
      %s91 = sphi 0, %s90
      %s107 = sphi 0, %s91
      %s113 = sphi 0, %s115
      %s116 = sphi 0, %s113
      %s117 = sphi 0, %s116
      %s133 = sphi 0, %s117
      %s141 = sphi 0, %s143
      %s144 = sphi 0, %s141
      %s145 = sphi 0, %s144
      %s161 = sphi 0, %s145
    $region4: #{tpu_custom_call.1} parent=1 // loop_header_branch
      %16 = sbr.rel (%p14) target = $region8
    $region5: #{tpu_custom_call.1} parent=1 // loop_body
      %s18 = ssub.s32 %s13, 1
      %s19 = ssub.s32 %s13, 2
      %s26 = sadd.s32 1, %s21
      %p27 = scmp.ge.s32.totalorder %s26, 1
      %s28 = scalar_select %p27, 0, %s26
      %s29 = sadd.s32 1, %s20
      %s30 = scalar_select %p27, %s29, %s20
      %p31 = scmp.ge.s32.totalorder %s30, 2
      %s32 = scalar_select %p31, 0, %s30
      %s33 = ssub.s32 %s20, %s32
      %p34 = scmp.eq.s32.totalorder %s33, 0
      %s36 = sadd.s32 %s35, 1
      %s37 = scalar_select %p34, %s35, %s36
      %p40 = pneg %p34
      %p41 = scmp.eq.s32.totalorder %s13, 1
      %p42 = por %p40, %p41
      %p43 = scmp.ne.s32.totalorder %s35, %s38
      %p44 = scmp.eq.s32.totalorder %s13, 0
      %p45 = por %p43, %p44
      %p46 = scmp.ne.s32.totalorder %s35, %s38
      %p47 = scmp.eq.s32.totalorder %s18, 1
      %p48 = por %p46, %p47
      %p49 = scmp.ne.s32.totalorder %s38, %s39
      %p50 = scmp.eq.s32.totalorder %s18, 0
      %p51 = por %p49, %p50
      %p52 = scmp.ne.s32.totalorder %s38, %s39
      %p53 = scmp.eq.s32.totalorder %s19, 1
      %p54 = por %p52, %p53
      %p56 = scmp.ne.s32.totalorder %s39, %s55
      %p57 = scmp.eq.s32.totalorder %s19, 0
      %p58 = por %p56, %p57
      %s59 = ssub.s32 %s21, %s28
      %p60 = scmp.eq.s32.totalorder %s59, 0
      %s62 = sadd.s32 %s61, 1
      %s63 = scalar_select %p60, %s61, %s62
      %p66 = pneg %p60
      %p67 = scmp.eq.s32.totalorder %s13, 1
      %p68 = por %p66, %p67
      %p69 = scmp.ne.s32.totalorder %s61, %s64
      %p70 = scmp.eq.s32.totalorder %s13, 0
      %p71 = por %p69, %p70
      %p72 = scmp.ne.s32.totalorder %s61, %s64
      %p73 = scmp.eq.s32.totalorder %s18, 1
      %p74 = por %p72, %p73
      %p75 = scmp.ne.s32.totalorder %s64, %s65
      %p76 = scmp.eq.s32.totalorder %s18, 0
      %p77 = por %p75, %p76
      %p78 = scmp.ne.s32.totalorder %s64, %s65
      %p79 = scmp.eq.s32.totalorder %s19, 1
      %p80 = por %p78, %p79
      %p82 = scmp.ne.s32.totalorder %s65, %s81
      %p83 = scmp.eq.s32.totalorder %s19, 0
      %p84 = por %p82, %p83
      %s85 = ssub.s32 %s21, %s28
      %p86 = scmp.eq.s32.totalorder %s85, 0
      %s88 = sadd.s32 %s87, 1
      %s89 = scalar_select %p86, %s87, %s88
      %p92 = pneg %p86
      %p93 = scmp.eq.s32.totalorder %s13, 1
      %p94 = por %p92, %p93
      %p95 = scmp.ne.s32.totalorder %s87, %s90
      %p96 = scmp.eq.s32.totalorder %s13, 0
      %p97 = por %p95, %p96
      %p98 = scmp.ne.s32.totalorder %s87, %s90
      %p99 = scmp.eq.s32.totalorder %s18, 1
      %p100 = por %p98, %p99
      %p101 = scmp.ne.s32.totalorder %s90, %s91
      %p102 = scmp.eq.s32.totalorder %s18, 0
      %p103 = por %p101, %p102
      %p104 = scmp.ne.s32.totalorder %s90, %s91
      %p105 = scmp.eq.s32.totalorder %s19, 1
      %p106 = por %p104, %p105
      %p108 = scmp.ne.s32.totalorder %s91, %s107
      %p109 = scmp.eq.s32.totalorder %s19, 0
      %p110 = por %p108, %p109
      %s111 = ssub.s32 %s21, %s28
      %p112 = scmp.eq.s32.totalorder %s111, 0
      %s114 = sadd.s32 %s113, 1
      %s115 = scalar_select %p112, %s113, %s114
      %p118 = pneg %p112
      %p119 = scmp.eq.s32.totalorder %s13, 1
      %p120 = por %p118, %p119
      %p121 = scmp.ne.s32.totalorder %s113, %s116
      %p122 = scmp.eq.s32.totalorder %s13, 0
      %p123 = por %p121, %p122
      %p124 = scmp.ne.s32.totalorder %s113, %s116
      %p125 = scmp.eq.s32.totalorder %s18, 1
      %p126 = por %p124, %p125
      %p127 = scmp.ne.s32.totalorder %s116, %s117
      %p128 = scmp.eq.s32.totalorder %s18, 0
      %p129 = por %p127, %p128
      %p130 = scmp.ne.s32.totalorder %s116, %s117
      %p131 = scmp.eq.s32.totalorder %s19, 1
      %p132 = por %p130, %p131
      %p134 = scmp.ne.s32.totalorder %s117, %s133
      %p135 = scmp.eq.s32.totalorder %s19, 0
      %p136 = por %p134, %p135
      %s137 = ssub.s32 %s20, %s32
      %s138 = ssub.s32 %s21, %s28
      %s139 = sor.u32 %s137, %s138
      %p140 = scmp.eq.s32.totalorder %s139, 0
      %s142 = sadd.s32 %s141, 1
      %s143 = scalar_select %p140, %s141, %s142
      %p146 = pneg %p140
      %p147 = scmp.eq.s32.totalorder %s13, 1
      %p148 = por %p146, %p147
      %p149 = scmp.ne.s32.totalorder %s141, %s144
      %p150 = scmp.eq.s32.totalorder %s13, 0
      %p151 = por %p149, %p150
      %p152 = scmp.ne.s32.totalorder %s141, %s144
      %p153 = scmp.eq.s32.totalorder %s18, 1
      %p154 = por %p152, %p153
      %p155 = scmp.ne.s32.totalorder %s144, %s145
      %p156 = scmp.eq.s32.totalorder %s18, 0
      %p157 = por %p155, %p156
      %p158 = scmp.ne.s32.totalorder %s144, %s145
      %p159 = scmp.eq.s32.totalorder %s19, 1
      %p160 = por %p158, %p159
      %p162 = scmp.ne.s32.totalorder %s145, %s161
      %p163 = scmp.eq.s32.totalorder %s19, 0
      %p164 = por %p162, %p163
      %p165 = scmp.le.s32.totalorder 1, %s13
      %p166 = scmp.lt.s32.totalorder %s13, 3
      %p167 = pnand %p165, %p166
      %p168 = pneg %p167
      // Predicated region
      $region9: #{tpu_custom_call.1} parent=5 // pred_check
        _
      $region10: #{tpu_custom_call.1} parent=5 // pred_check_branch
        %170 = sbr.rel (%p167) target = $region12
      $region11: #{tpu_custom_call.1} parent=5 // pred_region
        %s171 = ssub.s32 %s13, 1
        // Predicated region
        $region13: #{tpu_custom_call.1} parent=11 // pred_check
          %p172 = pneg %p77
        $region14: #{tpu_custom_call.1} parent=11 // pred_check_branch
          %174 = sbr.rel (%p172) target = $region16
        $region15: #{tpu_custom_call.1} parent=11 // pred_region
          %p175 = scmp.lt.s32.totalorder %s23, 0
          %s176 = scalar_select %p175, %s23, 0
          %s177 = smul.addr %s176, 4
          %s178 = scalar_lea.vmem %s1, %s177
        $region16: #{tpu_custom_call.1} parent=11 // pred_fallthru
          _
        // Predicated region
        $region17: #{tpu_custom_call.1} parent=11 // pred_check
          %p179 = pneg %p103
        $region18: #{tpu_custom_call.1} parent=11 // pred_check_branch
          %181 = sbr.rel (%p179) target = $region20
        $region19: #{tpu_custom_call.1} parent=11 // pred_region
          %p182 = scmp.lt.s32.totalorder %s23, 0
          %s183 = scalar_select %p182, %s23, 0
          %s184 = scalar_lea.vmem %s2, %s183
        $region20: #{tpu_custom_call.1} parent=11 // pred_fallthru
          _
        // Predicated region
        $region21: #{tpu_custom_call.1} parent=11 // pred_check
          %p185 = pneg %p129
        $region22: #{tpu_custom_call.1} parent=11 // pred_check_branch
          %187 = sbr.rel (%p185) target = $region24
        $region23: #{tpu_custom_call.1} parent=11 // pred_region
          %p188 = scmp.lt.s32.totalorder %s23, 0
          %s189 = scalar_select %p188, %s23, 0
          %s190 = scalar_lea.vmem %s3, %s189
        $region24: #{tpu_custom_call.1} parent=11 // pred_fallthru
          _
      $region12: #{tpu_custom_call.1} parent=5 // pred_fallthru
        _
      %p191 = scmp.lt.s32.totalorder %s13, 2
      // Predicated region
      $region25: #{tpu_custom_call.1} parent=5 // pred_check
        %p192 = pneg %p191
      $region26: #{tpu_custom_call.1} parent=5 // pred_check_branch
        %194 = sbr.rel (%p192) target = $region28
      $region27: #{tpu_custom_call.1} parent=5 // pred_region
        // Predicated region
        $region29: #{tpu_custom_call.1} parent=27 // pred_check
          %p195 = pneg %p45
        $region30: #{tpu_custom_call.1} parent=27 // pred_check_branch
          %197 = sbr.rel (%p195) target = $region32
        $region31: #{tpu_custom_call.1} parent=27 // pred_region
          %p198 = scmp.lt.s32.totalorder %s20, 1
          %s199 = scalar_select %p198, %s20, 1
          %s200 = smul.addr %s199, 43
          %s201 = smul.addr %s200, 4
          %s202 = scalar_lea.vmem %s0, %s201
        $region32: #{tpu_custom_call.1} parent=27 // pred_fallthru
          _
      $region28: #{tpu_custom_call.1} parent=5 // pred_fallthru
        _
      %p203 = scmp.le.s32.totalorder 1, %s13
      %p204 = scmp.lt.s32.totalorder %s13, 3
      %p205 = pnand %p203, %p204
      %p206 = pneg %p205
      // Predicated region
      $region33: #{tpu_custom_call.1} parent=5 // pred_check
        _
      $region34: #{tpu_custom_call.1} parent=5 // pred_check_branch
        %208 = sbr.rel (%p205) target = $region36
      $region35: #{tpu_custom_call.1} parent=5 // pred_region
        %s209 = ssub.s32 %s13, 1
        %p210 = scmp.lt.s32.totalorder %s22, 1
        %s211 = scalar_select %p210, %s22, 1
        %s212 = smul.addr %s211, 43
        %s213 = smul.addr %s212, 4
        %s214 = scalar_lea.vmem %s0, %s213
        %p215 = pneg %p51
        %p216 = pneg %p48
        %p217 = scmp.lt.s32.totalorder %s23, 0
        %s218 = scalar_select %p217, %s23, 0
        %s219 = smul.addr %s218, 4
        %s220 = scalar_lea.vmem %s1, %s219
        %p221 = pneg %p77
        %p222 = pneg %p74
        %p223 = scmp.lt.s32.totalorder %s23, 0
        %s224 = scalar_select %p223, %s23, 0
        %s225 = scalar_lea.vmem %s2, %s224
        %p226 = pneg %p103
        %p227 = pneg %p100
        %p228 = scmp.lt.s32.totalorder %s23, 0
        %s229 = scalar_select %p228, %s23, 0
        %s230 = scalar_lea.vmem %s3, %s229
        %p231 = pneg %p129
        %p232 = pneg %p126
        %p233 = pneg %p157
        %p234 = pneg %p154
        %s235 = sand.u32 %s144, 1
        %s236 = scalar_lea.sflag [#allocation4], %s235
        %s237 = sand.u32 %s144, 1
        %s238 = smul.addr %s237, 144
        %s239 = scalar_lea.vmem [#allocation3], %s238
        %p240 = scmp.lt.s32.totalorder %s22, 1
        %s241 = scalar_select %p240, %s22, 1
        %s242 = smul.addr %s241, 43
        %s243 = smul.addr %s242, 4
        %s244 = scalar_lea.vmem %s0, %s243
        %p245 = scmp.lt.s32.totalorder %s23, 0
        %s246 = scalar_select %p245, %s23, 0
        %s247 = smul.addr %s246, 4
        %s248 = scalar_lea.vmem %s1, %s247
        %p249 = scmp.lt.s32.totalorder %s23, 0
        %s250 = scalar_select %p249, %s23, 0
        %s251 = scalar_lea.vmem %s2, %s250
        %p252 = scmp.lt.s32.totalorder %s23, 0
        %s253 = scalar_select %p252, %s23, 0
        %s254 = scalar_lea.vmem %s3, %s253
        %256 = vst [vmem:[#allocation2] sm:$0xff] 0.0
        %257 = vst [vmem:[#allocation2 + $0x8] sm:$0xff] 0.0
        %258 = vst [vmem:[#allocation2 + $0x10] sm:$0xff] 0.0
        %259 = vst [vmem:[#allocation2 + $0x18] sm:$0xff] 0.0
        %260 = vst [vmem:[#allocation2 + $0x20] sm:$0xff] 0.0
        %261 = vst [vmem:[#allocation2 + $0x28] sm:$0xff] 0.0
        %262 = vst [vmem:[#allocation2 + $0x30] sm:$0xff] 0.0
        %263 = vst [vmem:[#allocation2 + $0x38] sm:$0xff] 0.0
        %264 = vst [vmem:[#allocation2 + $0x40] sm:$0xff] 0.0
        %265 = vst [vmem:[#allocation2 + $0x48] sm:$0xff] 0.0
        %266 = vst [vmem:[#allocation2 + $0x50] sm:$0xff] 0.0
        %267 = vst [vmem:[#allocation2 + $0x58] sm:$0xff] 0.0
        %268 = vst [vmem:[#allocation2 + $0x60] sm:$0xff] 0.0
        %269 = vst [vmem:[#allocation2 + $0x68] sm:$0xff] 0.0
        %270 = vst [vmem:[#allocation2 + $0x70] sm:$0xff] 0.0
        %271 = vst [vmem:[#allocation2 + $0x78] sm:$0xff] 0.0
        %272 = vst [vmem:[#allocation2 + $0x80] sm:$0xff] 0.0
        %273 = vst [vmem:[#allocation2 + $0x88] sm:$0xff] 0.0
        %274 = vst [vmem:[#allocation2 + $0x90] sm:$0xff] 0.0
        %275 = vst [vmem:[#allocation2 + $0x98] sm:$0xff] 0.0
        %276 = vst [vmem:[#allocation2 + $0xa0] sm:$0xff] 0.0
        %277 = vst [vmem:[#allocation2 + $0xa8] sm:$0xff] 0.0
        %278 = vst [vmem:[#allocation2 + $0xb0] sm:$0xff] 0.0
        %279 = vst [vmem:[#allocation2 + $0xb8] sm:$0xff] 0.0
        %280 = vst [vmem:[#allocation2 + $0xc0] sm:$0xff] 0.0
        %281 = vst [vmem:[#allocation2 + $0xc8] sm:$0xff] 0.0
        %282 = vst [vmem:[#allocation2 + $0xd0] sm:$0xff] 0.0
        %283 = vst [vmem:[#allocation2 + $0xd8] sm:$0xff] 0.0
        %284 = vst [vmem:[#allocation2 + $0xe0] sm:$0xff] 0.0
        %285 = vst [vmem:[#allocation2 + $0xe8] sm:$0xff] 0.0
        %286 = vst [vmem:[#allocation2 + $0xf0] sm:$0xff] 0.0
        %287 = vst [vmem:[#allocation2 + $0xf8] sm:$0xff] 0.0
        %288 = vst [vmem:[#allocation2 + $0x100] sm:$0xff] 0.0
        %289 = vst [vmem:[#allocation2 + $0x108] sm:$0xff] 0.0
        %290 = vst [vmem:[#allocation2 + $0x110] sm:$0xff] 0.0
        %291 = vst [vmem:[#allocation2 + $0x118] sm:$0xff] 0.0
        %v292 = vld [vmem:[#allocation2] sm:$0xff]
        %v293 = vld [vmem:[#allocation2 + $0x8] sm:$0xff]
        %v294 = vld [vmem:[#allocation2 + $0x10] sm:$0xff]
        %v295 = vld [vmem:[#allocation2 + $0x18] sm:$0xff]
        %v296 = vld [vmem:[#allocation2 + $0x20] sm:$0xff]
        %v297 = vld [vmem:[#allocation2 + $0x28] sm:$0xff]
        %v298 = vld [vmem:[#allocation2 + $0x30] sm:$0xff]
        %v299 = vld [vmem:[#allocation2 + $0x38] sm:$0xff]
        %v300 = vld [vmem:[#allocation2 + $0x40] sm:$0xff]
        %v301 = vld [vmem:[#allocation2 + $0x48] sm:$0xff]
        %v302 = vld [vmem:[#allocation2 + $0x50] sm:$0xff]
        %v303 = vld [vmem:[#allocation2 + $0x58] sm:$0xff]
        %v304 = vld [vmem:[#allocation2 + $0x60] sm:$0xff]
        %v305 = vld [vmem:[#allocation2 + $0x68] sm:$0xff]
        %v306 = vld [vmem:[#allocation2 + $0x70] sm:$0xff]
        %v307 = vld [vmem:[#allocation2 + $0x78] sm:$0xff]
        %v308 = vld [vmem:[#allocation2 + $0x80] sm:$0xff]
        %v309 = vld [vmem:[#allocation2 + $0x88] sm:$0xff]
        %v310 = vld [vmem:[#allocation2 + $0x90] sm:$0xff]
        %v311 = vld [vmem:[#allocation2 + $0x98] sm:$0xff]
        %v312 = vld [vmem:[#allocation2 + $0xa0] sm:$0xff]
        %v313 = vld [vmem:[#allocation2 + $0xa8] sm:$0xff]
        %v314 = vld [vmem:[#allocation2 + $0xb0] sm:$0xff]
        %v315 = vld [vmem:[#allocation2 + $0xb8] sm:$0xff]
        %v316 = vld [vmem:[#allocation2 + $0xc0] sm:$0xff]
        %v317 = vld [vmem:[#allocation2 + $0xc8] sm:$0xff]
        %v318 = vld [vmem:[#allocation2 + $0xd0] sm:$0xff]
        %v319 = vld [vmem:[#allocation2 + $0xd8] sm:$0xff]
        %v320 = vld [vmem:[#allocation2 + $0xe0] sm:$0xff]
        %v321 = vld [vmem:[#allocation2 + $0xe8] sm:$0xff]
        %v322 = vld [vmem:[#allocation2 + $0xf0] sm:$0xff]
        %v323 = vld [vmem:[#allocation2 + $0xf8] sm:$0xff]
        %v324 = vld [vmem:[#allocation2 + $0x100] sm:$0xff]
        %v325 = vld [vmem:[#allocation2 + $0x108] sm:$0xff]
        %v326 = vld [vmem:[#allocation2 + $0x110] sm:$0xff]
        %v327 = vld [vmem:[#allocation2 + $0x118] sm:$0xff]
        %v328 = vld [vmem:[%s244] sm:$0xf]
        %v329 = vld [vmem:[%s244 + $0x4] sm:$0xf]
        %v330 = vld [vmem:[%s244 + $0x8] sm:$0xf]
        %v331 = vld [vmem:[%s244 + $0xc] sm:$0xf]
        %v332 = vld [vmem:[%s244 + $0x10] sm:$0xf]
        %v333 = vld [vmem:[%s244 + $0x14] sm:$0xf]
        %v334 = vld [vmem:[%s244 + $0x18] sm:$0xf]
        %v335 = vld [vmem:[%s244 + $0x1c] sm:$0xf]
        %v336 = vld [vmem:[%s244 + $0x20] sm:$0xf]
        %v337 = vld [vmem:[%s244 + $0x24] sm:$0xf]
        %v338 = vld [vmem:[%s244 + $0x28] sm:$0xf]
        %v339 = vld [vmem:[%s244 + $0x2c] sm:$0xf]
        %v340 = vld [vmem:[%s244 + $0x30] sm:$0xf]
        %v341 = vld [vmem:[%s244 + $0x34] sm:$0xf]
        %v342 = vld [vmem:[%s244 + $0x38] sm:$0xf]
        %v343 = vld [vmem:[%s244 + $0x3c] sm:$0xf]
        %v344 = vld [vmem:[%s244 + $0x40] sm:$0xf]
        %v345 = vld [vmem:[%s244 + $0x44] sm:$0xf]
        %v346 = vld [vmem:[%s244 + $0x48] sm:$0xf]
        %v347 = vld [vmem:[%s244 + $0x4c] sm:$0xf]
        %v348 = vld [vmem:[%s244 + $0x50] sm:$0xf]
        %v349 = vld [vmem:[%s244 + $0x54] sm:$0xf]
        %v350 = vld [vmem:[%s244 + $0x58] sm:$0xf]
        %v351 = vld [vmem:[%s244 + $0x5c] sm:$0xf]
        %v352 = vld [vmem:[%s244 + $0x60] sm:$0xf]
        %v353 = vld [vmem:[%s244 + $0x64] sm:$0xf]
        %v354 = vld [vmem:[%s244 + $0x68] sm:$0xf]
        %v355 = vld [vmem:[%s244 + $0x6c] sm:$0xf]
        %v356 = vld [vmem:[%s244 + $0x70] sm:$0xf]
        %v357 = vld [vmem:[%s244 + $0x74] sm:$0xf]
        %v358 = vld [vmem:[%s244 + $0x78] sm:$0xf]
        %v359 = vld [vmem:[%s244 + $0x7c] sm:$0xf]
        %v360 = vld [vmem:[%s244 + $0x80] sm:$0xf]
        %v361 = vld [vmem:[%s244 + $0x84] sm:$0xf]
        %v362 = vld [vmem:[%s244 + $0x88] sm:$0xf]
        %v363 = vld [vmem:[%s244 + $0x8c] sm:$0xf]
        %v364 = vld [vmem:[%s248] sm:$0xf]
        %v401 = vunpack.c.l.b16 %v328
        %v402 = vunpack.c.l.b16 %v329
        %v403 = vunpack.c.l.b16 %v330
        %v404 = vunpack.c.l.b16 %v331
        %v405 = vunpack.c.l.b16 %v332
        %v406 = vunpack.c.l.b16 %v333
        %v407 = vunpack.c.l.b16 %v334
        %v408 = vunpack.c.l.b16 %v335
        %v409 = vunpack.c.l.b16 %v336
        %v410 = vunpack.c.l.b16 %v337
        %v411 = vunpack.c.l.b16 %v338
        %v412 = vunpack.c.l.b16 %v339
        %v413 = vunpack.c.l.b16 %v340
        %v414 = vunpack.c.l.b16 %v341
        %v415 = vunpack.c.l.b16 %v342
        %v416 = vunpack.c.l.b16 %v343
        %v417 = vunpack.c.l.b16 %v344
        %v418 = vunpack.c.l.b16 %v345
        %v419 = vunpack.c.l.b16 %v346
        %v420 = vunpack.c.l.b16 %v347
        %v421 = vunpack.c.l.b16 %v348
        %v422 = vunpack.c.l.b16 %v349
        %v423 = vunpack.c.l.b16 %v350
        %v424 = vunpack.c.l.b16 %v351
        %v425 = vunpack.c.l.b16 %v352
        %v426 = vunpack.c.l.b16 %v353
        %v427 = vunpack.c.l.b16 %v354
        %v428 = vunpack.c.l.b16 %v355
        %v429 = vunpack.c.l.b16 %v356
        %v430 = vunpack.c.l.b16 %v357
        %v431 = vunpack.c.l.b16 %v358
        %v432 = vunpack.c.l.b16 %v359
        %v433 = vunpack.c.l.b16 %v360
        %v434 = vunpack.c.l.b16 %v361
        %v435 = vunpack.c.l.b16 %v362
        %v436 = vunpack.c.l.b16 %v363
        %v437 = vpack.c.b16 %v402, %v401
        %v438 = vpack.c.b16 %v404, %v403
        %v439 = vpack.c.b16 %v406, %v405
        %v440 = vpack.c.b16 %v408, %v407
        %v441 = vpack.c.b16 %v410, %v409
        %v442 = vpack.c.b16 %v412, %v411
        %v443 = vpack.c.b16 %v414, %v413
        %v444 = vpack.c.b16 %v416, %v415
        %v445 = vpack.c.b16 %v418, %v417
        %v446 = vpack.c.b16 %v420, %v419
        %v447 = vpack.c.b16 %v422, %v421
        %v448 = vpack.c.b16 %v424, %v423
        %v449 = vpack.c.b16 %v426, %v425
        %v450 = vpack.c.b16 %v428, %v427
        %v451 = vpack.c.b16 %v430, %v429
        %v452 = vpack.c.b16 %v432, %v431
        %v453 = vpack.c.b16 %v434, %v433
        %v454 = vpack.c.b16 %v436, %v435
        %vm455 = vcmask 64512
        %v457 = vsel %vm455, %v437, 0
        %v460 = vsel %vm455, %v438, 0
        %v463 = vsel %vm455, %v439, 0
        %v466 = vsel %vm455, %v440, 0
        %v469 = vsel %vm455, %v441, 0
        %v472 = vsel %vm455, %v442, 0
        %v475 = vsel %vm455, %v443, 0
        %v478 = vsel %vm455, %v444, 0
        %v481 = vsel %vm455, %v445, 0
        %v484 = vsel %vm455, %v446, 0
        %v487 = vsel %vm455, %v447, 0
        %v490 = vsel %vm455, %v448, 0
        %v493 = vsel %vm455, %v449, 0
        %v496 = vsel %vm455, %v450, 0
        %v499 = vsel %vm455, %v451, 0
        %v502 = vsel %vm455, %v452, 0
        %v505 = vsel %vm455, %v453, 0
        %v508 = vsel %vm455, %v454, 0
        %vm510 = vcmask 1043456
        %v512 = vsel %vm510, %v364, 0
        %514 = vmatprep.subr.bf16.mxu0 0
        %515 = vmatpush1.bf16.msra.mxu0 0
        %516 = vmatprep.subr.bf16.mxu0 0
        %517 = vmatpush1.bf16.msra.mxu0 0
        %518 = vmatprep.subr.bf16.mxu0 0
        %519 = vmatpush1.bf16.msra.mxu0 0
        %520 = vmatprep.subr.bf16.mxu0 0
        %521 = vmatpush1.bf16.msra.mxu0 0
        %522 = vmatprep.subr.bf16.mxu0 0
        %523 = vmatpush1.bf16.msra.mxu0 0
        %524 = vmatprep.subr.bf16.mxu0 0
        %525 = vmatpush1.bf16.msra.mxu0 0
        %526 = vmatprep.subr.bf16.mxu0 0
        %527 = vmatpush1.bf16.msra.mxu0 0
        %528 = vmatprep.subr.bf16.mxu0 0
        %529 = vmatpush1.bf16.msra.mxu0 %v512
        %530 = vmatprep.subr.bf16.mxu0 0
        %531 = vmatpush2.bf16.msra.mxu0 0
        %532 = vmatprep.subr.bf16.mxu0 0
        %533 = vmatpush2.bf16.msra.mxu0 0
        %534 = vmatprep.subr.bf16.mxu0 0
        %535 = vmatpush2.bf16.msra.mxu0 0
        %536 = vmatprep.subr.bf16.mxu0 0
        %537 = vmatpush2.bf16.msra.mxu0 0
        %538 = vmatprep.subr.bf16.mxu0 0
        %539 = vmatpush2.bf16.msra.mxu0 0
        %540 = vmatprep.subr.bf16.mxu0 0
        %541 = vmatpush2.bf16.msra.mxu0 0
        %542 = vmatprep.subr.bf16.mxu0 0
        %543 = vmatpush2.bf16.msra.mxu0 0
        %544 = vmatprep.subr.bf16.mxu0 0
        %545 = vmatpush2.bf16.msra.mxu0 0
        %546 = vmatprep.mubr.bf16.mxu0 0
        %547 = vmatmul.mubr.bf16.gmra.mxu0 %v457
        %v548 = vpop.f32.mrf.mxu0
        %v549 = vadd.f32 0.0, %v548
        %v550 = vpop.f32.mrf.mxu0
        %v551 = vpop.f32.mrf.mxu0
        %v552 = vadd.f32 0.0, %v551
        %v553 = vpop.f32.mrf.mxu0
        %554 = vmatprep.mubr.bf16.mxu0 0
        %555 = vmatmul.mubr.bf16.gmra.mxu0 %v460
        %v556 = vpop.f32.mrf.mxu0
        %v557 = vadd.f32 0.0, %v556
        %v558 = vpop.f32.mrf.mxu0
        %v559 = vpop.f32.mrf.mxu0
        %v560 = vadd.f32 0.0, %v559
        %v561 = vpop.f32.mrf.mxu0
        %562 = vmatprep.mubr.bf16.mxu0 0
        %563 = vmatmul.mubr.bf16.gmra.mxu0 %v463
        %v564 = vpop.f32.mrf.mxu0
        %v565 = vadd.f32 0.0, %v564
        %v566 = vpop.f32.mrf.mxu0
        %v567 = vpop.f32.mrf.mxu0
        %v568 = vadd.f32 0.0, %v567
        %v569 = vpop.f32.mrf.mxu0
        %570 = vmatprep.mubr.bf16.mxu0 0
        %571 = vmatmul.mubr.bf16.gmra.mxu0 %v466
        %v572 = vpop.f32.mrf.mxu0
        %v573 = vadd.f32 0.0, %v572
        %v574 = vpop.f32.mrf.mxu0
        %v575 = vpop.f32.mrf.mxu0
        %v576 = vadd.f32 0.0, %v575
        %v577 = vpop.f32.mrf.mxu0
        %578 = vmatprep.mubr.bf16.mxu0 0
        %579 = vmatmul.mubr.bf16.gmra.mxu0 %v469
        %v580 = vpop.f32.mrf.mxu0
        %v581 = vadd.f32 0.0, %v580
        %v582 = vpop.f32.mrf.mxu0
        %v583 = vpop.f32.mrf.mxu0
        %v584 = vadd.f32 0.0, %v583
        %v585 = vpop.f32.mrf.mxu0
        %586 = vmatprep.mubr.bf16.mxu0 0
        %587 = vmatmul.mubr.bf16.gmra.mxu0 %v472
        %v588 = vpop.f32.mrf.mxu0
        %v589 = vadd.f32 0.0, %v588
        %v590 = vpop.f32.mrf.mxu0
        %v591 = vpop.f32.mrf.mxu0
        %v592 = vadd.f32 0.0, %v591
        %v593 = vpop.f32.mrf.mxu0
        %594 = vmatprep.mubr.bf16.mxu0 0
        %595 = vmatmul.mubr.bf16.gmra.mxu0 %v475
        %v596 = vpop.f32.mrf.mxu0
        %v597 = vadd.f32 0.0, %v596
        %v598 = vpop.f32.mrf.mxu0
        %v599 = vpop.f32.mrf.mxu0
        %v600 = vadd.f32 0.0, %v599
        %v601 = vpop.f32.mrf.mxu0
        %602 = vmatprep.mubr.bf16.mxu0 0
        %603 = vmatmul.mubr.bf16.gmra.mxu0 %v478
        %v604 = vpop.f32.mrf.mxu0
        %v605 = vadd.f32 0.0, %v604
        %v606 = vpop.f32.mrf.mxu0
        %v607 = vpop.f32.mrf.mxu0
        %v608 = vadd.f32 0.0, %v607
        %v609 = vpop.f32.mrf.mxu0
        %610 = vmatprep.mubr.bf16.mxu0 0
        %611 = vmatmul.mubr.bf16.gmra.mxu0 %v481
        %v612 = vpop.f32.mrf.mxu0
        %v613 = vadd.f32 0.0, %v612
        %v614 = vpop.f32.mrf.mxu0
        %v615 = vpop.f32.mrf.mxu0
        %v616 = vadd.f32 0.0, %v615
        %v617 = vpop.f32.mrf.mxu0
        %618 = vmatprep.mubr.bf16.mxu0 0
        %619 = vmatmul.mubr.bf16.gmra.mxu0 %v484
        %v620 = vpop.f32.mrf.mxu0
        %v621 = vadd.f32 0.0, %v620
        %v622 = vpop.f32.mrf.mxu0
        %v623 = vpop.f32.mrf.mxu0
        %v624 = vadd.f32 0.0, %v623
        %v625 = vpop.f32.mrf.mxu0
        %626 = vmatprep.mubr.bf16.mxu0 0
        %627 = vmatmul.mubr.bf16.gmra.mxu0 %v487
        %v628 = vpop.f32.mrf.mxu0
        %v629 = vadd.f32 0.0, %v628
        %v630 = vpop.f32.mrf.mxu0
        %v631 = vpop.f32.mrf.mxu0
        %v632 = vadd.f32 0.0, %v631
        %v633 = vpop.f32.mrf.mxu0
        %634 = vmatprep.mubr.bf16.mxu0 0
        %635 = vmatmul.mubr.bf16.gmra.mxu0 %v490
        %v636 = vpop.f32.mrf.mxu0
        %v637 = vadd.f32 0.0, %v636
        %v638 = vpop.f32.mrf.mxu0
        %v639 = vpop.f32.mrf.mxu0
        %v640 = vadd.f32 0.0, %v639
        %v641 = vpop.f32.mrf.mxu0
        %642 = vmatprep.mubr.bf16.mxu0 0
        %643 = vmatmul.mubr.bf16.gmra.mxu0 %v493
        %v644 = vpop.f32.mrf.mxu0
        %v645 = vadd.f32 0.0, %v644
        %v646 = vpop.f32.mrf.mxu0
        %v647 = vpop.f32.mrf.mxu0
        %v648 = vadd.f32 0.0, %v647
        %v649 = vpop.f32.mrf.mxu0
        %650 = vmatprep.mubr.bf16.mxu0 0
        %651 = vmatmul.mubr.bf16.gmra.mxu0 %v496
        %v652 = vpop.f32.mrf.mxu0
        %v653 = vadd.f32 0.0, %v652
        %v654 = vpop.f32.mrf.mxu0
        %v655 = vpop.f32.mrf.mxu0
        %v656 = vadd.f32 0.0, %v655
        %v657 = vpop.f32.mrf.mxu0
        %658 = vmatprep.mubr.bf16.mxu0 0
        %659 = vmatmul.mubr.bf16.gmra.mxu0 %v499
        %v660 = vpop.f32.mrf.mxu0
        %v661 = vadd.f32 0.0, %v660
        %v662 = vpop.f32.mrf.mxu0
        %v663 = vpop.f32.mrf.mxu0
        %v664 = vadd.f32 0.0, %v663
        %v665 = vpop.f32.mrf.mxu0
        %666 = vmatprep.mubr.bf16.mxu0 0
        %667 = vmatmul.mubr.bf16.gmra.mxu0 %v502
        %v668 = vpop.f32.mrf.mxu0
        %v669 = vadd.f32 0.0, %v668
        %v670 = vpop.f32.mrf.mxu0
        %v671 = vpop.f32.mrf.mxu0
        %v672 = vadd.f32 0.0, %v671
        %v673 = vpop.f32.mrf.mxu0
        %674 = vmatprep.mubr.bf16.mxu0 0
        %675 = vmatmul.mubr.bf16.gmra.mxu0 %v505
        %v676 = vpop.f32.mrf.mxu0
        %v677 = vadd.f32 0.0, %v676
        %v678 = vpop.f32.mrf.mxu0
        %v679 = vpop.f32.mrf.mxu0
        %v680 = vadd.f32 0.0, %v679
        %v681 = vpop.f32.mrf.mxu0
        %682 = vmatprep.mubr.bf16.mxu0 0
        %683 = vmatmul.mubr.bf16.gmra.mxu0 %v508
        %v684 = vpop.f32.mrf.mxu0
        %v685 = vadd.f32 0.0, %v684
        %v686 = vpop.f32.mrf.mxu0
        %v687 = vpop.f32.mrf.mxu0
        %v688 = vadd.f32 0.0, %v687
        %v689 = vpop.f32.mrf.mxu0
        %690 = vdwg.mxu0
        %v691 = vadd.f32 %v292, %v549
        %v692 = vadd.f32 %v293, %v552
        %v693 = vadd.f32 %v294, %v557
        %v694 = vadd.f32 %v295, %v560
        %v695 = vadd.f32 %v296, %v565
        %v696 = vadd.f32 %v297, %v568
        %v697 = vadd.f32 %v298, %v573
        %v698 = vadd.f32 %v299, %v576
        %v699 = vadd.f32 %v300, %v581
        %v700 = vadd.f32 %v301, %v584
        %v701 = vadd.f32 %v302, %v589
        %v702 = vadd.f32 %v303, %v592
        %v703 = vadd.f32 %v304, %v597
        %v704 = vadd.f32 %v305, %v600
        %v705 = vadd.f32 %v306, %v605
        %v706 = vadd.f32 %v307, %v608
        %v707 = vadd.f32 %v308, %v613
        %v708 = vadd.f32 %v309, %v616
        %v709 = vadd.f32 %v310, %v621
        %v710 = vadd.f32 %v311, %v624
        %v711 = vadd.f32 %v312, %v629
        %v712 = vadd.f32 %v313, %v632
        %v713 = vadd.f32 %v314, %v637
        %v714 = vadd.f32 %v315, %v640
        %v715 = vadd.f32 %v316, %v645
        %v716 = vadd.f32 %v317, %v648
        %v717 = vadd.f32 %v318, %v653
        %v718 = vadd.f32 %v319, %v656
        %v719 = vadd.f32 %v320, %v661
        %v720 = vadd.f32 %v321, %v664
        %v721 = vadd.f32 %v322, %v669
        %v722 = vadd.f32 %v323, %v672
        %v723 = vadd.f32 %v324, %v677
        %v724 = vadd.f32 %v325, %v680
        %v725 = vadd.f32 %v326, %v685
        %v726 = vadd.f32 %v327, %v688
        %727 = vst [vmem:[#allocation2] sm:$0xff] %v691
        %728 = vst [vmem:[#allocation2 + $0x8] sm:$0xff] %v692
        %729 = vst [vmem:[#allocation2 + $0x10] sm:$0xff] %v693
        %730 = vst [vmem:[#allocation2 + $0x18] sm:$0xff] %v694
        %731 = vst [vmem:[#allocation2 + $0x20] sm:$0xff] %v695
        %732 = vst [vmem:[#allocation2 + $0x28] sm:$0xff] %v696
        %733 = vst [vmem:[#allocation2 + $0x30] sm:$0xff] %v697
        %734 = vst [vmem:[#allocation2 + $0x38] sm:$0xff] %v698
        %735 = vst [vmem:[#allocation2 + $0x40] sm:$0xff] %v699
        %736 = vst [vmem:[#allocation2 + $0x48] sm:$0xff] %v700
        %737 = vst [vmem:[#allocation2 + $0x50] sm:$0xff] %v701
        %738 = vst [vmem:[#allocation2 + $0x58] sm:$0xff] %v702
        %739 = vst [vmem:[#allocation2 + $0x60] sm:$0xff] %v703
        %740 = vst [vmem:[#allocation2 + $0x68] sm:$0xff] %v704
        %741 = vst [vmem:[#allocation2 + $0x70] sm:$0xff] %v705
        %742 = vst [vmem:[#allocation2 + $0x78] sm:$0xff] %v706
        %743 = vst [vmem:[#allocation2 + $0x80] sm:$0xff] %v707
        %744 = vst [vmem:[#allocation2 + $0x88] sm:$0xff] %v708
        %745 = vst [vmem:[#allocation2 + $0x90] sm:$0xff] %v709
        %746 = vst [vmem:[#allocation2 + $0x98] sm:$0xff] %v710
        %747 = vst [vmem:[#allocation2 + $0xa0] sm:$0xff] %v711
        %748 = vst [vmem:[#allocation2 + $0xa8] sm:$0xff] %v712
        %749 = vst [vmem:[#allocation2 + $0xb0] sm:$0xff] %v713
        %750 = vst [vmem:[#allocation2 + $0xb8] sm:$0xff] %v714
        %751 = vst [vmem:[#allocation2 + $0xc0] sm:$0xff] %v715
        %752 = vst [vmem:[#allocation2 + $0xc8] sm:$0xff] %v716
        %753 = vst [vmem:[#allocation2 + $0xd0] sm:$0xff] %v717
        %754 = vst [vmem:[#allocation2 + $0xd8] sm:$0xff] %v718
        %755 = vst [vmem:[#allocation2 + $0xe0] sm:$0xff] %v719
        %756 = vst [vmem:[#allocation2 + $0xe8] sm:$0xff] %v720
        %757 = vst [vmem:[#allocation2 + $0xf0] sm:$0xff] %v721
        %758 = vst [vmem:[#allocation2 + $0xf8] sm:$0xff] %v722
        %759 = vst [vmem:[#allocation2 + $0x100] sm:$0xff] %v723
        %760 = vst [vmem:[#allocation2 + $0x108] sm:$0xff] %v724
        %761 = vst [vmem:[#allocation2 + $0x110] sm:$0xff] %v725
        %762 = vst [vmem:[#allocation2 + $0x118] sm:$0xff] %v726
        %v763 = vld [vmem:[#allocation2] sm:$0xff]
        %v764 = vld [vmem:[#allocation2 + $0x8] sm:$0xff]
        %v765 = vld [vmem:[#allocation2 + $0x10] sm:$0xff]
        %v766 = vld [vmem:[#allocation2 + $0x18] sm:$0xff]
        %v767 = vld [vmem:[#allocation2 + $0x20] sm:$0xff]
        %v768 = vld [vmem:[#allocation2 + $0x28] sm:$0xff]
        %v769 = vld [vmem:[#allocation2 + $0x30] sm:$0xff]
        %v770 = vld [vmem:[#allocation2 + $0x38] sm:$0xff]
        %v771 = vld [vmem:[#allocation2 + $0x40] sm:$0xff]
        %v772 = vld [vmem:[#allocation2 + $0x48] sm:$0xff]
        %v773 = vld [vmem:[#allocation2 + $0x50] sm:$0xff]
        %v774 = vld [vmem:[#allocation2 + $0x58] sm:$0xff]
        %v775 = vld [vmem:[#allocation2 + $0x60] sm:$0xff]
        %v776 = vld [vmem:[#allocation2 + $0x68] sm:$0xff]
        %v777 = vld [vmem:[#allocation2 + $0x70] sm:$0xff]
        %v778 = vld [vmem:[#allocation2 + $0x78] sm:$0xff]
        %v779 = vld [vmem:[#allocation2 + $0x80] sm:$0xff]
        %v780 = vld [vmem:[#allocation2 + $0x88] sm:$0xff]
        %v781 = vld [vmem:[#allocation2 + $0x90] sm:$0xff]
        %v782 = vld [vmem:[#allocation2 + $0x98] sm:$0xff]
        %v783 = vld [vmem:[#allocation2 + $0xa0] sm:$0xff]
        %v784 = vld [vmem:[#allocation2 + $0xa8] sm:$0xff]
        %v785 = vld [vmem:[#allocation2 + $0xb0] sm:$0xff]
        %v786 = vld [vmem:[#allocation2 + $0xb8] sm:$0xff]
        %v787 = vld [vmem:[#allocation2 + $0xc0] sm:$0xff]
        %v788 = vld [vmem:[#allocation2 + $0xc8] sm:$0xff]
        %v789 = vld [vmem:[#allocation2 + $0xd0] sm:$0xff]
        %v790 = vld [vmem:[#allocation2 + $0xd8] sm:$0xff]
        %v791 = vld [vmem:[#allocation2 + $0xe0] sm:$0xff]
        %v792 = vld [vmem:[#allocation2 + $0xe8] sm:$0xff]
        %v793 = vld [vmem:[#allocation2 + $0xf0] sm:$0xff]
        %v794 = vld [vmem:[#allocation2 + $0xf8] sm:$0xff]
        %v795 = vld [vmem:[#allocation2 + $0x100] sm:$0xff]
        %v796 = vld [vmem:[#allocation2 + $0x108] sm:$0xff]
        %v797 = vld [vmem:[#allocation2 + $0x110] sm:$0xff]
        %v798 = vld [vmem:[#allocation2 + $0x118] sm:$0xff]
        %v799 = vld [vmem:[%s244] sm:$0xf]
        %v800 = vld [vmem:[%s244 + $0x4] sm:$0xf]
        %v801 = vld [vmem:[%s244 + $0x8] sm:$0xf]
        %v802 = vld [vmem:[%s244 + $0xc] sm:$0xf]
        %v803 = vld [vmem:[%s244 + $0x10] sm:$0xf]
        %v804 = vld [vmem:[%s244 + $0x14] sm:$0xf]
        %v805 = vld [vmem:[%s244 + $0x18] sm:$0xf]
        %v806 = vld [vmem:[%s244 + $0x1c] sm:$0xf]
        %v807 = vld [vmem:[%s244 + $0x20] sm:$0xf]
        %v808 = vld [vmem:[%s244 + $0x24] sm:$0xf]
        %v809 = vld [vmem:[%s244 + $0x28] sm:$0xf]
        %v810 = vld [vmem:[%s244 + $0x2c] sm:$0xf]
        %v811 = vld [vmem:[%s244 + $0x30] sm:$0xf]
        %v812 = vld [vmem:[%s244 + $0x34] sm:$0xf]
        %v813 = vld [vmem:[%s244 + $0x38] sm:$0xf]
        %v814 = vld [vmem:[%s244 + $0x3c] sm:$0xf]
        %v815 = vld [vmem:[%s244 + $0x40] sm:$0xf]
        %v816 = vld [vmem:[%s244 + $0x44] sm:$0xf]
        %v817 = vld [vmem:[%s244 + $0x48] sm:$0xf]
        %v818 = vld [vmem:[%s244 + $0x4c] sm:$0xf]
        %v819 = vld [vmem:[%s244 + $0x50] sm:$0xf]
        %v820 = vld [vmem:[%s244 + $0x54] sm:$0xf]
        %v821 = vld [vmem:[%s244 + $0x58] sm:$0xf]
        %v822 = vld [vmem:[%s244 + $0x5c] sm:$0xf]
        %v823 = vld [vmem:[%s244 + $0x60] sm:$0xf]
        %v824 = vld [vmem:[%s244 + $0x64] sm:$0xf]
        %v825 = vld [vmem:[%s244 + $0x68] sm:$0xf]
        %v826 = vld [vmem:[%s244 + $0x6c] sm:$0xf]
        %v827 = vld [vmem:[%s244 + $0x70] sm:$0xf]
        %v828 = vld [vmem:[%s244 + $0x74] sm:$0xf]
        %v829 = vld [vmem:[%s244 + $0x78] sm:$0xf]
        %v830 = vld [vmem:[%s244 + $0x7c] sm:$0xf]
        %v831 = vld [vmem:[%s244 + $0x80] sm:$0xf]
        %v832 = vld [vmem:[%s244 + $0x84] sm:$0xf]
        %v833 = vld [vmem:[%s244 + $0x88] sm:$0xf]
        %v834 = vld [vmem:[%s244 + $0x8c] sm:$0xf]
        %v835 = vld [vmem:[%s244 + $0x90] sm:$0x1]
        %s836 = scalar_lea.vmem %s248, 4
        %v837 = vld [vmem:[%s836] sm:$0xf]
        %v875 = vunpack.c.l.b16 %v799
        %v876 = vunpack.c.l.b16 %v800
        %v877 = vunpack.c.l.b16 %v801
        %v878 = vunpack.c.l.b16 %v802
        %v879 = vunpack.c.l.b16 %v803
        %v880 = vunpack.c.l.b16 %v804
        %v881 = vunpack.c.l.b16 %v805
        %v882 = vunpack.c.l.b16 %v806
        %v883 = vunpack.c.l.b16 %v807
        %v884 = vunpack.c.l.b16 %v808
        %v885 = vunpack.c.l.b16 %v809
        %v886 = vunpack.c.l.b16 %v810
        %v887 = vunpack.c.l.b16 %v811
        %v888 = vunpack.c.l.b16 %v812
        %v889 = vunpack.c.l.b16 %v813
        %v890 = vunpack.c.l.b16 %v814
        %v891 = vunpack.c.l.b16 %v815
        %v892 = vunpack.c.l.b16 %v816
        %v893 = vunpack.c.l.b16 %v817
        %v894 = vunpack.c.l.b16 %v818
        %v895 = vunpack.c.l.b16 %v819
        %v896 = vunpack.c.l.b16 %v820
        %v897 = vunpack.c.l.b16 %v821
        %v898 = vunpack.c.l.b16 %v822
        %v899 = vunpack.c.l.b16 %v823
        %v900 = vunpack.c.l.b16 %v824
        %v901 = vunpack.c.l.b16 %v825
        %v902 = vunpack.c.l.b16 %v826
        %v903 = vunpack.c.l.b16 %v827
        %v904 = vunpack.c.l.b16 %v828
        %v905 = vunpack.c.l.b16 %v829
        %v906 = vunpack.c.l.b16 %v830
        %v907 = vunpack.c.l.b16 %v831
        %v908 = vunpack.c.l.b16 %v832
        %v909 = vunpack.c.l.b16 %v833
        %v910 = vunpack.c.l.b16 %v834
        %v911 = vunpack.c.l.b16 %v835
        %v912 = vpack.c.b16 %v876, %v875
        %v913 = vpack.c.b16 %v878, %v877
        %v914 = vpack.c.b16 %v880, %v879
        %v915 = vpack.c.b16 %v882, %v881
        %v916 = vpack.c.b16 %v884, %v883
        %v917 = vpack.c.b16 %v886, %v885
        %v918 = vpack.c.b16 %v888, %v887
        %v919 = vpack.c.b16 %v890, %v889
        %v920 = vpack.c.b16 %v892, %v891
        %v921 = vpack.c.b16 %v894, %v893
        %v922 = vpack.c.b16 %v896, %v895
        %v923 = vpack.c.b16 %v898, %v897
        %v924 = vpack.c.b16 %v900, %v899
        %v925 = vpack.c.b16 %v902, %v901
        %v926 = vpack.c.b16 %v904, %v903
        %v927 = vpack.c.b16 %v906, %v905
        %v928 = vpack.c.b16 %v908, %v907
        %v929 = vpack.c.b16 %v910, %v909
        %v930 = vpack.c.b16 %v911, %v911
        %vm931 = vsmask.f32 7424
        %v933 = vshrl.u32 %v912, 16
        %v935 = vshll.u32 %v912, 16
        %v937 = vrot.slane %v935, 1
        %v938 = vor.u32 %v933, %v937
        %v940 = vshll.u32 %v913, 16
        %v942 = vrot.slane %v940, 1
        %v943 = vsel %vm931, %v938, %v942
        %v944 = vshrl.u32 %v913, 16
        %v946 = vor.u32 %v944, %v942
        %v948 = vshll.u32 %v914, 16
        %v950 = vrot.slane %v948, 1
        %v951 = vsel %vm931, %v946, %v950
        %v952 = vshrl.u32 %v914, 16
        %v954 = vor.u32 %v952, %v950
        %v956 = vshll.u32 %v915, 16
        %v958 = vrot.slane %v956, 1
        %v959 = vsel %vm931, %v954, %v958
        %v960 = vshrl.u32 %v915, 16
        %v962 = vor.u32 %v960, %v958
        %v964 = vshll.u32 %v916, 16
        %v966 = vrot.slane %v964, 1
        %v967 = vsel %vm931, %v962, %v966
        %v968 = vshrl.u32 %v916, 16
        %v970 = vor.u32 %v968, %v966
        %v972 = vshll.u32 %v917, 16
        %v974 = vrot.slane %v972, 1
        %v975 = vsel %vm931, %v970, %v974
        %v976 = vshrl.u32 %v917, 16
        %v978 = vor.u32 %v976, %v974
        %v980 = vshll.u32 %v918, 16
        %v982 = vrot.slane %v980, 1
        %v983 = vsel %vm931, %v978, %v982
        %v984 = vshrl.u32 %v918, 16
        %v986 = vor.u32 %v984, %v982
        %v988 = vshll.u32 %v919, 16
        %v990 = vrot.slane %v988, 1
        %v991 = vsel %vm931, %v986, %v990
        %v992 = vshrl.u32 %v919, 16
        %v994 = vor.u32 %v992, %v990
        %v996 = vshll.u32 %v920, 16
        %v998 = vrot.slane %v996, 1
        %v999 = vsel %vm931, %v994, %v998
        %v1000 = vshrl.u32 %v920, 16
        %v1002 = vor.u32 %v1000, %v998
        %v1004 = vshll.u32 %v921, 16
        %v1006 = vrot.slane %v1004, 1
        %v1007 = vsel %vm931, %v1002, %v1006
        %v1008 = vshrl.u32 %v921, 16
        %v1010 = vor.u32 %v1008, %v1006
        %v1012 = vshll.u32 %v922, 16
        %v1014 = vrot.slane %v1012, 1
        %v1015 = vsel %vm931, %v1010, %v1014
        %v1016 = vshrl.u32 %v922, 16
        %v1018 = vor.u32 %v1016, %v1014
        %v1020 = vshll.u32 %v923, 16
        %v1022 = vrot.slane %v1020, 1
        %v1023 = vsel %vm931, %v1018, %v1022
        %v1024 = vshrl.u32 %v923, 16
        %v1026 = vor.u32 %v1024, %v1022
        %v1028 = vshll.u32 %v924, 16
        %v1030 = vrot.slane %v1028, 1
        %v1031 = vsel %vm931, %v1026, %v1030
        %v1032 = vshrl.u32 %v924, 16
        %v1034 = vor.u32 %v1032, %v1030
        %v1036 = vshll.u32 %v925, 16
        %v1038 = vrot.slane %v1036, 1
        %v1039 = vsel %vm931, %v1034, %v1038
        %v1040 = vshrl.u32 %v925, 16
        %v1042 = vor.u32 %v1040, %v1038
        %v1044 = vshll.u32 %v926, 16
        %v1046 = vrot.slane %v1044, 1
        %v1047 = vsel %vm931, %v1042, %v1046
        %v1048 = vshrl.u32 %v926, 16
        %v1050 = vor.u32 %v1048, %v1046
        %v1052 = vshll.u32 %v927, 16
        %v1054 = vrot.slane %v1052, 1
        %v1055 = vsel %vm931, %v1050, %v1054
        %v1056 = vshrl.u32 %v927, 16
        %v1058 = vor.u32 %v1056, %v1054
        %v1060 = vshll.u32 %v928, 16
        %v1062 = vrot.slane %v1060, 1
        %v1063 = vsel %vm931, %v1058, %v1062
        %v1064 = vshrl.u32 %v928, 16
        %v1066 = vor.u32 %v1064, %v1062
        %v1068 = vshll.u32 %v929, 16
        %v1070 = vrot.slane %v1068, 1
        %v1071 = vsel %vm931, %v1066, %v1070
        %v1072 = vshrl.u32 %v929, 16
        %v1074 = vor.u32 %v1072, %v1070
        %v1076 = vshll.u32 %v930, 16
        %v1078 = vrot.slane %v1076, 1
        %v1079 = vsel %vm931, %v1074, %v1078
        %v1081 = vsel %vm455, %v943, 0
        %v1084 = vsel %vm455, %v951, 0
        %v1087 = vsel %vm455, %v959, 0
        %v1090 = vsel %vm455, %v967, 0
        %v1093 = vsel %vm455, %v975, 0
        %v1096 = vsel %vm455, %v983, 0
        %v1099 = vsel %vm455, %v991, 0
        %v1102 = vsel %vm455, %v999, 0
        %v1105 = vsel %vm455, %v1007, 0
        %v1108 = vsel %vm455, %v1015, 0
        %v1111 = vsel %vm455, %v1023, 0
        %v1114 = vsel %vm455, %v1031, 0
        %v1117 = vsel %vm455, %v1039, 0
        %v1120 = vsel %vm455, %v1047, 0
        %v1123 = vsel %vm455, %v1055, 0
        %v1126 = vsel %vm455, %v1063, 0
        %v1129 = vsel %vm455, %v1071, 0
        %v1132 = vsel %vm455, %v1079, 0
        %v1135 = vsel %vm510, %v837, 0
        %1137 = vmatprep.subr.bf16.mxu0 0
        %1138 = vmatpush1.bf16.msra.mxu0 0
        %1139 = vmatprep.subr.bf16.mxu0 0
        %1140 = vmatpush1.bf16.msra.mxu0 0
        %1141 = vmatprep.subr.bf16.mxu0 0
        %1142 = vmatpush1.bf16.msra.mxu0 0
        %1143 = vmatprep.subr.bf16.mxu0 0
        %1144 = vmatpush1.bf16.msra.mxu0 0
        %1145 = vmatprep.subr.bf16.mxu0 0
        %1146 = vmatpush1.bf16.msra.mxu0 0
        %1147 = vmatprep.subr.bf16.mxu0 0
        %1148 = vmatpush1.bf16.msra.mxu0 0
        %1149 = vmatprep.subr.bf16.mxu0 0
        %1150 = vmatpush1.bf16.msra.mxu0 0
        %1151 = vmatprep.subr.bf16.mxu0 0
        %1152 = vmatpush1.bf16.msra.mxu0 %v1135
        %1153 = vmatprep.subr.bf16.mxu0 0
        %1154 = vmatpush2.bf16.msra.mxu0 0
        %1155 = vmatprep.subr.bf16.mxu0 0
        %1156 = vmatpush2.bf16.msra.mxu0 0
        %1157 = vmatprep.subr.bf16.mxu0 0
        %1158 = vmatpush2.bf16.msra.mxu0 0
        %1159 = vmatprep.subr.bf16.mxu0 0
        %1160 = vmatpush2.bf16.msra.mxu0 0
        %1161 = vmatprep.subr.bf16.mxu0 0
        %1162 = vmatpush2.bf16.msra.mxu0 0
        %1163 = vmatprep.subr.bf16.mxu0 0
        %1164 = vmatpush2.bf16.msra.mxu0 0
        %1165 = vmatprep.subr.bf16.mxu0 0
        %1166 = vmatpush2.bf16.msra.mxu0 0
        %1167 = vmatprep.subr.bf16.mxu0 0
        %1168 = vmatpush2.bf16.msra.mxu0 0
        %1169 = vmatprep.mubr.bf16.mxu0 0
        %1170 = vmatmul.mubr.bf16.gmra.mxu0 %v1081
        %v1171 = vpop.f32.mrf.mxu0
        %v1172 = vadd.f32 0.0, %v1171
        %v1173 = vpop.f32.mrf.mxu0
        %v1174 = vpop.f32.mrf.mxu0
        %v1175 = vadd.f32 0.0, %v1174
        %v1176 = vpop.f32.mrf.mxu0
        %1177 = vmatprep.mubr.bf16.mxu0 0
        %1178 = vmatmul.mubr.bf16.gmra.mxu0 %v1084
        %v1179 = vpop.f32.mrf.mxu0
        %v1180 = vadd.f32 0.0, %v1179
        %v1181 = vpop.f32.mrf.mxu0
        %v1182 = vpop.f32.mrf.mxu0
        %v1183 = vadd.f32 0.0, %v1182
        %v1184 = vpop.f32.mrf.mxu0
        %1185 = vmatprep.mubr.bf16.mxu0 0
        %1186 = vmatmul.mubr.bf16.gmra.mxu0 %v1087
        %v1187 = vpop.f32.mrf.mxu0
        %v1188 = vadd.f32 0.0, %v1187
        %v1189 = vpop.f32.mrf.mxu0
        %v1190 = vpop.f32.mrf.mxu0
        %v1191 = vadd.f32 0.0, %v1190
        %v1192 = vpop.f32.mrf.mxu0
        %1193 = vmatprep.mubr.bf16.mxu0 0
        %1194 = vmatmul.mubr.bf16.gmra.mxu0 %v1090
        %v1195 = vpop.f32.mrf.mxu0
        %v1196 = vadd.f32 0.0, %v1195
        %v1197 = vpop.f32.mrf.mxu0
        %v1198 = vpop.f32.mrf.mxu0
        %v1199 = vadd.f32 0.0, %v1198
        %v1200 = vpop.f32.mrf.mxu0
        %1201 = vmatprep.mubr.bf16.mxu0 0
        %1202 = vmatmul.mubr.bf16.gmra.mxu0 %v1093
        %v1203 = vpop.f32.mrf.mxu0
        %v1204 = vadd.f32 0.0, %v1203
        %v1205 = vpop.f32.mrf.mxu0
        %v1206 = vpop.f32.mrf.mxu0
        %v1207 = vadd.f32 0.0, %v1206
        %v1208 = vpop.f32.mrf.mxu0
        %1209 = vmatprep.mubr.bf16.mxu0 0
        %1210 = vmatmul.mubr.bf16.gmra.mxu0 %v1096
        %v1211 = vpop.f32.mrf.mxu0
        %v1212 = vadd.f32 0.0, %v1211
        %v1213 = vpop.f32.mrf.mxu0
        %v1214 = vpop.f32.mrf.mxu0
        %v1215 = vadd.f32 0.0, %v1214
        %v1216 = vpop.f32.mrf.mxu0
        %1217 = vmatprep.mubr.bf16.mxu0 0
        %1218 = vmatmul.mubr.bf16.gmra.mxu0 %v1099
        %v1219 = vpop.f32.mrf.mxu0
        %v1220 = vadd.f32 0.0, %v1219
        %v1221 = vpop.f32.mrf.mxu0
        %v1222 = vpop.f32.mrf.mxu0
        %v1223 = vadd.f32 0.0, %v1222
        %v1224 = vpop.f32.mrf.mxu0
        %1225 = vmatprep.mubr.bf16.mxu0 0
        %1226 = vmatmul.mubr.bf16.gmra.mxu0 %v1102
        %v1227 = vpop.f32.mrf.mxu0
        %v1228 = vadd.f32 0.0, %v1227
        %v1229 = vpop.f32.mrf.mxu0
        %v1230 = vpop.f32.mrf.mxu0
        %v1231 = vadd.f32 0.0, %v1230
        %v1232 = vpop.f32.mrf.mxu0
        %1233 = vmatprep.mubr.bf16.mxu0 0
        %1234 = vmatmul.mubr.bf16.gmra.mxu0 %v1105
        %v1235 = vpop.f32.mrf.mxu0
        %v1236 = vadd.f32 0.0, %v1235
        %v1237 = vpop.f32.mrf.mxu0
        %v1238 = vpop.f32.mrf.mxu0
        %v1239 = vadd.f32 0.0, %v1238
        %v1240 = vpop.f32.mrf.mxu0
        %1241 = vmatprep.mubr.bf16.mxu0 0
        %1242 = vmatmul.mubr.bf16.gmra.mxu0 %v1108
        %v1243 = vpop.f32.mrf.mxu0
        %v1244 = vadd.f32 0.0, %v1243
        %v1245 = vpop.f32.mrf.mxu0
        %v1246 = vpop.f32.mrf.mxu0
        %v1247 = vadd.f32 0.0, %v1246
        %v1248 = vpop.f32.mrf.mxu0
        %1249 = vmatprep.mubr.bf16.mxu0 0
        %1250 = vmatmul.mubr.bf16.gmra.mxu0 %v1111
        %v1251 = vpop.f32.mrf.mxu0
        %v1252 = vadd.f32 0.0, %v1251
        %v1253 = vpop.f32.mrf.mxu0
        %v1254 = vpop.f32.mrf.mxu0
        %v1255 = vadd.f32 0.0, %v1254
        %v1256 = vpop.f32.mrf.mxu0
        %1257 = vmatprep.mubr.bf16.mxu0 0
        %1258 = vmatmul.mubr.bf16.gmra.mxu0 %v1114
        %v1259 = vpop.f32.mrf.mxu0
        %v1260 = vadd.f32 0.0, %v1259
        %v1261 = vpop.f32.mrf.mxu0
        %v1262 = vpop.f32.mrf.mxu0
        %v1263 = vadd.f32 0.0, %v1262
        %v1264 = vpop.f32.mrf.mxu0
        %1265 = vmatprep.mubr.bf16.mxu0 0
        %1266 = vmatmul.mubr.bf16.gmra.mxu0 %v1117
        %v1267 = vpop.f32.mrf.mxu0
        %v1268 = vadd.f32 0.0, %v1267
        %v1269 = vpop.f32.mrf.mxu0
        %v1270 = vpop.f32.mrf.mxu0
        %v1271 = vadd.f32 0.0, %v1270
        %v1272 = vpop.f32.mrf.mxu0
        %1273 = vmatprep.mubr.bf16.mxu0 0
        %1274 = vmatmul.mubr.bf16.gmra.mxu0 %v1120
        %v1275 = vpop.f32.mrf.mxu0
        %v1276 = vadd.f32 0.0, %v1275
        %v1277 = vpop.f32.mrf.mxu0
        %v1278 = vpop.f32.mrf.mxu0
        %v1279 = vadd.f32 0.0, %v1278
        %v1280 = vpop.f32.mrf.mxu0
        %1281 = vmatprep.mubr.bf16.mxu0 0
        %1282 = vmatmul.mubr.bf16.gmra.mxu0 %v1123
        %v1283 = vpop.f32.mrf.mxu0
        %v1284 = vadd.f32 0.0, %v1283
        %v1285 = vpop.f32.mrf.mxu0
        %v1286 = vpop.f32.mrf.mxu0
        %v1287 = vadd.f32 0.0, %v1286
        %v1288 = vpop.f32.mrf.mxu0
        %1289 = vmatprep.mubr.bf16.mxu0 0
        %1290 = vmatmul.mubr.bf16.gmra.mxu0 %v1126
        %v1291 = vpop.f32.mrf.mxu0
        %v1292 = vadd.f32 0.0, %v1291
        %v1293 = vpop.f32.mrf.mxu0
        %v1294 = vpop.f32.mrf.mxu0
        %v1295 = vadd.f32 0.0, %v1294
        %v1296 = vpop.f32.mrf.mxu0
        %1297 = vmatprep.mubr.bf16.mxu0 0
        %1298 = vmatmul.mubr.bf16.gmra.mxu0 %v1129
        %v1299 = vpop.f32.mrf.mxu0
        %v1300 = vadd.f32 0.0, %v1299
        %v1301 = vpop.f32.mrf.mxu0
        %v1302 = vpop.f32.mrf.mxu0
        %v1303 = vadd.f32 0.0, %v1302
        %v1304 = vpop.f32.mrf.mxu0
        %1305 = vmatprep.mubr.bf16.mxu0 0
        %1306 = vmatmul.mubr.bf16.gmra.mxu0 %v1132
        %v1307 = vpop.f32.mrf.mxu0
        %v1308 = vadd.f32 0.0, %v1307
        %v1309 = vpop.f32.mrf.mxu0
        %v1310 = vpop.f32.mrf.mxu0
        %v1311 = vadd.f32 0.0, %v1310
        %v1312 = vpop.f32.mrf.mxu0
        %1313 = vdwg.mxu0
        %v1314 = vadd.f32 %v763, %v1172
        %v1315 = vadd.f32 %v764, %v1175
        %v1316 = vadd.f32 %v765, %v1180
        %v1317 = vadd.f32 %v766, %v1183
        %v1318 = vadd.f32 %v767, %v1188
        %v1319 = vadd.f32 %v768, %v1191
        %v1320 = vadd.f32 %v769, %v1196
        %v1321 = vadd.f32 %v770, %v1199
        %v1322 = vadd.f32 %v771, %v1204
        %v1323 = vadd.f32 %v772, %v1207
        %v1324 = vadd.f32 %v773, %v1212
        %v1325 = vadd.f32 %v774, %v1215
        %v1326 = vadd.f32 %v775, %v1220
        %v1327 = vadd.f32 %v776, %v1223
        %v1328 = vadd.f32 %v777, %v1228
        %v1329 = vadd.f32 %v778, %v1231
        %v1330 = vadd.f32 %v779, %v1236
        %v1331 = vadd.f32 %v780, %v1239
        %v1332 = vadd.f32 %v781, %v1244
        %v1333 = vadd.f32 %v782, %v1247
        %v1334 = vadd.f32 %v783, %v1252
        %v1335 = vadd.f32 %v784, %v1255
        %v1336 = vadd.f32 %v785, %v1260
        %v1337 = vadd.f32 %v786, %v1263
        %v1338 = vadd.f32 %v787, %v1268
        %v1339 = vadd.f32 %v788, %v1271
        %v1340 = vadd.f32 %v789, %v1276
        %v1341 = vadd.f32 %v790, %v1279
        %v1342 = vadd.f32 %v791, %v1284
        %v1343 = vadd.f32 %v792, %v1287
        %v1344 = vadd.f32 %v793, %v1292
        %v1345 = vadd.f32 %v794, %v1295
        %v1346 = vadd.f32 %v795, %v1300
        %v1347 = vadd.f32 %v796, %v1303
        %v1348 = vadd.f32 %v797, %v1308
        %v1349 = vadd.f32 %v798, %v1311
        %1350 = vst [vmem:[#allocation2] sm:$0xff] %v1314
        %1351 = vst [vmem:[#allocation2 + $0x8] sm:$0xff] %v1315
        %1352 = vst [vmem:[#allocation2 + $0x10] sm:$0xff] %v1316
        %1353 = vst [vmem:[#allocation2 + $0x18] sm:$0xff] %v1317
        %1354 = vst [vmem:[#allocation2 + $0x20] sm:$0xff] %v1318
        %1355 = vst [vmem:[#allocation2 + $0x28] sm:$0xff] %v1319
        %1356 = vst [vmem:[#allocation2 + $0x30] sm:$0xff] %v1320
        %1357 = vst [vmem:[#allocation2 + $0x38] sm:$0xff] %v1321
        %1358 = vst [vmem:[#allocation2 + $0x40] sm:$0xff] %v1322
        %1359 = vst [vmem:[#allocation2 + $0x48] sm:$0xff] %v1323
        %1360 = vst [vmem:[#allocation2 + $0x50] sm:$0xff] %v1324
        %1361 = vst [vmem:[#allocation2 + $0x58] sm:$0xff] %v1325
        %1362 = vst [vmem:[#allocation2 + $0x60] sm:$0xff] %v1326
        %1363 = vst [vmem:[#allocation2 + $0x68] sm:$0xff] %v1327
        %1364 = vst [vmem:[#allocation2 + $0x70] sm:$0xff] %v1328
        %1365 = vst [vmem:[#allocation2 + $0x78] sm:$0xff] %v1329
        %1366 = vst [vmem:[#allocation2 + $0x80] sm:$0xff] %v1330
        %1367 = vst [vmem:[#allocation2 + $0x88] sm:$0xff] %v1331
        %1368 = vst [vmem:[#allocation2 + $0x90] sm:$0xff] %v1332
        %1369 = vst [vmem:[#allocation2 + $0x98] sm:$0xff] %v1333
        %1370 = vst [vmem:[#allocation2 + $0xa0] sm:$0xff] %v1334
        %1371 = vst [vmem:[#allocation2 + $0xa8] sm:$0xff] %v1335
        %1372 = vst [vmem:[#allocation2 + $0xb0] sm:$0xff] %v1336
        %1373 = vst [vmem:[#allocation2 + $0xb8] sm:$0xff] %v1337
        %1374 = vst [vmem:[#allocation2 + $0xc0] sm:$0xff] %v1338
        %1375 = vst [vmem:[#allocation2 + $0xc8] sm:$0xff] %v1339
        %1376 = vst [vmem:[#allocation2 + $0xd0] sm:$0xff] %v1340
        %1377 = vst [vmem:[#allocation2 + $0xd8] sm:$0xff] %v1341
        %1378 = vst [vmem:[#allocation2 + $0xe0] sm:$0xff] %v1342
        %1379 = vst [vmem:[#allocation2 + $0xe8] sm:$0xff] %v1343
        %1380 = vst [vmem:[#allocation2 + $0xf0] sm:$0xff] %v1344
        %1381 = vst [vmem:[#allocation2 + $0xf8] sm:$0xff] %v1345
        %1382 = vst [vmem:[#allocation2 + $0x100] sm:$0xff] %v1346
        %1383 = vst [vmem:[#allocation2 + $0x108] sm:$0xff] %v1347
        %1384 = vst [vmem:[#allocation2 + $0x110] sm:$0xff] %v1348
        %1385 = vst [vmem:[#allocation2 + $0x118] sm:$0xff] %v1349
        %v1386 = vld [vmem:[#allocation2] sm:$0xff]
        %v1387 = vld [vmem:[#allocation2 + $0x8] sm:$0xff]
        %v1388 = vld [vmem:[#allocation2 + $0x10] sm:$0xff]
        %v1389 = vld [vmem:[#allocation2 + $0x18] sm:$0xff]
        %v1390 = vld [vmem:[#allocation2 + $0x20] sm:$0xff]
        %v1391 = vld [vmem:[#allocation2 + $0x28] sm:$0xff]
        %v1392 = vld [vmem:[#allocation2 + $0x30] sm:$0xff]
        %v1393 = vld [vmem:[#allocation2 + $0x38] sm:$0xff]
        %v1394 = vld [vmem:[#allocation2 + $0x40] sm:$0xff]
        %v1395 = vld [vmem:[#allocation2 + $0x48] sm:$0xff]
        %v1396 = vld [vmem:[#allocation2 + $0x50] sm:$0xff]
        %v1397 = vld [vmem:[#allocation2 + $0x58] sm:$0xff]
        %v1398 = vld [vmem:[#allocation2 + $0x60] sm:$0xff]
        %v1399 = vld [vmem:[#allocation2 + $0x68] sm:$0xff]
        %v1400 = vld [vmem:[#allocation2 + $0x70] sm:$0xff]
        %v1401 = vld [vmem:[#allocation2 + $0x78] sm:$0xff]
        %v1402 = vld [vmem:[#allocation2 + $0x80] sm:$0xff]
        %v1403 = vld [vmem:[#allocation2 + $0x88] sm:$0xff]
        %v1404 = vld [vmem:[#allocation2 + $0x90] sm:$0xff]
        %v1405 = vld [vmem:[#allocation2 + $0x98] sm:$0xff]
        %v1406 = vld [vmem:[#allocation2 + $0xa0] sm:$0xff]
        %v1407 = vld [vmem:[#allocation2 + $0xa8] sm:$0xff]
        %v1408 = vld [vmem:[#allocation2 + $0xb0] sm:$0xff]
        %v1409 = vld [vmem:[#allocation2 + $0xb8] sm:$0xff]
        %v1410 = vld [vmem:[#allocation2 + $0xc0] sm:$0xff]
        %v1411 = vld [vmem:[#allocation2 + $0xc8] sm:$0xff]
        %v1412 = vld [vmem:[#allocation2 + $0xd0] sm:$0xff]
        %v1413 = vld [vmem:[#allocation2 + $0xd8] sm:$0xff]
        %v1414 = vld [vmem:[#allocation2 + $0xe0] sm:$0xff]
        %v1415 = vld [vmem:[#allocation2 + $0xe8] sm:$0xff]
        %v1416 = vld [vmem:[#allocation2 + $0xf0] sm:$0xff]
        %v1417 = vld [vmem:[#allocation2 + $0xf8] sm:$0xff]
        %v1418 = vld [vmem:[#allocation2 + $0x100] sm:$0xff]
        %v1419 = vld [vmem:[#allocation2 + $0x108] sm:$0xff]
        %v1420 = vld [vmem:[#allocation2 + $0x110] sm:$0xff]
        %v1421 = vld [vmem:[#allocation2 + $0x118] sm:$0xff]
        %v1422 = vld [vmem:[%s244] sm:$0xe]
        %v1423 = vld [vmem:[%s244 + $0x4] sm:$0xf]
        %v1424 = vld [vmem:[%s244 + $0x8] sm:$0xf]
        %v1425 = vld [vmem:[%s244 + $0xc] sm:$0xf]
        %v1426 = vld [vmem:[%s244 + $0x10] sm:$0xf]
        %v1427 = vld [vmem:[%s244 + $0x14] sm:$0xf]
        %v1428 = vld [vmem:[%s244 + $0x18] sm:$0xf]
        %v1429 = vld [vmem:[%s244 + $0x1c] sm:$0xf]
        %v1430 = vld [vmem:[%s244 + $0x20] sm:$0xf]
        %v1431 = vld [vmem:[%s244 + $0x24] sm:$0xf]
        %v1432 = vld [vmem:[%s244 + $0x28] sm:$0xf]
        %v1433 = vld [vmem:[%s244 + $0x2c] sm:$0xf]
        %v1434 = vld [vmem:[%s244 + $0x30] sm:$0xf]
        %v1435 = vld [vmem:[%s244 + $0x34] sm:$0xf]
        %v1436 = vld [vmem:[%s244 + $0x38] sm:$0xf]
        %v1437 = vld [vmem:[%s244 + $0x3c] sm:$0xf]
        %v1438 = vld [vmem:[%s244 + $0x40] sm:$0xf]
        %v1439 = vld [vmem:[%s244 + $0x44] sm:$0xf]
        %v1440 = vld [vmem:[%s244 + $0x48] sm:$0xf]
        %v1441 = vld [vmem:[%s244 + $0x4c] sm:$0xf]
        %v1442 = vld [vmem:[%s244 + $0x50] sm:$0xf]
        %v1443 = vld [vmem:[%s244 + $0x54] sm:$0xf]
        %v1444 = vld [vmem:[%s244 + $0x58] sm:$0xf]
        %v1445 = vld [vmem:[%s244 + $0x5c] sm:$0xf]
        %v1446 = vld [vmem:[%s244 + $0x60] sm:$0xf]
        %v1447 = vld [vmem:[%s244 + $0x64] sm:$0xf]
        %v1448 = vld [vmem:[%s244 + $0x68] sm:$0xf]
        %v1449 = vld [vmem:[%s244 + $0x6c] sm:$0xf]
        %v1450 = vld [vmem:[%s244 + $0x70] sm:$0xf]
        %v1451 = vld [vmem:[%s244 + $0x74] sm:$0xf]
        %v1452 = vld [vmem:[%s244 + $0x78] sm:$0xf]
        %v1453 = vld [vmem:[%s244 + $0x7c] sm:$0xf]
        %v1454 = vld [vmem:[%s244 + $0x80] sm:$0xf]
        %v1455 = vld [vmem:[%s244 + $0x84] sm:$0xf]
        %v1456 = vld [vmem:[%s244 + $0x88] sm:$0xf]
        %v1457 = vld [vmem:[%s244 + $0x8c] sm:$0xf]
        %v1458 = vld [vmem:[%s244 + $0x90] sm:$0x1]
        %s1459 = scalar_lea.vmem %s248, 8
        %v1460 = vld [vmem:[%s1459] sm:$0xf]
        %v1498 = vunpack.c.l.b16 %v1422
        %v1499 = vunpack.c.l.b16 %v1423
        %v1500 = vunpack.c.l.b16 %v1424
        %v1501 = vunpack.c.l.b16 %v1425
        %v1502 = vunpack.c.l.b16 %v1426
        %v1503 = vunpack.c.l.b16 %v1427
        %v1504 = vunpack.c.l.b16 %v1428
        %v1505 = vunpack.c.l.b16 %v1429
        %v1506 = vunpack.c.l.b16 %v1430
        %v1507 = vunpack.c.l.b16 %v1431
        %v1508 = vunpack.c.l.b16 %v1432
        %v1509 = vunpack.c.l.b16 %v1433
        %v1510 = vunpack.c.l.b16 %v1434
        %v1511 = vunpack.c.l.b16 %v1435
        %v1512 = vunpack.c.l.b16 %v1436
        %v1513 = vunpack.c.l.b16 %v1437
        %v1514 = vunpack.c.l.b16 %v1438
        %v1515 = vunpack.c.l.b16 %v1439
        %v1516 = vunpack.c.l.b16 %v1440
        %v1517 = vunpack.c.l.b16 %v1441
        %v1518 = vunpack.c.l.b16 %v1442
        %v1519 = vunpack.c.l.b16 %v1443
        %v1520 = vunpack.c.l.b16 %v1444
        %v1521 = vunpack.c.l.b16 %v1445
        %v1522 = vunpack.c.l.b16 %v1446
        %v1523 = vunpack.c.l.b16 %v1447
        %v1524 = vunpack.c.l.b16 %v1448
        %v1525 = vunpack.c.l.b16 %v1449
        %v1526 = vunpack.c.l.b16 %v1450
        %v1527 = vunpack.c.l.b16 %v1451
        %v1528 = vunpack.c.l.b16 %v1452
        %v1529 = vunpack.c.l.b16 %v1453
        %v1530 = vunpack.c.l.b16 %v1454
        %v1531 = vunpack.c.l.b16 %v1455
        %v1532 = vunpack.c.l.b16 %v1456
        %v1533 = vunpack.c.l.b16 %v1457
        %v1534 = vunpack.c.l.b16 %v1458
        %v1535 = vpack.c.b16 %v1499, %v1498
        %v1536 = vpack.c.b16 %v1501, %v1500
        %v1537 = vpack.c.b16 %v1503, %v1502
        %v1538 = vpack.c.b16 %v1505, %v1504
        %v1539 = vpack.c.b16 %v1507, %v1506
        %v1540 = vpack.c.b16 %v1509, %v1508
        %v1541 = vpack.c.b16 %v1511, %v1510
        %v1542 = vpack.c.b16 %v1513, %v1512
        %v1543 = vpack.c.b16 %v1515, %v1514
        %v1544 = vpack.c.b16 %v1517, %v1516
        %v1545 = vpack.c.b16 %v1519, %v1518
        %v1546 = vpack.c.b16 %v1521, %v1520
        %v1547 = vpack.c.b16 %v1523, %v1522
        %v1548 = vpack.c.b16 %v1525, %v1524
        %v1549 = vpack.c.b16 %v1527, %v1526
        %v1550 = vpack.c.b16 %v1529, %v1528
        %v1551 = vpack.c.b16 %v1531, %v1530
        %v1552 = vpack.c.b16 %v1533, %v1532
        %v1553 = vpack.c.b16 %v1534, %v1534
        %vm1554 = vcmask 1046528
        %v1555 = vrot.slane %v1535, 1
        %v1556 = vrot.slane %v1536, 1
        %v1557 = vsel %vm1554, %v1555, %v1556
        %v1558 = vrot.slane %v1537, 1
        %v1559 = vsel %vm1554, %v1556, %v1558
        %v1560 = vrot.slane %v1538, 1
        %v1561 = vsel %vm1554, %v1558, %v1560
        %v1562 = vrot.slane %v1539, 1
        %v1563 = vsel %vm1554, %v1560, %v1562
        %v1564 = vrot.slane %v1540, 1
        %v1565 = vsel %vm1554, %v1562, %v1564
        %v1566 = vrot.slane %v1541, 1
        %v1567 = vsel %vm1554, %v1564, %v1566
        %v1568 = vrot.slane %v1542, 1
        %v1569 = vsel %vm1554, %v1566, %v1568
        %v1570 = vrot.slane %v1543, 1
        %v1571 = vsel %vm1554, %v1568, %v1570
        %v1572 = vrot.slane %v1544, 1
        %v1573 = vsel %vm1554, %v1570, %v1572
        %v1574 = vrot.slane %v1545, 1
        %v1575 = vsel %vm1554, %v1572, %v1574
        %v1576 = vrot.slane %v1546, 1
        %v1577 = vsel %vm1554, %v1574, %v1576
        %v1578 = vrot.slane %v1547, 1
        %v1579 = vsel %vm1554, %v1576, %v1578
        %v1580 = vrot.slane %v1548, 1
        %v1581 = vsel %vm1554, %v1578, %v1580
        %v1582 = vrot.slane %v1549, 1
        %v1583 = vsel %vm1554, %v1580, %v1582
        %v1584 = vrot.slane %v1550, 1
        %v1585 = vsel %vm1554, %v1582, %v1584
        %v1586 = vrot.slane %v1551, 1
        %v1587 = vsel %vm1554, %v1584, %v1586
        %v1588 = vrot.slane %v1552, 1
        %v1589 = vsel %vm1554, %v1586, %v1588
        %v1590 = vrot.slane %v1553, 1
        %v1591 = vsel %vm1554, %v1588, %v1590
        %v1593 = vsel %vm455, %v1557, 0
        %v1596 = vsel %vm455, %v1559, 0
        %v1599 = vsel %vm455, %v1561, 0
        %v1602 = vsel %vm455, %v1563, 0
        %v1605 = vsel %vm455, %v1565, 0
        %v1608 = vsel %vm455, %v1567, 0
        %v1611 = vsel %vm455, %v1569, 0
        %v1614 = vsel %vm455, %v1571, 0
        %v1617 = vsel %vm455, %v1573, 0
        %v1620 = vsel %vm455, %v1575, 0
        %v1623 = vsel %vm455, %v1577, 0
        %v1626 = vsel %vm455, %v1579, 0
        %v1629 = vsel %vm455, %v1581, 0
        %v1632 = vsel %vm455, %v1583, 0
        %v1635 = vsel %vm455, %v1585, 0
        %v1638 = vsel %vm455, %v1587, 0
        %v1641 = vsel %vm455, %v1589, 0
        %v1644 = vsel %vm455, %v1591, 0
        %v1647 = vsel %vm510, %v1460, 0
        %1649 = vmatprep.subr.bf16.mxu0 0
        %1650 = vmatpush1.bf16.msra.mxu0 0
        %1651 = vmatprep.subr.bf16.mxu0 0
        %1652 = vmatpush1.bf16.msra.mxu0 0
        %1653 = vmatprep.subr.bf16.mxu0 0
        %1654 = vmatpush1.bf16.msra.mxu0 0
        %1655 = vmatprep.subr.bf16.mxu0 0
        %1656 = vmatpush1.bf16.msra.mxu0 0
        %1657 = vmatprep.subr.bf16.mxu0 0
        %1658 = vmatpush1.bf16.msra.mxu0 0
        %1659 = vmatprep.subr.bf16.mxu0 0
        %1660 = vmatpush1.bf16.msra.mxu0 0
        %1661 = vmatprep.subr.bf16.mxu0 0
        %1662 = vmatpush1.bf16.msra.mxu0 0
        %1663 = vmatprep.subr.bf16.mxu0 0
        %1664 = vmatpush1.bf16.msra.mxu0 %v1647
        %1665 = vmatprep.subr.bf16.mxu0 0
        %1666 = vmatpush2.bf16.msra.mxu0 0
        %1667 = vmatprep.subr.bf16.mxu0 0
        %1668 = vmatpush2.bf16.msra.mxu0 0
        %1669 = vmatprep.subr.bf16.mxu0 0
        %1670 = vmatpush2.bf16.msra.mxu0 0
        %1671 = vmatprep.subr.bf16.mxu0 0
        %1672 = vmatpush2.bf16.msra.mxu0 0
        %1673 = vmatprep.subr.bf16.mxu0 0
        %1674 = vmatpush2.bf16.msra.mxu0 0
        %1675 = vmatprep.subr.bf16.mxu0 0
        %1676 = vmatpush2.bf16.msra.mxu0 0
        %1677 = vmatprep.subr.bf16.mxu0 0
        %1678 = vmatpush2.bf16.msra.mxu0 0
        %1679 = vmatprep.subr.bf16.mxu0 0
        %1680 = vmatpush2.bf16.msra.mxu0 0
        %1681 = vmatprep.mubr.bf16.mxu0 0
        %1682 = vmatmul.mubr.bf16.gmra.mxu0 %v1593
        %v1683 = vpop.f32.mrf.mxu0
        %v1684 = vadd.f32 0.0, %v1683
        %v1685 = vpop.f32.mrf.mxu0
        %v1686 = vpop.f32.mrf.mxu0
        %v1687 = vadd.f32 0.0, %v1686
        %v1688 = vpop.f32.mrf.mxu0
        %1689 = vmatprep.mubr.bf16.mxu0 0
        %1690 = vmatmul.mubr.bf16.gmra.mxu0 %v1596
        %v1691 = vpop.f32.mrf.mxu0
        %v1692 = vadd.f32 0.0, %v1691
        %v1693 = vpop.f32.mrf.mxu0
        %v1694 = vpop.f32.mrf.mxu0
        %v1695 = vadd.f32 0.0, %v1694
        %v1696 = vpop.f32.mrf.mxu0
        %1697 = vmatprep.mubr.bf16.mxu0 0
        %1698 = vmatmul.mubr.bf16.gmra.mxu0 %v1599
        %v1699 = vpop.f32.mrf.mxu0
        %v1700 = vadd.f32 0.0, %v1699
        %v1701 = vpop.f32.mrf.mxu0
        %v1702 = vpop.f32.mrf.mxu0
        %v1703 = vadd.f32 0.0, %v1702
        %v1704 = vpop.f32.mrf.mxu0
        %1705 = vmatprep.mubr.bf16.mxu0 0
        %1706 = vmatmul.mubr.bf16.gmra.mxu0 %v1602
        %v1707 = vpop.f32.mrf.mxu0
        %v1708 = vadd.f32 0.0, %v1707
        %v1709 = vpop.f32.mrf.mxu0
        %v1710 = vpop.f32.mrf.mxu0
        %v1711 = vadd.f32 0.0, %v1710
        %v1712 = vpop.f32.mrf.mxu0
        %1713 = vmatprep.mubr.bf16.mxu0 0
        %1714 = vmatmul.mubr.bf16.gmra.mxu0 %v1605
        %v1715 = vpop.f32.mrf.mxu0
        %v1716 = vadd.f32 0.0, %v1715
        %v1717 = vpop.f32.mrf.mxu0
        %v1718 = vpop.f32.mrf.mxu0
        %v1719 = vadd.f32 0.0, %v1718
        %v1720 = vpop.f32.mrf.mxu0
        %1721 = vmatprep.mubr.bf16.mxu0 0
        %1722 = vmatmul.mubr.bf16.gmra.mxu0 %v1608
        %v1723 = vpop.f32.mrf.mxu0
        %v1724 = vadd.f32 0.0, %v1723
        %v1725 = vpop.f32.mrf.mxu0
        %v1726 = vpop.f32.mrf.mxu0
        %v1727 = vadd.f32 0.0, %v1726
        %v1728 = vpop.f32.mrf.mxu0
        %1729 = vmatprep.mubr.bf16.mxu0 0
        %1730 = vmatmul.mubr.bf16.gmra.mxu0 %v1611
        %v1731 = vpop.f32.mrf.mxu0
        %v1732 = vadd.f32 0.0, %v1731
        %v1733 = vpop.f32.mrf.mxu0
        %v1734 = vpop.f32.mrf.mxu0
        %v1735 = vadd.f32 0.0, %v1734
        %v1736 = vpop.f32.mrf.mxu0
        %1737 = vmatprep.mubr.bf16.mxu0 0
        %1738 = vmatmul.mubr.bf16.gmra.mxu0 %v1614
        %v1739 = vpop.f32.mrf.mxu0
        %v1740 = vadd.f32 0.0, %v1739
        %v1741 = vpop.f32.mrf.mxu0
        %v1742 = vpop.f32.mrf.mxu0
        %v1743 = vadd.f32 0.0, %v1742
        %v1744 = vpop.f32.mrf.mxu0
        %1745 = vmatprep.mubr.bf16.mxu0 0
        %1746 = vmatmul.mubr.bf16.gmra.mxu0 %v1617
        %v1747 = vpop.f32.mrf.mxu0
        %v1748 = vadd.f32 0.0, %v1747
        %v1749 = vpop.f32.mrf.mxu0
        %v1750 = vpop.f32.mrf.mxu0
        %v1751 = vadd.f32 0.0, %v1750
        %v1752 = vpop.f32.mrf.mxu0
        %1753 = vmatprep.mubr.bf16.mxu0 0
        %1754 = vmatmul.mubr.bf16.gmra.mxu0 %v1620
        %v1755 = vpop.f32.mrf.mxu0
        %v1756 = vadd.f32 0.0, %v1755
        %v1757 = vpop.f32.mrf.mxu0
        %v1758 = vpop.f32.mrf.mxu0
        %v1759 = vadd.f32 0.0, %v1758
        %v1760 = vpop.f32.mrf.mxu0
        %1761 = vmatprep.mubr.bf16.mxu0 0
        %1762 = vmatmul.mubr.bf16.gmra.mxu0 %v1623
        %v1763 = vpop.f32.mrf.mxu0
        %v1764 = vadd.f32 0.0, %v1763
        %v1765 = vpop.f32.mrf.mxu0
        %v1766 = vpop.f32.mrf.mxu0
        %v1767 = vadd.f32 0.0, %v1766
        %v1768 = vpop.f32.mrf.mxu0
        %1769 = vmatprep.mubr.bf16.mxu0 0
        %1770 = vmatmul.mubr.bf16.gmra.mxu0 %v1626
        %v1771 = vpop.f32.mrf.mxu0
        %v1772 = vadd.f32 0.0, %v1771
        %v1773 = vpop.f32.mrf.mxu0
        %v1774 = vpop.f32.mrf.mxu0
        %v1775 = vadd.f32 0.0, %v1774
        %v1776 = vpop.f32.mrf.mxu0
        %1777 = vmatprep.mubr.bf16.mxu0 0
        %1778 = vmatmul.mubr.bf16.gmra.mxu0 %v1629
        %v1779 = vpop.f32.mrf.mxu0
        %v1780 = vadd.f32 0.0, %v1779
        %v1781 = vpop.f32.mrf.mxu0
        %v1782 = vpop.f32.mrf.mxu0
        %v1783 = vadd.f32 0.0, %v1782
        %v1784 = vpop.f32.mrf.mxu0
        %1785 = vmatprep.mubr.bf16.mxu0 0
        %1786 = vmatmul.mubr.bf16.gmra.mxu0 %v1632
        %v1787 = vpop.f32.mrf.mxu0
        %v1788 = vadd.f32 0.0, %v1787
        %v1789 = vpop.f32.mrf.mxu0
        %v1790 = vpop.f32.mrf.mxu0
        %v1791 = vadd.f32 0.0, %v1790
        %v1792 = vpop.f32.mrf.mxu0
        %1793 = vmatprep.mubr.bf16.mxu0 0
        %1794 = vmatmul.mubr.bf16.gmra.mxu0 %v1635
        %v1795 = vpop.f32.mrf.mxu0
        %v1796 = vadd.f32 0.0, %v1795
        %v1797 = vpop.f32.mrf.mxu0
        %v1798 = vpop.f32.mrf.mxu0
        %v1799 = vadd.f32 0.0, %v1798
        %v1800 = vpop.f32.mrf.mxu0
        %1801 = vmatprep.mubr.bf16.mxu0 0
        %1802 = vmatmul.mubr.bf16.gmra.mxu0 %v1638
        %v1803 = vpop.f32.mrf.mxu0
        %v1804 = vadd.f32 0.0, %v1803
        %v1805 = vpop.f32.mrf.mxu0
        %v1806 = vpop.f32.mrf.mxu0
        %v1807 = vadd.f32 0.0, %v1806
        %v1808 = vpop.f32.mrf.mxu0
        %1809 = vmatprep.mubr.bf16.mxu0 0
        %1810 = vmatmul.mubr.bf16.gmra.mxu0 %v1641
        %v1811 = vpop.f32.mrf.mxu0
        %v1812 = vadd.f32 0.0, %v1811
        %v1813 = vpop.f32.mrf.mxu0
        %v1814 = vpop.f32.mrf.mxu0
        %v1815 = vadd.f32 0.0, %v1814
        %v1816 = vpop.f32.mrf.mxu0
        %1817 = vmatprep.mubr.bf16.mxu0 0
        %1818 = vmatmul.mubr.bf16.gmra.mxu0 %v1644
        %v1819 = vpop.f32.mrf.mxu0
        %v1820 = vadd.f32 0.0, %v1819
        %v1821 = vpop.f32.mrf.mxu0
        %v1822 = vpop.f32.mrf.mxu0
        %v1823 = vadd.f32 0.0, %v1822
        %v1824 = vpop.f32.mrf.mxu0
        %1825 = vdwg.mxu0
        %v1826 = vadd.f32 %v1386, %v1684
        %v1827 = vadd.f32 %v1387, %v1687
        %v1828 = vadd.f32 %v1388, %v1692
        %v1829 = vadd.f32 %v1389, %v1695
        %v1830 = vadd.f32 %v1390, %v1700
        %v1831 = vadd.f32 %v1391, %v1703
        %v1832 = vadd.f32 %v1392, %v1708
        %v1833 = vadd.f32 %v1393, %v1711
        %v1834 = vadd.f32 %v1394, %v1716
        %v1835 = vadd.f32 %v1395, %v1719
        %v1836 = vadd.f32 %v1396, %v1724
        %v1837 = vadd.f32 %v1397, %v1727
        %v1838 = vadd.f32 %v1398, %v1732
        %v1839 = vadd.f32 %v1399, %v1735
        %v1840 = vadd.f32 %v1400, %v1740
        %v1841 = vadd.f32 %v1401, %v1743
        %v1842 = vadd.f32 %v1402, %v1748
        %v1843 = vadd.f32 %v1403, %v1751
        %v1844 = vadd.f32 %v1404, %v1756
        %v1845 = vadd.f32 %v1405, %v1759
        %v1846 = vadd.f32 %v1406, %v1764
        %v1847 = vadd.f32 %v1407, %v1767
        %v1848 = vadd.f32 %v1408, %v1772
        %v1849 = vadd.f32 %v1409, %v1775
        %v1850 = vadd.f32 %v1410, %v1780
        %v1851 = vadd.f32 %v1411, %v1783
        %v1852 = vadd.f32 %v1412, %v1788
        %v1853 = vadd.f32 %v1413, %v1791
        %v1854 = vadd.f32 %v1414, %v1796
        %v1855 = vadd.f32 %v1415, %v1799
        %v1856 = vadd.f32 %v1416, %v1804
        %v1857 = vadd.f32 %v1417, %v1807
        %v1858 = vadd.f32 %v1418, %v1812
        %v1859 = vadd.f32 %v1419, %v1815
        %v1860 = vadd.f32 %v1420, %v1820
        %v1861 = vadd.f32 %v1421, %v1823
        %1862 = vst [vmem:[#allocation2] sm:$0xff] %v1826
        %1863 = vst [vmem:[#allocation2 + $0x8] sm:$0xff] %v1827
        %1864 = vst [vmem:[#allocation2 + $0x10] sm:$0xff] %v1828
        %1865 = vst [vmem:[#allocation2 + $0x18] sm:$0xff] %v1829
        %1866 = vst [vmem:[#allocation2 + $0x20] sm:$0xff] %v1830
        %1867 = vst [vmem:[#allocation2 + $0x28] sm:$0xff] %v1831
        %1868 = vst [vmem:[#allocation2 + $0x30] sm:$0xff] %v1832
        %1869 = vst [vmem:[#allocation2 + $0x38] sm:$0xff] %v1833
        %1870 = vst [vmem:[#allocation2 + $0x40] sm:$0xff] %v1834
        %1871 = vst [vmem:[#allocation2 + $0x48] sm:$0xff] %v1835
        %1872 = vst [vmem:[#allocation2 + $0x50] sm:$0xff] %v1836
        %1873 = vst [vmem:[#allocation2 + $0x58] sm:$0xff] %v1837
        %1874 = vst [vmem:[#allocation2 + $0x60] sm:$0xff] %v1838
        %1875 = vst [vmem:[#allocation2 + $0x68] sm:$0xff] %v1839
        %1876 = vst [vmem:[#allocation2 + $0x70] sm:$0xff] %v1840
        %1877 = vst [vmem:[#allocation2 + $0x78] sm:$0xff] %v1841
        %1878 = vst [vmem:[#allocation2 + $0x80] sm:$0xff] %v1842
        %1879 = vst [vmem:[#allocation2 + $0x88] sm:$0xff] %v1843
        %1880 = vst [vmem:[#allocation2 + $0x90] sm:$0xff] %v1844
        %1881 = vst [vmem:[#allocation2 + $0x98] sm:$0xff] %v1845
        %1882 = vst [vmem:[#allocation2 + $0xa0] sm:$0xff] %v1846
        %1883 = vst [vmem:[#allocation2 + $0xa8] sm:$0xff] %v1847
        %1884 = vst [vmem:[#allocation2 + $0xb0] sm:$0xff] %v1848
        %1885 = vst [vmem:[#allocation2 + $0xb8] sm:$0xff] %v1849
        %1886 = vst [vmem:[#allocation2 + $0xc0] sm:$0xff] %v1850
        %1887 = vst [vmem:[#allocation2 + $0xc8] sm:$0xff] %v1851
        %1888 = vst [vmem:[#allocation2 + $0xd0] sm:$0xff] %v1852
        %1889 = vst [vmem:[#allocation2 + $0xd8] sm:$0xff] %v1853
        %1890 = vst [vmem:[#allocation2 + $0xe0] sm:$0xff] %v1854
        %1891 = vst [vmem:[#allocation2 + $0xe8] sm:$0xff] %v1855
        %1892 = vst [vmem:[#allocation2 + $0xf0] sm:$0xff] %v1856
        %1893 = vst [vmem:[#allocation2 + $0xf8] sm:$0xff] %v1857
        %1894 = vst [vmem:[#allocation2 + $0x100] sm:$0xff] %v1858
        %1895 = vst [vmem:[#allocation2 + $0x108] sm:$0xff] %v1859
        %1896 = vst [vmem:[#allocation2 + $0x110] sm:$0xff] %v1860
        %1897 = vst [vmem:[#allocation2 + $0x118] sm:$0xff] %v1861
        %v1898 = vld [vmem:[#allocation2] sm:$0xff]
        %v1899 = vld [vmem:[#allocation2 + $0x8] sm:$0xff]
        %v1900 = vld [vmem:[#allocation2 + $0x10] sm:$0xff]
        %v1901 = vld [vmem:[#allocation2 + $0x18] sm:$0xff]
        %v1902 = vld [vmem:[#allocation2 + $0x20] sm:$0xff]
        %v1903 = vld [vmem:[#allocation2 + $0x28] sm:$0xff]
        %v1904 = vld [vmem:[#allocation2 + $0x30] sm:$0xff]
        %v1905 = vld [vmem:[#allocation2 + $0x38] sm:$0xff]
        %v1906 = vld [vmem:[#allocation2 + $0x40] sm:$0xff]
        %v1907 = vld [vmem:[#allocation2 + $0x48] sm:$0xff]
        %v1908 = vld [vmem:[#allocation2 + $0x50] sm:$0xff]
        %v1909 = vld [vmem:[#allocation2 + $0x58] sm:$0xff]
        %v1910 = vld [vmem:[#allocation2 + $0x60] sm:$0xff]
        %v1911 = vld [vmem:[#allocation2 + $0x68] sm:$0xff]
        %v1912 = vld [vmem:[#allocation2 + $0x70] sm:$0xff]
        %v1913 = vld [vmem:[#allocation2 + $0x78] sm:$0xff]
        %v1914 = vld [vmem:[#allocation2 + $0x80] sm:$0xff]
        %v1915 = vld [vmem:[#allocation2 + $0x88] sm:$0xff]
        %v1916 = vld [vmem:[#allocation2 + $0x90] sm:$0xff]
        %v1917 = vld [vmem:[#allocation2 + $0x98] sm:$0xff]
        %v1918 = vld [vmem:[#allocation2 + $0xa0] sm:$0xff]
        %v1919 = vld [vmem:[#allocation2 + $0xa8] sm:$0xff]
        %v1920 = vld [vmem:[#allocation2 + $0xb0] sm:$0xff]
        %v1921 = vld [vmem:[#allocation2 + $0xb8] sm:$0xff]
        %v1922 = vld [vmem:[#allocation2 + $0xc0] sm:$0xff]
        %v1923 = vld [vmem:[#allocation2 + $0xc8] sm:$0xff]
        %v1924 = vld [vmem:[#allocation2 + $0xd0] sm:$0xff]
        %v1925 = vld [vmem:[#allocation2 + $0xd8] sm:$0xff]
        %v1926 = vld [vmem:[#allocation2 + $0xe0] sm:$0xff]
        %v1927 = vld [vmem:[#allocation2 + $0xe8] sm:$0xff]
        %v1928 = vld [vmem:[#allocation2 + $0xf0] sm:$0xff]
        %v1929 = vld [vmem:[#allocation2 + $0xf8] sm:$0xff]
        %v1930 = vld [vmem:[#allocation2 + $0x100] sm:$0xff]
        %v1931 = vld [vmem:[#allocation2 + $0x108] sm:$0xff]
        %v1932 = vld [vmem:[#allocation2 + $0x110] sm:$0xff]
        %v1933 = vld [vmem:[#allocation2 + $0x118] sm:$0xff]
        %v1934 = vld [vmem:[%s244 + $0x8] sm:$0xe]
        %v1935 = vld [vmem:[%s244 + $0xc] sm:$0xf]
        %v1936 = vld [vmem:[%s244 + $0x10] sm:$0xf]
        %v1937 = vld [vmem:[%s244 + $0x14] sm:$0xf]
        %v1938 = vld [vmem:[%s244 + $0x18] sm:$0xf]
        %v1939 = vld [vmem:[%s244 + $0x1c] sm:$0xf]
        %v1940 = vld [vmem:[%s244 + $0x20] sm:$0xf]
        %v1941 = vld [vmem:[%s244 + $0x24] sm:$0xf]
        %v1942 = vld [vmem:[%s244 + $0x28] sm:$0xf]
        %v1943 = vld [vmem:[%s244 + $0x2c] sm:$0xf]
        %v1944 = vld [vmem:[%s244 + $0x30] sm:$0xf]
        %v1945 = vld [vmem:[%s244 + $0x34] sm:$0xf]
        %v1946 = vld [vmem:[%s244 + $0x38] sm:$0xf]
        %v1947 = vld [vmem:[%s244 + $0x3c] sm:$0xf]
        %v1948 = vld [vmem:[%s244 + $0x40] sm:$0xf]
        %v1949 = vld [vmem:[%s244 + $0x44] sm:$0xf]
        %v1950 = vld [vmem:[%s244 + $0x48] sm:$0xf]
        %v1951 = vld [vmem:[%s244 + $0x4c] sm:$0xf]
        %v1952 = vld [vmem:[%s244 + $0x50] sm:$0xf]
        %v1953 = vld [vmem:[%s244 + $0x54] sm:$0xf]
        %v1954 = vld [vmem:[%s244 + $0x58] sm:$0xf]
        %v1955 = vld [vmem:[%s244 + $0x5c] sm:$0xf]
        %v1956 = vld [vmem:[%s244 + $0x60] sm:$0xf]
        %v1957 = vld [vmem:[%s244 + $0x64] sm:$0xf]
        %v1958 = vld [vmem:[%s244 + $0x68] sm:$0xf]
        %v1959 = vld [vmem:[%s244 + $0x6c] sm:$0xf]
        %v1960 = vld [vmem:[%s244 + $0x70] sm:$0xf]
        %v1961 = vld [vmem:[%s244 + $0x74] sm:$0xf]
        %v1962 = vld [vmem:[%s244 + $0x78] sm:$0xf]
        %v1963 = vld [vmem:[%s244 + $0x7c] sm:$0xf]
        %v1964 = vld [vmem:[%s244 + $0x80] sm:$0xf]
        %v1965 = vld [vmem:[%s244 + $0x84] sm:$0xf]
        %v1966 = vld [vmem:[%s244 + $0x88] sm:$0xf]
        %v1967 = vld [vmem:[%s244 + $0x8c] sm:$0xf]
        %v1968 = vld [vmem:[%s244 + $0x90] sm:$0xf]
        %v1969 = vld [vmem:[%s244 + $0x94] sm:$0xf]
        %v1970 = vld [vmem:[%s244 + $0x98] sm:$0x1]
        %s1971 = scalar_lea.vmem %s248, 12
        %v1972 = vld [vmem:[%s1971] sm:$0xf]
        %v2010 = vunpack.c.l.b16 %v1934
        %v2011 = vunpack.c.l.b16 %v1935
        %v2012 = vunpack.c.l.b16 %v1936
        %v2013 = vunpack.c.l.b16 %v1937
        %v2014 = vunpack.c.l.b16 %v1938
        %v2015 = vunpack.c.l.b16 %v1939
        %v2016 = vunpack.c.l.b16 %v1940
        %v2017 = vunpack.c.l.b16 %v1941
        %v2018 = vunpack.c.l.b16 %v1942
        %v2019 = vunpack.c.l.b16 %v1943
        %v2020 = vunpack.c.l.b16 %v1944
        %v2021 = vunpack.c.l.b16 %v1945
        %v2022 = vunpack.c.l.b16 %v1946
        %v2023 = vunpack.c.l.b16 %v1947
        %v2024 = vunpack.c.l.b16 %v1948
        %v2025 = vunpack.c.l.b16 %v1949
        %v2026 = vunpack.c.l.b16 %v1950
        %v2027 = vunpack.c.l.b16 %v1951
        %v2028 = vunpack.c.l.b16 %v1952
        %v2029 = vunpack.c.l.b16 %v1953
        %v2030 = vunpack.c.l.b16 %v1954
        %v2031 = vunpack.c.l.b16 %v1955
        %v2032 = vunpack.c.l.b16 %v1956
        %v2033 = vunpack.c.l.b16 %v1957
        %v2034 = vunpack.c.l.b16 %v1958
        %v2035 = vunpack.c.l.b16 %v1959
        %v2036 = vunpack.c.l.b16 %v1960
        %v2037 = vunpack.c.l.b16 %v1961
        %v2038 = vunpack.c.l.b16 %v1962
        %v2039 = vunpack.c.l.b16 %v1963
        %v2040 = vunpack.c.l.b16 %v1964
        %v2041 = vunpack.c.l.b16 %v1965
        %v2042 = vunpack.c.l.b16 %v1966
        %v2043 = vunpack.c.l.b16 %v1967
        %v2044 = vunpack.c.l.b16 %v1968
        %v2045 = vunpack.c.l.b16 %v1969
        %v2046 = vunpack.c.l.b16 %v1970
        %v2047 = vpack.c.b16 %v2011, %v2010
        %v2048 = vpack.c.b16 %v2013, %v2012
        %v2049 = vpack.c.b16 %v2015, %v2014
        %v2050 = vpack.c.b16 %v2017, %v2016
        %v2051 = vpack.c.b16 %v2019, %v2018
        %v2052 = vpack.c.b16 %v2021, %v2020
        %v2053 = vpack.c.b16 %v2023, %v2022
        %v2054 = vpack.c.b16 %v2025, %v2024
        %v2055 = vpack.c.b16 %v2027, %v2026
        %v2056 = vpack.c.b16 %v2029, %v2028
        %v2057 = vpack.c.b16 %v2031, %v2030
        %v2058 = vpack.c.b16 %v2033, %v2032
        %v2059 = vpack.c.b16 %v2035, %v2034
        %v2060 = vpack.c.b16 %v2037, %v2036
        %v2061 = vpack.c.b16 %v2039, %v2038
        %v2062 = vpack.c.b16 %v2041, %v2040
        %v2063 = vpack.c.b16 %v2043, %v2042
        %v2064 = vpack.c.b16 %v2045, %v2044
        %v2065 = vpack.c.b16 %v2046, %v2046
        %v2066 = vrot.slane %v2047, 1
        %v2067 = vrot.slane %v2048, 1
        %v2068 = vsel %vm1554, %v2066, %v2067
        %v2069 = vrot.slane %v2049, 1
        %v2070 = vsel %vm1554, %v2067, %v2069
        %v2071 = vrot.slane %v2050, 1
        %v2072 = vsel %vm1554, %v2069, %v2071
        %v2073 = vrot.slane %v2051, 1
        %v2074 = vsel %vm1554, %v2071, %v2073
        %v2075 = vrot.slane %v2052, 1
        %v2076 = vsel %vm1554, %v2073, %v2075
        %v2077 = vrot.slane %v2053, 1
        %v2078 = vsel %vm1554, %v2075, %v2077
        %v2079 = vrot.slane %v2054, 1
        %v2080 = vsel %vm1554, %v2077, %v2079
        %v2081 = vrot.slane %v2055, 1
        %v2082 = vsel %vm1554, %v2079, %v2081
        %v2083 = vrot.slane %v2056, 1
        %v2084 = vsel %vm1554, %v2081, %v2083
        %v2085 = vrot.slane %v2057, 1
        %v2086 = vsel %vm1554, %v2083, %v2085
        %v2087 = vrot.slane %v2058, 1
        %v2088 = vsel %vm1554, %v2085, %v2087
        %v2089 = vrot.slane %v2059, 1
        %v2090 = vsel %vm1554, %v2087, %v2089
        %v2091 = vrot.slane %v2060, 1
        %v2092 = vsel %vm1554, %v2089, %v2091
        %v2093 = vrot.slane %v2061, 1
        %v2094 = vsel %vm1554, %v2091, %v2093
        %v2095 = vrot.slane %v2062, 1
        %v2096 = vsel %vm1554, %v2093, %v2095
        %v2097 = vrot.slane %v2063, 1
        %v2098 = vsel %vm1554, %v2095, %v2097
        %v2099 = vrot.slane %v2064, 1
        %v2100 = vsel %vm1554, %v2097, %v2099
        %v2101 = vrot.slane %v2065, 1
        %v2102 = vsel %vm1554, %v2099, %v2101
        %v2104 = vsel %vm455, %v2068, 0
        %v2107 = vsel %vm455, %v2070, 0
        %v2110 = vsel %vm455, %v2072, 0
        %v2113 = vsel %vm455, %v2074, 0
        %v2116 = vsel %vm455, %v2076, 0
        %v2119 = vsel %vm455, %v2078, 0
        %v2122 = vsel %vm455, %v2080, 0
        %v2125 = vsel %vm455, %v2082, 0
        %v2128 = vsel %vm455, %v2084, 0
        %v2131 = vsel %vm455, %v2086, 0
        %v2134 = vsel %vm455, %v2088, 0
        %v2137 = vsel %vm455, %v2090, 0
        %v2140 = vsel %vm455, %v2092, 0
        %v2143 = vsel %vm455, %v2094, 0
        %v2146 = vsel %vm455, %v2096, 0
        %v2149 = vsel %vm455, %v2098, 0
        %v2152 = vsel %vm455, %v2100, 0
        %v2155 = vsel %vm455, %v2102, 0
        %v2158 = vsel %vm510, %v1972, 0
        %2160 = vmatprep.subr.bf16.mxu0 0
        %2161 = vmatpush1.bf16.msra.mxu0 0
        %2162 = vmatprep.subr.bf16.mxu0 0
        %2163 = vmatpush1.bf16.msra.mxu0 0
        %2164 = vmatprep.subr.bf16.mxu0 0
        %2165 = vmatpush1.bf16.msra.mxu0 0
        %2166 = vmatprep.subr.bf16.mxu0 0
        %2167 = vmatpush1.bf16.msra.mxu0 0
        %2168 = vmatprep.subr.bf16.mxu0 0
        %2169 = vmatpush1.bf16.msra.mxu0 0
        %2170 = vmatprep.subr.bf16.mxu0 0
        %2171 = vmatpush1.bf16.msra.mxu0 0
        %2172 = vmatprep.subr.bf16.mxu0 0
        %2173 = vmatpush1.bf16.msra.mxu0 0
        %2174 = vmatprep.subr.bf16.mxu0 0
        %2175 = vmatpush1.bf16.msra.mxu0 %v2158
        %2176 = vmatprep.subr.bf16.mxu0 0
        %2177 = vmatpush2.bf16.msra.mxu0 0
        %2178 = vmatprep.subr.bf16.mxu0 0
        %2179 = vmatpush2.bf16.msra.mxu0 0
        %2180 = vmatprep.subr.bf16.mxu0 0
        %2181 = vmatpush2.bf16.msra.mxu0 0
        %2182 = vmatprep.subr.bf16.mxu0 0
        %2183 = vmatpush2.bf16.msra.mxu0 0
        %2184 = vmatprep.subr.bf16.mxu0 0
        %2185 = vmatpush2.bf16.msra.mxu0 0
        %2186 = vmatprep.subr.bf16.mxu0 0
        %2187 = vmatpush2.bf16.msra.mxu0 0
        %2188 = vmatprep.subr.bf16.mxu0 0
        %2189 = vmatpush2.bf16.msra.mxu0 0
        %2190 = vmatprep.subr.bf16.mxu0 0
        %2191 = vmatpush2.bf16.msra.mxu0 0
        %2192 = vmatprep.mubr.bf16.mxu0 0
        %2193 = vmatmul.mubr.bf16.gmra.mxu0 %v2104
        %v2194 = vpop.f32.mrf.mxu0
        %v2195 = vadd.f32 0.0, %v2194
        %v2196 = vpop.f32.mrf.mxu0
        %v2197 = vpop.f32.mrf.mxu0
        %v2198 = vadd.f32 0.0, %v2197
        %v2199 = vpop.f32.mrf.mxu0
        %2200 = vmatprep.mubr.bf16.mxu0 0
        %2201 = vmatmul.mubr.bf16.gmra.mxu0 %v2107
        %v2202 = vpop.f32.mrf.mxu0
        %v2203 = vadd.f32 0.0, %v2202
        %v2204 = vpop.f32.mrf.mxu0
        %v2205 = vpop.f32.mrf.mxu0
        %v2206 = vadd.f32 0.0, %v2205
        %v2207 = vpop.f32.mrf.mxu0
        %2208 = vmatprep.mubr.bf16.mxu0 0
        %2209 = vmatmul.mubr.bf16.gmra.mxu0 %v2110
        %v2210 = vpop.f32.mrf.mxu0
        %v2211 = vadd.f32 0.0, %v2210
        %v2212 = vpop.f32.mrf.mxu0
        %v2213 = vpop.f32.mrf.mxu0
        %v2214 = vadd.f32 0.0, %v2213
        %v2215 = vpop.f32.mrf.mxu0
        %2216 = vmatprep.mubr.bf16.mxu0 0
        %2217 = vmatmul.mubr.bf16.gmra.mxu0 %v2113
        %v2218 = vpop.f32.mrf.mxu0
        %v2219 = vadd.f32 0.0, %v2218
        %v2220 = vpop.f32.mrf.mxu0
        %v2221 = vpop.f32.mrf.mxu0
        %v2222 = vadd.f32 0.0, %v2221
        %v2223 = vpop.f32.mrf.mxu0
        %2224 = vmatprep.mubr.bf16.mxu0 0
        %2225 = vmatmul.mubr.bf16.gmra.mxu0 %v2116
        %v2226 = vpop.f32.mrf.mxu0
        %v2227 = vadd.f32 0.0, %v2226
        %v2228 = vpop.f32.mrf.mxu0
        %v2229 = vpop.f32.mrf.mxu0
        %v2230 = vadd.f32 0.0, %v2229
        %v2231 = vpop.f32.mrf.mxu0
        %2232 = vmatprep.mubr.bf16.mxu0 0
        %2233 = vmatmul.mubr.bf16.gmra.mxu0 %v2119
        %v2234 = vpop.f32.mrf.mxu0
        %v2235 = vadd.f32 0.0, %v2234
        %v2236 = vpop.f32.mrf.mxu0
        %v2237 = vpop.f32.mrf.mxu0
        %v2238 = vadd.f32 0.0, %v2237
        %v2239 = vpop.f32.mrf.mxu0
        %2240 = vmatprep.mubr.bf16.mxu0 0
        %2241 = vmatmul.mubr.bf16.gmra.mxu0 %v2122
        %v2242 = vpop.f32.mrf.mxu0
        %v2243 = vadd.f32 0.0, %v2242
        %v2244 = vpop.f32.mrf.mxu0
        %v2245 = vpop.f32.mrf.mxu0
        %v2246 = vadd.f32 0.0, %v2245
        %v2247 = vpop.f32.mrf.mxu0
        %2248 = vmatprep.mubr.bf16.mxu0 0
        %2249 = vmatmul.mubr.bf16.gmra.mxu0 %v2125
        %v2250 = vpop.f32.mrf.mxu0
        %v2251 = vadd.f32 0.0, %v2250
        %v2252 = vpop.f32.mrf.mxu0
        %v2253 = vpop.f32.mrf.mxu0
        %v2254 = vadd.f32 0.0, %v2253
        %v2255 = vpop.f32.mrf.mxu0
        %2256 = vmatprep.mubr.bf16.mxu0 0
        %2257 = vmatmul.mubr.bf16.gmra.mxu0 %v2128
        %v2258 = vpop.f32.mrf.mxu0
        %v2259 = vadd.f32 0.0, %v2258
        %v2260 = vpop.f32.mrf.mxu0
        %v2261 = vpop.f32.mrf.mxu0
        %v2262 = vadd.f32 0.0, %v2261
        %v2263 = vpop.f32.mrf.mxu0
        %2264 = vmatprep.mubr.bf16.mxu0 0
        %2265 = vmatmul.mubr.bf16.gmra.mxu0 %v2131
        %v2266 = vpop.f32.mrf.mxu0
        %v2267 = vadd.f32 0.0, %v2266
        %v2268 = vpop.f32.mrf.mxu0
        %v2269 = vpop.f32.mrf.mxu0
        %v2270 = vadd.f32 0.0, %v2269
        %v2271 = vpop.f32.mrf.mxu0
        %2272 = vmatprep.mubr.bf16.mxu0 0
        %2273 = vmatmul.mubr.bf16.gmra.mxu0 %v2134
        %v2274 = vpop.f32.mrf.mxu0
        %v2275 = vadd.f32 0.0, %v2274
        %v2276 = vpop.f32.mrf.mxu0
        %v2277 = vpop.f32.mrf.mxu0
        %v2278 = vadd.f32 0.0, %v2277
        %v2279 = vpop.f32.mrf.mxu0
        %2280 = vmatprep.mubr.bf16.mxu0 0
        %2281 = vmatmul.mubr.bf16.gmra.mxu0 %v2137
        %v2282 = vpop.f32.mrf.mxu0
        %v2283 = vadd.f32 0.0, %v2282
        %v2284 = vpop.f32.mrf.mxu0
        %v2285 = vpop.f32.mrf.mxu0
        %v2286 = vadd.f32 0.0, %v2285
        %v2287 = vpop.f32.mrf.mxu0
        %2288 = vmatprep.mubr.bf16.mxu0 0
        %2289 = vmatmul.mubr.bf16.gmra.mxu0 %v2140
        %v2290 = vpop.f32.mrf.mxu0
        %v2291 = vadd.f32 0.0, %v2290
        %v2292 = vpop.f32.mrf.mxu0
        %v2293 = vpop.f32.mrf.mxu0
        %v2294 = vadd.f32 0.0, %v2293
        %v2295 = vpop.f32.mrf.mxu0
        %2296 = vmatprep.mubr.bf16.mxu0 0
        %2297 = vmatmul.mubr.bf16.gmra.mxu0 %v2143
        %v2298 = vpop.f32.mrf.mxu0
        %v2299 = vadd.f32 0.0, %v2298
        %v2300 = vpop.f32.mrf.mxu0
        %v2301 = vpop.f32.mrf.mxu0
        %v2302 = vadd.f32 0.0, %v2301
        %v2303 = vpop.f32.mrf.mxu0
        %2304 = vmatprep.mubr.bf16.mxu0 0
        %2305 = vmatmul.mubr.bf16.gmra.mxu0 %v2146
        %v2306 = vpop.f32.mrf.mxu0
        %v2307 = vadd.f32 0.0, %v2306
        %v2308 = vpop.f32.mrf.mxu0
        %v2309 = vpop.f32.mrf.mxu0
        %v2310 = vadd.f32 0.0, %v2309
        %v2311 = vpop.f32.mrf.mxu0
        %2312 = vmatprep.mubr.bf16.mxu0 0
        %2313 = vmatmul.mubr.bf16.gmra.mxu0 %v2149
        %v2314 = vpop.f32.mrf.mxu0
        %v2315 = vadd.f32 0.0, %v2314
        %v2316 = vpop.f32.mrf.mxu0
        %v2317 = vpop.f32.mrf.mxu0
        %v2318 = vadd.f32 0.0, %v2317
        %v2319 = vpop.f32.mrf.mxu0
        %2320 = vmatprep.mubr.bf16.mxu0 0
        %2321 = vmatmul.mubr.bf16.gmra.mxu0 %v2152
        %v2322 = vpop.f32.mrf.mxu0
        %v2323 = vadd.f32 0.0, %v2322
        %v2324 = vpop.f32.mrf.mxu0
        %v2325 = vpop.f32.mrf.mxu0
        %v2326 = vadd.f32 0.0, %v2325
        %v2327 = vpop.f32.mrf.mxu0
        %2328 = vmatprep.mubr.bf16.mxu0 0
        %2329 = vmatmul.mubr.bf16.gmra.mxu0 %v2155
        %v2330 = vpop.f32.mrf.mxu0
        %v2331 = vadd.f32 0.0, %v2330
        %v2332 = vpop.f32.mrf.mxu0
        %v2333 = vpop.f32.mrf.mxu0
        %v2334 = vadd.f32 0.0, %v2333
        %v2335 = vpop.f32.mrf.mxu0
        %2336 = vdwg.mxu0
        %v2337 = vadd.f32 %v1898, %v2195
        %v2338 = vadd.f32 %v1899, %v2198
        %v2339 = vadd.f32 %v1900, %v2203
        %v2340 = vadd.f32 %v1901, %v2206
        %v2341 = vadd.f32 %v1902, %v2211
        %v2342 = vadd.f32 %v1903, %v2214
        %v2343 = vadd.f32 %v1904, %v2219
        %v2344 = vadd.f32 %v1905, %v2222
        %v2345 = vadd.f32 %v1906, %v2227
        %v2346 = vadd.f32 %v1907, %v2230
        %v2347 = vadd.f32 %v1908, %v2235
        %v2348 = vadd.f32 %v1909, %v2238
        %v2349 = vadd.f32 %v1910, %v2243
        %v2350 = vadd.f32 %v1911, %v2246
        %v2351 = vadd.f32 %v1912, %v2251
        %v2352 = vadd.f32 %v1913, %v2254
        %v2353 = vadd.f32 %v1914, %v2259
        %v2354 = vadd.f32 %v1915, %v2262
        %v2355 = vadd.f32 %v1916, %v2267
        %v2356 = vadd.f32 %v1917, %v2270
        %v2357 = vadd.f32 %v1918, %v2275
        %v2358 = vadd.f32 %v1919, %v2278
        %v2359 = vadd.f32 %v1920, %v2283
        %v2360 = vadd.f32 %v1921, %v2286
        %v2361 = vadd.f32 %v1922, %v2291
        %v2362 = vadd.f32 %v1923, %v2294
        %v2363 = vadd.f32 %v1924, %v2299
        %v2364 = vadd.f32 %v1925, %v2302
        %v2365 = vadd.f32 %v1926, %v2307
        %v2366 = vadd.f32 %v1927, %v2310
        %v2367 = vadd.f32 %v1928, %v2315
        %v2368 = vadd.f32 %v1929, %v2318
        %v2369 = vadd.f32 %v1930, %v2323
        %v2370 = vadd.f32 %v1931, %v2326
        %v2371 = vadd.f32 %v1932, %v2331
        %v2372 = vadd.f32 %v1933, %v2334
        %2373 = vst [vmem:[#allocation2] sm:$0xff] %v2337
        %2374 = vst [vmem:[#allocation2 + $0x8] sm:$0xff] %v2338
        %2375 = vst [vmem:[#allocation2 + $0x10] sm:$0xff] %v2339
        %2376 = vst [vmem:[#allocation2 + $0x18] sm:$0xff] %v2340
        %2377 = vst [vmem:[#allocation2 + $0x20] sm:$0xff] %v2341
        %2378 = vst [vmem:[#allocation2 + $0x28] sm:$0xff] %v2342
        %2379 = vst [vmem:[#allocation2 + $0x30] sm:$0xff] %v2343
        %2380 = vst [vmem:[#allocation2 + $0x38] sm:$0xff] %v2344
        %2381 = vst [vmem:[#allocation2 + $0x40] sm:$0xff] %v2345
        %2382 = vst [vmem:[#allocation2 + $0x48] sm:$0xff] %v2346
        %2383 = vst [vmem:[#allocation2 + $0x50] sm:$0xff] %v2347
        %2384 = vst [vmem:[#allocation2 + $0x58] sm:$0xff] %v2348
        %2385 = vst [vmem:[#allocation2 + $0x60] sm:$0xff] %v2349
        %2386 = vst [vmem:[#allocation2 + $0x68] sm:$0xff] %v2350
        %2387 = vst [vmem:[#allocation2 + $0x70] sm:$0xff] %v2351
        %2388 = vst [vmem:[#allocation2 + $0x78] sm:$0xff] %v2352
        %2389 = vst [vmem:[#allocation2 + $0x80] sm:$0xff] %v2353
        %2390 = vst [vmem:[#allocation2 + $0x88] sm:$0xff] %v2354
        %2391 = vst [vmem:[#allocation2 + $0x90] sm:$0xff] %v2355
        %2392 = vst [vmem:[#allocation2 + $0x98] sm:$0xff] %v2356
        %2393 = vst [vmem:[#allocation2 + $0xa0] sm:$0xff] %v2357
        %2394 = vst [vmem:[#allocation2 + $0xa8] sm:$0xff] %v2358
        %2395 = vst [vmem:[#allocation2 + $0xb0] sm:$0xff] %v2359
        %2396 = vst [vmem:[#allocation2 + $0xb8] sm:$0xff] %v2360
        %2397 = vst [vmem:[#allocation2 + $0xc0] sm:$0xff] %v2361
        %2398 = vst [vmem:[#allocation2 + $0xc8] sm:$0xff] %v2362
        %2399 = vst [vmem:[#allocation2 + $0xd0] sm:$0xff] %v2363
        %2400 = vst [vmem:[#allocation2 + $0xd8] sm:$0xff] %v2364
        %2401 = vst [vmem:[#allocation2 + $0xe0] sm:$0xff] %v2365
        %2402 = vst [vmem:[#allocation2 + $0xe8] sm:$0xff] %v2366
        %2403 = vst [vmem:[#allocation2 + $0xf0] sm:$0xff] %v2367
        %2404 = vst [vmem:[#allocation2 + $0xf8] sm:$0xff] %v2368
        %2405 = vst [vmem:[#allocation2 + $0x100] sm:$0xff] %v2369
        %2406 = vst [vmem:[#allocation2 + $0x108] sm:$0xff] %v2370
        %2407 = vst [vmem:[#allocation2 + $0x110] sm:$0xff] %v2371
        %2408 = vst [vmem:[#allocation2 + $0x118] sm:$0xff] %v2372
        %v2409 = vld [vmem:[#allocation2] sm:$0xff]
        %v2410 = vld [vmem:[#allocation2 + $0x8] sm:$0xff]
        %v2411 = vld [vmem:[#allocation2 + $0x10] sm:$0xff]
        %v2412 = vld [vmem:[#allocation2 + $0x18] sm:$0xff]
        %v2413 = vld [vmem:[#allocation2 + $0x20] sm:$0xff]
        %v2414 = vld [vmem:[#allocation2 + $0x28] sm:$0xff]
        %v2415 = vld [vmem:[#allocation2 + $0x30] sm:$0xff]
        %v2416 = vld [vmem:[#allocation2 + $0x38] sm:$0xff]
        %v2417 = vld [vmem:[#allocation2 + $0x40] sm:$0xff]
        %v2418 = vld [vmem:[#allocation2 + $0x48] sm:$0xff]
        %v2419 = vld [vmem:[#allocation2 + $0x50] sm:$0xff]
        %v2420 = vld [vmem:[#allocation2 + $0x58] sm:$0xff]
        %v2421 = vld [vmem:[#allocation2 + $0x60] sm:$0xff]
        %v2422 = vld [vmem:[#allocation2 + $0x68] sm:$0xff]
        %v2423 = vld [vmem:[#allocation2 + $0x70] sm:$0xff]
        %v2424 = vld [vmem:[#allocation2 + $0x78] sm:$0xff]
        %v2425 = vld [vmem:[#allocation2 + $0x80] sm:$0xff]
        %v2426 = vld [vmem:[#allocation2 + $0x88] sm:$0xff]
        %v2427 = vld [vmem:[#allocation2 + $0x90] sm:$0xff]
        %v2428 = vld [vmem:[#allocation2 + $0x98] sm:$0xff]
        %v2429 = vld [vmem:[#allocation2 + $0xa0] sm:$0xff]
        %v2430 = vld [vmem:[#allocation2 + $0xa8] sm:$0xff]
        %v2431 = vld [vmem:[#allocation2 + $0xb0] sm:$0xff]
        %v2432 = vld [vmem:[#allocation2 + $0xb8] sm:$0xff]
        %v2433 = vld [vmem:[#allocation2 + $0xc0] sm:$0xff]
        %v2434 = vld [vmem:[#allocation2 + $0xc8] sm:$0xff]
        %v2435 = vld [vmem:[#allocation2 + $0xd0] sm:$0xff]
        %v2436 = vld [vmem:[#allocation2 + $0xd8] sm:$0xff]
        %v2437 = vld [vmem:[#allocation2 + $0xe0] sm:$0xff]
        %v2438 = vld [vmem:[#allocation2 + $0xe8] sm:$0xff]
        %v2439 = vld [vmem:[#allocation2 + $0xf0] sm:$0xff]
        %v2440 = vld [vmem:[#allocation2 + $0xf8] sm:$0xff]
        %v2441 = vld [vmem:[#allocation2 + $0x100] sm:$0xff]
        %v2442 = vld [vmem:[#allocation2 + $0x108] sm:$0xff]
        %v2443 = vld [vmem:[#allocation2 + $0x110] sm:$0xff]
        %v2444 = vld [vmem:[#allocation2 + $0x118] sm:$0xff]
        %v2445 = vld [vmem:[%s244 + $0x8] sm:$0xe]
        %v2446 = vld [vmem:[%s244 + $0xc] sm:$0xf]
        %v2447 = vld [vmem:[%s244 + $0x10] sm:$0xf]
        %v2448 = vld [vmem:[%s244 + $0x14] sm:$0xf]
        %v2449 = vld [vmem:[%s244 + $0x18] sm:$0xf]
        %v2450 = vld [vmem:[%s244 + $0x1c] sm:$0xf]
        %v2451 = vld [vmem:[%s244 + $0x20] sm:$0xf]
        %v2452 = vld [vmem:[%s244 + $0x24] sm:$0xf]
        %v2453 = vld [vmem:[%s244 + $0x28] sm:$0xf]
        %v2454 = vld [vmem:[%s244 + $0x2c] sm:$0xf]
        %v2455 = vld [vmem:[%s244 + $0x30] sm:$0xf]
        %v2456 = vld [vmem:[%s244 + $0x34] sm:$0xf]
        %v2457 = vld [vmem:[%s244 + $0x38] sm:$0xf]
        %v2458 = vld [vmem:[%s244 + $0x3c] sm:$0xf]
        %v2459 = vld [vmem:[%s244 + $0x40] sm:$0xf]
        %v2460 = vld [vmem:[%s244 + $0x44] sm:$0xf]
        %v2461 = vld [vmem:[%s244 + $0x48] sm:$0xf]
        %v2462 = vld [vmem:[%s244 + $0x4c] sm:$0xf]
        %v2463 = vld [vmem:[%s244 + $0x50] sm:$0xf]
        %v2464 = vld [vmem:[%s244 + $0x54] sm:$0xf]
        %v2465 = vld [vmem:[%s244 + $0x58] sm:$0xf]
        %v2466 = vld [vmem:[%s244 + $0x5c] sm:$0xf]
        %v2467 = vld [vmem:[%s244 + $0x60] sm:$0xf]
        %v2468 = vld [vmem:[%s244 + $0x64] sm:$0xf]
        %v2469 = vld [vmem:[%s244 + $0x68] sm:$0xf]
        %v2470 = vld [vmem:[%s244 + $0x6c] sm:$0xf]
        %v2471 = vld [vmem:[%s244 + $0x70] sm:$0xf]
        %v2472 = vld [vmem:[%s244 + $0x74] sm:$0xf]
        %v2473 = vld [vmem:[%s244 + $0x78] sm:$0xf]
        %v2474 = vld [vmem:[%s244 + $0x7c] sm:$0xf]
        %v2475 = vld [vmem:[%s244 + $0x80] sm:$0xf]
        %v2476 = vld [vmem:[%s244 + $0x84] sm:$0xf]
        %v2477 = vld [vmem:[%s244 + $0x88] sm:$0xf]
        %v2478 = vld [vmem:[%s244 + $0x8c] sm:$0xf]
        %v2479 = vld [vmem:[%s244 + $0x90] sm:$0xf]
        %v2480 = vld [vmem:[%s244 + $0x94] sm:$0xf]
        %v2481 = vld [vmem:[%s244 + $0x98] sm:$0x3]
        %s2482 = scalar_lea.vmem %s248, 16
        %v2483 = vld [vmem:[%s2482] sm:$0xf]
        %v2521 = vunpack.c.l.b16 %v2445
        %v2522 = vunpack.c.l.b16 %v2446
        %v2523 = vunpack.c.l.b16 %v2447
        %v2524 = vunpack.c.l.b16 %v2448
        %v2525 = vunpack.c.l.b16 %v2449
        %v2526 = vunpack.c.l.b16 %v2450
        %v2527 = vunpack.c.l.b16 %v2451
        %v2528 = vunpack.c.l.b16 %v2452
        %v2529 = vunpack.c.l.b16 %v2453
        %v2530 = vunpack.c.l.b16 %v2454
        %v2531 = vunpack.c.l.b16 %v2455
        %v2532 = vunpack.c.l.b16 %v2456
        %v2533 = vunpack.c.l.b16 %v2457
        %v2534 = vunpack.c.l.b16 %v2458
        %v2535 = vunpack.c.l.b16 %v2459
        %v2536 = vunpack.c.l.b16 %v2460
        %v2537 = vunpack.c.l.b16 %v2461
        %v2538 = vunpack.c.l.b16 %v2462
        %v2539 = vunpack.c.l.b16 %v2463
        %v2540 = vunpack.c.l.b16 %v2464
        %v2541 = vunpack.c.l.b16 %v2465
        %v2542 = vunpack.c.l.b16 %v2466
        %v2543 = vunpack.c.l.b16 %v2467
        %v2544 = vunpack.c.l.b16 %v2468
        %v2545 = vunpack.c.l.b16 %v2469
        %v2546 = vunpack.c.l.b16 %v2470
        %v2547 = vunpack.c.l.b16 %v2471
        %v2548 = vunpack.c.l.b16 %v2472
        %v2549 = vunpack.c.l.b16 %v2473
        %v2550 = vunpack.c.l.b16 %v2474
        %v2551 = vunpack.c.l.b16 %v2475
        %v2552 = vunpack.c.l.b16 %v2476
        %v2553 = vunpack.c.l.b16 %v2477
        %v2554 = vunpack.c.l.b16 %v2478
        %v2555 = vunpack.c.l.b16 %v2479
        %v2556 = vunpack.c.l.b16 %v2480
        %v2557 = vunpack.c.l.b16 %v2481
        %v2558 = vpack.c.b16 %v2522, %v2521
        %v2559 = vpack.c.b16 %v2524, %v2523
        %v2560 = vpack.c.b16 %v2526, %v2525
        %v2561 = vpack.c.b16 %v2528, %v2527
        %v2562 = vpack.c.b16 %v2530, %v2529
        %v2563 = vpack.c.b16 %v2532, %v2531
        %v2564 = vpack.c.b16 %v2534, %v2533
        %v2565 = vpack.c.b16 %v2536, %v2535
        %v2566 = vpack.c.b16 %v2538, %v2537
        %v2567 = vpack.c.b16 %v2540, %v2539
        %v2568 = vpack.c.b16 %v2542, %v2541
        %v2569 = vpack.c.b16 %v2544, %v2543
        %v2570 = vpack.c.b16 %v2546, %v2545
        %v2571 = vpack.c.b16 %v2548, %v2547
        %v2572 = vpack.c.b16 %v2550, %v2549
        %v2573 = vpack.c.b16 %v2552, %v2551
        %v2574 = vpack.c.b16 %v2554, %v2553
        %v2575 = vpack.c.b16 %v2556, %v2555
        %v2576 = vpack.c.b16 %v2557, %v2557
        %vm2577 = vsmask.f32 6400
        %v2579 = vshrl.u32 %v2558, 16
        %v2581 = vrot.slane %v2579, 1
        %v2582 = vshll.u32 %v2558, 16
        %v2584 = vrot.slane %v2582, 2
        %v2585 = vor.u32 %v2581, %v2584
        %v2587 = vshrl.u32 %v2559, 16
        %v2589 = vrot.slane %v2587, 1
        %v2590 = vshll.u32 %v2559, 16
        %v2592 = vrot.slane %v2590, 2
        %v2593 = vor.u32 %v2589, %v2592
        %v2594 = vsel %vm2577, %v2585, %v2593
        %v2596 = vshrl.u32 %v2560, 16
        %v2598 = vrot.slane %v2596, 1
        %v2599 = vshll.u32 %v2560, 16
        %v2601 = vrot.slane %v2599, 2
        %v2602 = vor.u32 %v2598, %v2601
        %v2603 = vsel %vm2577, %v2593, %v2602
        %v2605 = vshrl.u32 %v2561, 16
        %v2607 = vrot.slane %v2605, 1
        %v2608 = vshll.u32 %v2561, 16
        %v2610 = vrot.slane %v2608, 2
        %v2611 = vor.u32 %v2607, %v2610
        %v2612 = vsel %vm2577, %v2602, %v2611
        %v2614 = vshrl.u32 %v2562, 16
        %v2616 = vrot.slane %v2614, 1
        %v2617 = vshll.u32 %v2562, 16
        %v2619 = vrot.slane %v2617, 2
        %v2620 = vor.u32 %v2616, %v2619
        %v2621 = vsel %vm2577, %v2611, %v2620
        %v2623 = vshrl.u32 %v2563, 16
        %v2625 = vrot.slane %v2623, 1
        %v2626 = vshll.u32 %v2563, 16
        %v2628 = vrot.slane %v2626, 2
        %v2629 = vor.u32 %v2625, %v2628
        %v2630 = vsel %vm2577, %v2620, %v2629
        %v2632 = vshrl.u32 %v2564, 16
        %v2634 = vrot.slane %v2632, 1
        %v2635 = vshll.u32 %v2564, 16
        %v2637 = vrot.slane %v2635, 2
        %v2638 = vor.u32 %v2634, %v2637
        %v2639 = vsel %vm2577, %v2629, %v2638
        %v2641 = vshrl.u32 %v2565, 16
        %v2643 = vrot.slane %v2641, 1
        %v2644 = vshll.u32 %v2565, 16
        %v2646 = vrot.slane %v2644, 2
        %v2647 = vor.u32 %v2643, %v2646
        %v2648 = vsel %vm2577, %v2638, %v2647
        %v2650 = vshrl.u32 %v2566, 16
        %v2652 = vrot.slane %v2650, 1
        %v2653 = vshll.u32 %v2566, 16
        %v2655 = vrot.slane %v2653, 2
        %v2656 = vor.u32 %v2652, %v2655
        %v2657 = vsel %vm2577, %v2647, %v2656
        %v2659 = vshrl.u32 %v2567, 16
        %v2661 = vrot.slane %v2659, 1
        %v2662 = vshll.u32 %v2567, 16
        %v2664 = vrot.slane %v2662, 2
        %v2665 = vor.u32 %v2661, %v2664
        %v2666 = vsel %vm2577, %v2656, %v2665
        %v2668 = vshrl.u32 %v2568, 16
        %v2670 = vrot.slane %v2668, 1
        %v2671 = vshll.u32 %v2568, 16
        %v2673 = vrot.slane %v2671, 2
        %v2674 = vor.u32 %v2670, %v2673
        %v2675 = vsel %vm2577, %v2665, %v2674
        %v2677 = vshrl.u32 %v2569, 16
        %v2679 = vrot.slane %v2677, 1
        %v2680 = vshll.u32 %v2569, 16
        %v2682 = vrot.slane %v2680, 2
        %v2683 = vor.u32 %v2679, %v2682
        %v2684 = vsel %vm2577, %v2674, %v2683
        %v2686 = vshrl.u32 %v2570, 16
        %v2688 = vrot.slane %v2686, 1
        %v2689 = vshll.u32 %v2570, 16
        %v2691 = vrot.slane %v2689, 2
        %v2692 = vor.u32 %v2688, %v2691
        %v2693 = vsel %vm2577, %v2683, %v2692
        %v2695 = vshrl.u32 %v2571, 16
        %v2697 = vrot.slane %v2695, 1
        %v2698 = vshll.u32 %v2571, 16
        %v2700 = vrot.slane %v2698, 2
        %v2701 = vor.u32 %v2697, %v2700
        %v2702 = vsel %vm2577, %v2692, %v2701
        %v2704 = vshrl.u32 %v2572, 16
        %v2706 = vrot.slane %v2704, 1
        %v2707 = vshll.u32 %v2572, 16
        %v2709 = vrot.slane %v2707, 2
        %v2710 = vor.u32 %v2706, %v2709
        %v2711 = vsel %vm2577, %v2701, %v2710
        %v2713 = vshrl.u32 %v2573, 16
        %v2715 = vrot.slane %v2713, 1
        %v2716 = vshll.u32 %v2573, 16
        %v2718 = vrot.slane %v2716, 2
        %v2719 = vor.u32 %v2715, %v2718
        %v2720 = vsel %vm2577, %v2710, %v2719
        %v2722 = vshrl.u32 %v2574, 16
        %v2724 = vrot.slane %v2722, 1
        %v2725 = vshll.u32 %v2574, 16
        %v2727 = vrot.slane %v2725, 2
        %v2728 = vor.u32 %v2724, %v2727
        %v2729 = vsel %vm2577, %v2719, %v2728
        %v2731 = vshrl.u32 %v2575, 16
        %v2733 = vrot.slane %v2731, 1
        %v2734 = vshll.u32 %v2575, 16
        %v2736 = vrot.slane %v2734, 2
        %v2737 = vor.u32 %v2733, %v2736
        %v2738 = vsel %vm2577, %v2728, %v2737
        %v2740 = vshrl.u32 %v2576, 16
        %v2742 = vrot.slane %v2740, 1
        %v2743 = vshll.u32 %v2576, 16
        %v2745 = vrot.slane %v2743, 2
        %v2746 = vor.u32 %v2742, %v2745
        %v2747 = vsel %vm2577, %v2737, %v2746
        %v2749 = vsel %vm455, %v2594, 0
        %v2752 = vsel %vm455, %v2603, 0
        %v2755 = vsel %vm455, %v2612, 0
        %v2758 = vsel %vm455, %v2621, 0
        %v2761 = vsel %vm455, %v2630, 0
        %v2764 = vsel %vm455, %v2639, 0
        %v2767 = vsel %vm455, %v2648, 0
        %v2770 = vsel %vm455, %v2657, 0
        %v2773 = vsel %vm455, %v2666, 0
        %v2776 = vsel %vm455, %v2675, 0
        %v2779 = vsel %vm455, %v2684, 0
        %v2782 = vsel %vm455, %v2693, 0
        %v2785 = vsel %vm455, %v2702, 0
        %v2788 = vsel %vm455, %v2711, 0
        %v2791 = vsel %vm455, %v2720, 0
        %v2794 = vsel %vm455, %v2729, 0
        %v2797 = vsel %vm455, %v2738, 0
        %v2800 = vsel %vm455, %v2747, 0
        %v2803 = vsel %vm510, %v2483, 0
        %2805 = vmatprep.subr.bf16.mxu0 0
        %2806 = vmatpush1.bf16.msra.mxu0 0
        %2807 = vmatprep.subr.bf16.mxu0 0
        %2808 = vmatpush1.bf16.msra.mxu0 0
        %2809 = vmatprep.subr.bf16.mxu0 0
        %2810 = vmatpush1.bf16.msra.mxu0 0
        %2811 = vmatprep.subr.bf16.mxu0 0
        %2812 = vmatpush1.bf16.msra.mxu0 0
        %2813 = vmatprep.subr.bf16.mxu0 0
        %2814 = vmatpush1.bf16.msra.mxu0 0
        %2815 = vmatprep.subr.bf16.mxu0 0
        %2816 = vmatpush1.bf16.msra.mxu0 0
        %2817 = vmatprep.subr.bf16.mxu0 0
        %2818 = vmatpush1.bf16.msra.mxu0 0
        %2819 = vmatprep.subr.bf16.mxu0 0
        %2820 = vmatpush1.bf16.msra.mxu0 %v2803
        %2821 = vmatprep.subr.bf16.mxu0 0
        %2822 = vmatpush2.bf16.msra.mxu0 0
        %2823 = vmatprep.subr.bf16.mxu0 0
        %2824 = vmatpush2.bf16.msra.mxu0 0
        %2825 = vmatprep.subr.bf16.mxu0 0
        %2826 = vmatpush2.bf16.msra.mxu0 0
        %2827 = vmatprep.subr.bf16.mxu0 0
        %2828 = vmatpush2.bf16.msra.mxu0 0
        %2829 = vmatprep.subr.bf16.mxu0 0
        %2830 = vmatpush2.bf16.msra.mxu0 0
        %2831 = vmatprep.subr.bf16.mxu0 0
        %2832 = vmatpush2.bf16.msra.mxu0 0
        %2833 = vmatprep.subr.bf16.mxu0 0
        %2834 = vmatpush2.bf16.msra.mxu0 0
        %2835 = vmatprep.subr.bf16.mxu0 0
        %2836 = vmatpush2.bf16.msra.mxu0 0
        %2837 = vmatprep.mubr.bf16.mxu0 0
        %2838 = vmatmul.mubr.bf16.gmra.mxu0 %v2749
        %v2839 = vpop.f32.mrf.mxu0
        %v2840 = vadd.f32 0.0, %v2839
        %v2841 = vpop.f32.mrf.mxu0
        %v2842 = vpop.f32.mrf.mxu0
        %v2843 = vadd.f32 0.0, %v2842
        %v2844 = vpop.f32.mrf.mxu0
        %2845 = vmatprep.mubr.bf16.mxu0 0
        %2846 = vmatmul.mubr.bf16.gmra.mxu0 %v2752
        %v2847 = vpop.f32.mrf.mxu0
        %v2848 = vadd.f32 0.0, %v2847
        %v2849 = vpop.f32.mrf.mxu0
        %v2850 = vpop.f32.mrf.mxu0
        %v2851 = vadd.f32 0.0, %v2850
        %v2852 = vpop.f32.mrf.mxu0
        %2853 = vmatprep.mubr.bf16.mxu0 0
        %2854 = vmatmul.mubr.bf16.gmra.mxu0 %v2755
        %v2855 = vpop.f32.mrf.mxu0
        %v2856 = vadd.f32 0.0, %v2855
        %v2857 = vpop.f32.mrf.mxu0
        %v2858 = vpop.f32.mrf.mxu0
        %v2859 = vadd.f32 0.0, %v2858
        %v2860 = vpop.f32.mrf.mxu0
        %2861 = vmatprep.mubr.bf16.mxu0 0
        %2862 = vmatmul.mubr.bf16.gmra.mxu0 %v2758
        %v2863 = vpop.f32.mrf.mxu0
        %v2864 = vadd.f32 0.0, %v2863
        %v2865 = vpop.f32.mrf.mxu0
        %v2866 = vpop.f32.mrf.mxu0
        %v2867 = vadd.f32 0.0, %v2866
        %v2868 = vpop.f32.mrf.mxu0
        %2869 = vmatprep.mubr.bf16.mxu0 0
        %2870 = vmatmul.mubr.bf16.gmra.mxu0 %v2761
        %v2871 = vpop.f32.mrf.mxu0
        %v2872 = vadd.f32 0.0, %v2871
        %v2873 = vpop.f32.mrf.mxu0
        %v2874 = vpop.f32.mrf.mxu0
        %v2875 = vadd.f32 0.0, %v2874
        %v2876 = vpop.f32.mrf.mxu0
        %2877 = vmatprep.mubr.bf16.mxu0 0
        %2878 = vmatmul.mubr.bf16.gmra.mxu0 %v2764
        %v2879 = vpop.f32.mrf.mxu0
        %v2880 = vadd.f32 0.0, %v2879
        %v2881 = vpop.f32.mrf.mxu0
        %v2882 = vpop.f32.mrf.mxu0
        %v2883 = vadd.f32 0.0, %v2882
        %v2884 = vpop.f32.mrf.mxu0
        %2885 = vmatprep.mubr.bf16.mxu0 0
        %2886 = vmatmul.mubr.bf16.gmra.mxu0 %v2767
        %v2887 = vpop.f32.mrf.mxu0
        %v2888 = vadd.f32 0.0, %v2887
        %v2889 = vpop.f32.mrf.mxu0
        %v2890 = vpop.f32.mrf.mxu0
        %v2891 = vadd.f32 0.0, %v2890
        %v2892 = vpop.f32.mrf.mxu0
        %2893 = vmatprep.mubr.bf16.mxu0 0
        %2894 = vmatmul.mubr.bf16.gmra.mxu0 %v2770
        %v2895 = vpop.f32.mrf.mxu0
        %v2896 = vadd.f32 0.0, %v2895
        %v2897 = vpop.f32.mrf.mxu0
        %v2898 = vpop.f32.mrf.mxu0
        %v2899 = vadd.f32 0.0, %v2898
        %v2900 = vpop.f32.mrf.mxu0
        %2901 = vmatprep.mubr.bf16.mxu0 0
        %2902 = vmatmul.mubr.bf16.gmra.mxu0 %v2773
        %v2903 = vpop.f32.mrf.mxu0
        %v2904 = vadd.f32 0.0, %v2903
        %v2905 = vpop.f32.mrf.mxu0
        %v2906 = vpop.f32.mrf.mxu0
        %v2907 = vadd.f32 0.0, %v2906
        %v2908 = vpop.f32.mrf.mxu0
        %2909 = vmatprep.mubr.bf16.mxu0 0
        %2910 = vmatmul.mubr.bf16.gmra.mxu0 %v2776
        %v2911 = vpop.f32.mrf.mxu0
        %v2912 = vadd.f32 0.0, %v2911
        %v2913 = vpop.f32.mrf.mxu0
        %v2914 = vpop.f32.mrf.mxu0
        %v2915 = vadd.f32 0.0, %v2914
        %v2916 = vpop.f32.mrf.mxu0
        %2917 = vmatprep.mubr.bf16.mxu0 0
        %2918 = vmatmul.mubr.bf16.gmra.mxu0 %v2779
        %v2919 = vpop.f32.mrf.mxu0
        %v2920 = vadd.f32 0.0, %v2919
        %v2921 = vpop.f32.mrf.mxu0
        %v2922 = vpop.f32.mrf.mxu0
        %v2923 = vadd.f32 0.0, %v2922
        %v2924 = vpop.f32.mrf.mxu0
        %2925 = vmatprep.mubr.bf16.mxu0 0
        %2926 = vmatmul.mubr.bf16.gmra.mxu0 %v2782
        %v2927 = vpop.f32.mrf.mxu0
        %v2928 = vadd.f32 0.0, %v2927
        %v2929 = vpop.f32.mrf.mxu0
        %v2930 = vpop.f32.mrf.mxu0
        %v2931 = vadd.f32 0.0, %v2930
        %v2932 = vpop.f32.mrf.mxu0
        %2933 = vmatprep.mubr.bf16.mxu0 0
        %2934 = vmatmul.mubr.bf16.gmra.mxu0 %v2785
        %v2935 = vpop.f32.mrf.mxu0
        %v2936 = vadd.f32 0.0, %v2935
        %v2937 = vpop.f32.mrf.mxu0
        %v2938 = vpop.f32.mrf.mxu0
        %v2939 = vadd.f32 0.0, %v2938
        %v2940 = vpop.f32.mrf.mxu0
        %2941 = vmatprep.mubr.bf16.mxu0 0
        %2942 = vmatmul.mubr.bf16.gmra.mxu0 %v2788
        %v2943 = vpop.f32.mrf.mxu0
        %v2944 = vadd.f32 0.0, %v2943
        %v2945 = vpop.f32.mrf.mxu0
        %v2946 = vpop.f32.mrf.mxu0
        %v2947 = vadd.f32 0.0, %v2946
        %v2948 = vpop.f32.mrf.mxu0
        %2949 = vmatprep.mubr.bf16.mxu0 0
        %2950 = vmatmul.mubr.bf16.gmra.mxu0 %v2791
        %v2951 = vpop.f32.mrf.mxu0
        %v2952 = vadd.f32 0.0, %v2951
        %v2953 = vpop.f32.mrf.mxu0
        %v2954 = vpop.f32.mrf.mxu0
        %v2955 = vadd.f32 0.0, %v2954
        %v2956 = vpop.f32.mrf.mxu0
        %2957 = vmatprep.mubr.bf16.mxu0 0
        %2958 = vmatmul.mubr.bf16.gmra.mxu0 %v2794
        %v2959 = vpop.f32.mrf.mxu0
        %v2960 = vadd.f32 0.0, %v2959
        %v2961 = vpop.f32.mrf.mxu0
        %v2962 = vpop.f32.mrf.mxu0
        %v2963 = vadd.f32 0.0, %v2962
        %v2964 = vpop.f32.mrf.mxu0
        %2965 = vmatprep.mubr.bf16.mxu0 0
        %2966 = vmatmul.mubr.bf16.gmra.mxu0 %v2797
        %v2967 = vpop.f32.mrf.mxu0
        %v2968 = vadd.f32 0.0, %v2967
        %v2969 = vpop.f32.mrf.mxu0
        %v2970 = vpop.f32.mrf.mxu0
        %v2971 = vadd.f32 0.0, %v2970
        %v2972 = vpop.f32.mrf.mxu0
        %2973 = vmatprep.mubr.bf16.mxu0 0
        %2974 = vmatmul.mubr.bf16.gmra.mxu0 %v2800
        %v2975 = vpop.f32.mrf.mxu0
        %v2976 = vadd.f32 0.0, %v2975
        %v2977 = vpop.f32.mrf.mxu0
        %v2978 = vpop.f32.mrf.mxu0
        %v2979 = vadd.f32 0.0, %v2978
        %v2980 = vpop.f32.mrf.mxu0
        %2981 = vdwg.mxu0
        %v2982 = vadd.f32 %v2409, %v2840
        %v2983 = vadd.f32 %v2410, %v2843
        %v2984 = vadd.f32 %v2411, %v2848
        %v2985 = vadd.f32 %v2412, %v2851
        %v2986 = vadd.f32 %v2413, %v2856
        %v2987 = vadd.f32 %v2414, %v2859
        %v2988 = vadd.f32 %v2415, %v2864
        %v2989 = vadd.f32 %v2416, %v2867
        %v2990 = vadd.f32 %v2417, %v2872
        %v2991 = vadd.f32 %v2418, %v2875
        %v2992 = vadd.f32 %v2419, %v2880
        %v2993 = vadd.f32 %v2420, %v2883
        %v2994 = vadd.f32 %v2421, %v2888
        %v2995 = vadd.f32 %v2422, %v2891
        %v2996 = vadd.f32 %v2423, %v2896
        %v2997 = vadd.f32 %v2424, %v2899
        %v2998 = vadd.f32 %v2425, %v2904
        %v2999 = vadd.f32 %v2426, %v2907
        %v3000 = vadd.f32 %v2427, %v2912
        %v3001 = vadd.f32 %v2428, %v2915
        %v3002 = vadd.f32 %v2429, %v2920
        %v3003 = vadd.f32 %v2430, %v2923
        %v3004 = vadd.f32 %v2431, %v2928
        %v3005 = vadd.f32 %v2432, %v2931
        %v3006 = vadd.f32 %v2433, %v2936
        %v3007 = vadd.f32 %v2434, %v2939
        %v3008 = vadd.f32 %v2435, %v2944
        %v3009 = vadd.f32 %v2436, %v2947
        %v3010 = vadd.f32 %v2437, %v2952
        %v3011 = vadd.f32 %v2438, %v2955
        %v3012 = vadd.f32 %v2439, %v2960
        %v3013 = vadd.f32 %v2440, %v2963
        %v3014 = vadd.f32 %v2441, %v2968
        %v3015 = vadd.f32 %v2442, %v2971
        %v3016 = vadd.f32 %v2443, %v2976
        %v3017 = vadd.f32 %v2444, %v2979
        %3018 = vst [vmem:[#allocation2] sm:$0xff] %v2982
        %3019 = vst [vmem:[#allocation2 + $0x8] sm:$0xff] %v2983
        %3020 = vst [vmem:[#allocation2 + $0x10] sm:$0xff] %v2984
        %3021 = vst [vmem:[#allocation2 + $0x18] sm:$0xff] %v2985
        %3022 = vst [vmem:[#allocation2 + $0x20] sm:$0xff] %v2986
        %3023 = vst [vmem:[#allocation2 + $0x28] sm:$0xff] %v2987
        %3024 = vst [vmem:[#allocation2 + $0x30] sm:$0xff] %v2988
        %3025 = vst [vmem:[#allocation2 + $0x38] sm:$0xff] %v2989
        %3026 = vst [vmem:[#allocation2 + $0x40] sm:$0xff] %v2990
        %3027 = vst [vmem:[#allocation2 + $0x48] sm:$0xff] %v2991
        %3028 = vst [vmem:[#allocation2 + $0x50] sm:$0xff] %v2992
        %3029 = vst [vmem:[#allocation2 + $0x58] sm:$0xff] %v2993
        %3030 = vst [vmem:[#allocation2 + $0x60] sm:$0xff] %v2994
        %3031 = vst [vmem:[#allocation2 + $0x68] sm:$0xff] %v2995
        %3032 = vst [vmem:[#allocation2 + $0x70] sm:$0xff] %v2996
        %3033 = vst [vmem:[#allocation2 + $0x78] sm:$0xff] %v2997
        %3034 = vst [vmem:[#allocation2 + $0x80] sm:$0xff] %v2998
        %3035 = vst [vmem:[#allocation2 + $0x88] sm:$0xff] %v2999
        %3036 = vst [vmem:[#allocation2 + $0x90] sm:$0xff] %v3000
        %3037 = vst [vmem:[#allocation2 + $0x98] sm:$0xff] %v3001
        %3038 = vst [vmem:[#allocation2 + $0xa0] sm:$0xff] %v3002
        %3039 = vst [vmem:[#allocation2 + $0xa8] sm:$0xff] %v3003
        %3040 = vst [vmem:[#allocation2 + $0xb0] sm:$0xff] %v3004
        %3041 = vst [vmem:[#allocation2 + $0xb8] sm:$0xff] %v3005
        %3042 = vst [vmem:[#allocation2 + $0xc0] sm:$0xff] %v3006
        %3043 = vst [vmem:[#allocation2 + $0xc8] sm:$0xff] %v3007
        %3044 = vst [vmem:[#allocation2 + $0xd0] sm:$0xff] %v3008
        %3045 = vst [vmem:[#allocation2 + $0xd8] sm:$0xff] %v3009
        %3046 = vst [vmem:[#allocation2 + $0xe0] sm:$0xff] %v3010
        %3047 = vst [vmem:[#allocation2 + $0xe8] sm:$0xff] %v3011
        %3048 = vst [vmem:[#allocation2 + $0xf0] sm:$0xff] %v3012
        %3049 = vst [vmem:[#allocation2 + $0xf8] sm:$0xff] %v3013
        %3050 = vst [vmem:[#allocation2 + $0x100] sm:$0xff] %v3014
        %3051 = vst [vmem:[#allocation2 + $0x108] sm:$0xff] %v3015
        %3052 = vst [vmem:[#allocation2 + $0x110] sm:$0xff] %v3016
        %3053 = vst [vmem:[#allocation2 + $0x118] sm:$0xff] %v3017
        %v3054 = vld [vmem:[#allocation2] sm:$0xff]
        %v3055 = vld [vmem:[#allocation2 + $0x8] sm:$0xff]
        %v3056 = vld [vmem:[#allocation2 + $0x10] sm:$0xff]
        %v3057 = vld [vmem:[#allocation2 + $0x18] sm:$0xff]
        %v3058 = vld [vmem:[#allocation2 + $0x20] sm:$0xff]
        %v3059 = vld [vmem:[#allocation2 + $0x28] sm:$0xff]
        %v3060 = vld [vmem:[#allocation2 + $0x30] sm:$0xff]
        %v3061 = vld [vmem:[#allocation2 + $0x38] sm:$0xff]
        %v3062 = vld [vmem:[#allocation2 + $0x40] sm:$0xff]
        %v3063 = vld [vmem:[#allocation2 + $0x48] sm:$0xff]
        %v3064 = vld [vmem:[#allocation2 + $0x50] sm:$0xff]
        %v3065 = vld [vmem:[#allocation2 + $0x58] sm:$0xff]
        %v3066 = vld [vmem:[#allocation2 + $0x60] sm:$0xff]
        %v3067 = vld [vmem:[#allocation2 + $0x68] sm:$0xff]
        %v3068 = vld [vmem:[#allocation2 + $0x70] sm:$0xff]
        %v3069 = vld [vmem:[#allocation2 + $0x78] sm:$0xff]
        %v3070 = vld [vmem:[#allocation2 + $0x80] sm:$0xff]
        %v3071 = vld [vmem:[#allocation2 + $0x88] sm:$0xff]
        %v3072 = vld [vmem:[#allocation2 + $0x90] sm:$0xff]
        %v3073 = vld [vmem:[#allocation2 + $0x98] sm:$0xff]
        %v3074 = vld [vmem:[#allocation2 + $0xa0] sm:$0xff]
        %v3075 = vld [vmem:[#allocation2 + $0xa8] sm:$0xff]
        %v3076 = vld [vmem:[#allocation2 + $0xb0] sm:$0xff]
        %v3077 = vld [vmem:[#allocation2 + $0xb8] sm:$0xff]
        %v3078 = vld [vmem:[#allocation2 + $0xc0] sm:$0xff]
        %v3079 = vld [vmem:[#allocation2 + $0xc8] sm:$0xff]
        %v3080 = vld [vmem:[#allocation2 + $0xd0] sm:$0xff]
        %v3081 = vld [vmem:[#allocation2 + $0xd8] sm:$0xff]
        %v3082 = vld [vmem:[#allocation2 + $0xe0] sm:$0xff]
        %v3083 = vld [vmem:[#allocation2 + $0xe8] sm:$0xff]
        %v3084 = vld [vmem:[#allocation2 + $0xf0] sm:$0xff]
        %v3085 = vld [vmem:[#allocation2 + $0xf8] sm:$0xff]
        %v3086 = vld [vmem:[#allocation2 + $0x100] sm:$0xff]
        %v3087 = vld [vmem:[#allocation2 + $0x108] sm:$0xff]
        %v3088 = vld [vmem:[#allocation2 + $0x110] sm:$0xff]
        %v3089 = vld [vmem:[#allocation2 + $0x118] sm:$0xff]
        %v3090 = vld [vmem:[%s244 + $0x8] sm:$0xc]
        %v3091 = vld [vmem:[%s244 + $0xc] sm:$0xf]
        %v3092 = vld [vmem:[%s244 + $0x10] sm:$0xf]
        %v3093 = vld [vmem:[%s244 + $0x14] sm:$0xf]
        %v3094 = vld [vmem:[%s244 + $0x18] sm:$0xf]
        %v3095 = vld [vmem:[%s244 + $0x1c] sm:$0xf]
        %v3096 = vld [vmem:[%s244 + $0x20] sm:$0xf]
        %v3097 = vld [vmem:[%s244 + $0x24] sm:$0xf]
        %v3098 = vld [vmem:[%s244 + $0x28] sm:$0xf]
        %v3099 = vld [vmem:[%s244 + $0x2c] sm:$0xf]
        %v3100 = vld [vmem:[%s244 + $0x30] sm:$0xf]
        %v3101 = vld [vmem:[%s244 + $0x34] sm:$0xf]
        %v3102 = vld [vmem:[%s244 + $0x38] sm:$0xf]
        %v3103 = vld [vmem:[%s244 + $0x3c] sm:$0xf]
        %v3104 = vld [vmem:[%s244 + $0x40] sm:$0xf]
        %v3105 = vld [vmem:[%s244 + $0x44] sm:$0xf]
        %v3106 = vld [vmem:[%s244 + $0x48] sm:$0xf]
        %v3107 = vld [vmem:[%s244 + $0x4c] sm:$0xf]
        %v3108 = vld [vmem:[%s244 + $0x50] sm:$0xf]
        %v3109 = vld [vmem:[%s244 + $0x54] sm:$0xf]
        %v3110 = vld [vmem:[%s244 + $0x58] sm:$0xf]
        %v3111 = vld [vmem:[%s244 + $0x5c] sm:$0xf]
        %v3112 = vld [vmem:[%s244 + $0x60] sm:$0xf]
        %v3113 = vld [vmem:[%s244 + $0x64] sm:$0xf]
        %v3114 = vld [vmem:[%s244 + $0x68] sm:$0xf]
        %v3115 = vld [vmem:[%s244 + $0x6c] sm:$0xf]
        %v3116 = vld [vmem:[%s244 + $0x70] sm:$0xf]
        %v3117 = vld [vmem:[%s244 + $0x74] sm:$0xf]
        %v3118 = vld [vmem:[%s244 + $0x78] sm:$0xf]
        %v3119 = vld [vmem:[%s244 + $0x7c] sm:$0xf]
        %v3120 = vld [vmem:[%s244 + $0x80] sm:$0xf]
        %v3121 = vld [vmem:[%s244 + $0x84] sm:$0xf]
        %v3122 = vld [vmem:[%s244 + $0x88] sm:$0xf]
        %v3123 = vld [vmem:[%s244 + $0x8c] sm:$0xf]
        %v3124 = vld [vmem:[%s244 + $0x90] sm:$0xf]
        %v3125 = vld [vmem:[%s244 + $0x94] sm:$0xf]
        %v3126 = vld [vmem:[%s244 + $0x98] sm:$0x3]
        %s3127 = scalar_lea.vmem %s248, 20
        %v3128 = vld [vmem:[%s3127] sm:$0xf]
        %v3166 = vunpack.c.l.b16 %v3090
        %v3167 = vunpack.c.l.b16 %v3091
        %v3168 = vunpack.c.l.b16 %v3092
        %v3169 = vunpack.c.l.b16 %v3093
        %v3170 = vunpack.c.l.b16 %v3094
        %v3171 = vunpack.c.l.b16 %v3095
        %v3172 = vunpack.c.l.b16 %v3096
        %v3173 = vunpack.c.l.b16 %v3097
        %v3174 = vunpack.c.l.b16 %v3098
        %v3175 = vunpack.c.l.b16 %v3099
        %v3176 = vunpack.c.l.b16 %v3100
        %v3177 = vunpack.c.l.b16 %v3101
        %v3178 = vunpack.c.l.b16 %v3102
        %v3179 = vunpack.c.l.b16 %v3103
        %v3180 = vunpack.c.l.b16 %v3104
        %v3181 = vunpack.c.l.b16 %v3105
        %v3182 = vunpack.c.l.b16 %v3106
        %v3183 = vunpack.c.l.b16 %v3107
        %v3184 = vunpack.c.l.b16 %v3108
        %v3185 = vunpack.c.l.b16 %v3109
        %v3186 = vunpack.c.l.b16 %v3110
        %v3187 = vunpack.c.l.b16 %v3111
        %v3188 = vunpack.c.l.b16 %v3112
        %v3189 = vunpack.c.l.b16 %v3113
        %v3190 = vunpack.c.l.b16 %v3114
        %v3191 = vunpack.c.l.b16 %v3115
        %v3192 = vunpack.c.l.b16 %v3116
        %v3193 = vunpack.c.l.b16 %v3117
        %v3194 = vunpack.c.l.b16 %v3118
        %v3195 = vunpack.c.l.b16 %v3119
        %v3196 = vunpack.c.l.b16 %v3120
        %v3197 = vunpack.c.l.b16 %v3121
        %v3198 = vunpack.c.l.b16 %v3122
        %v3199 = vunpack.c.l.b16 %v3123
        %v3200 = vunpack.c.l.b16 %v3124
        %v3201 = vunpack.c.l.b16 %v3125
        %v3202 = vunpack.c.l.b16 %v3126
        %v3203 = vpack.c.b16 %v3167, %v3166
        %v3204 = vpack.c.b16 %v3169, %v3168
        %v3205 = vpack.c.b16 %v3171, %v3170
        %v3206 = vpack.c.b16 %v3173, %v3172
        %v3207 = vpack.c.b16 %v3175, %v3174
        %v3208 = vpack.c.b16 %v3177, %v3176
        %v3209 = vpack.c.b16 %v3179, %v3178
        %v3210 = vpack.c.b16 %v3181, %v3180
        %v3211 = vpack.c.b16 %v3183, %v3182
        %v3212 = vpack.c.b16 %v3185, %v3184
        %v3213 = vpack.c.b16 %v3187, %v3186
        %v3214 = vpack.c.b16 %v3189, %v3188
        %v3215 = vpack.c.b16 %v3191, %v3190
        %v3216 = vpack.c.b16 %v3193, %v3192
        %v3217 = vpack.c.b16 %v3195, %v3194
        %v3218 = vpack.c.b16 %v3197, %v3196
        %v3219 = vpack.c.b16 %v3199, %v3198
        %v3220 = vpack.c.b16 %v3201, %v3200
        %v3221 = vpack.c.b16 %v3202, %v3202
        %vm3222 = vcmask 1045504
        %v3223 = vrot.slane %v3203, 2
        %v3224 = vrot.slane %v3204, 2
        %v3225 = vsel %vm3222, %v3223, %v3224
        %v3226 = vrot.slane %v3205, 2
        %v3227 = vsel %vm3222, %v3224, %v3226
        %v3228 = vrot.slane %v3206, 2
        %v3229 = vsel %vm3222, %v3226, %v3228
        %v3230 = vrot.slane %v3207, 2
        %v3231 = vsel %vm3222, %v3228, %v3230
        %v3232 = vrot.slane %v3208, 2
        %v3233 = vsel %vm3222, %v3230, %v3232
        %v3234 = vrot.slane %v3209, 2
        %v3235 = vsel %vm3222, %v3232, %v3234
        %v3236 = vrot.slane %v3210, 2
        %v3237 = vsel %vm3222, %v3234, %v3236
        %v3238 = vrot.slane %v3211, 2
        %v3239 = vsel %vm3222, %v3236, %v3238
        %v3240 = vrot.slane %v3212, 2
        %v3241 = vsel %vm3222, %v3238, %v3240
        %v3242 = vrot.slane %v3213, 2
        %v3243 = vsel %vm3222, %v3240, %v3242
        %v3244 = vrot.slane %v3214, 2
        %v3245 = vsel %vm3222, %v3242, %v3244
        %v3246 = vrot.slane %v3215, 2
        %v3247 = vsel %vm3222, %v3244, %v3246
        %v3248 = vrot.slane %v3216, 2
        %v3249 = vsel %vm3222, %v3246, %v3248
        %v3250 = vrot.slane %v3217, 2
        %v3251 = vsel %vm3222, %v3248, %v3250
        %v3252 = vrot.slane %v3218, 2
        %v3253 = vsel %vm3222, %v3250, %v3252
        %v3254 = vrot.slane %v3219, 2
        %v3255 = vsel %vm3222, %v3252, %v3254
        %v3256 = vrot.slane %v3220, 2
        %v3257 = vsel %vm3222, %v3254, %v3256
        %v3258 = vrot.slane %v3221, 2
        %v3259 = vsel %vm3222, %v3256, %v3258
        %v3261 = vsel %vm455, %v3225, 0
        %v3264 = vsel %vm455, %v3227, 0
        %v3267 = vsel %vm455, %v3229, 0
        %v3270 = vsel %vm455, %v3231, 0
        %v3273 = vsel %vm455, %v3233, 0
        %v3276 = vsel %vm455, %v3235, 0
        %v3279 = vsel %vm455, %v3237, 0
        %v3282 = vsel %vm455, %v3239, 0
        %v3285 = vsel %vm455, %v3241, 0
        %v3288 = vsel %vm455, %v3243, 0
        %v3291 = vsel %vm455, %v3245, 0
        %v3294 = vsel %vm455, %v3247, 0
        %v3297 = vsel %vm455, %v3249, 0
        %v3300 = vsel %vm455, %v3251, 0
        %v3303 = vsel %vm455, %v3253, 0
        %v3306 = vsel %vm455, %v3255, 0
        %v3309 = vsel %vm455, %v3257, 0
        %v3312 = vsel %vm455, %v3259, 0
        %v3315 = vsel %vm510, %v3128, 0
        %3317 = vmatprep.subr.bf16.mxu0 0
        %3318 = vmatpush1.bf16.msra.mxu0 0
        %3319 = vmatprep.subr.bf16.mxu0 0
        %3320 = vmatpush1.bf16.msra.mxu0 0
        %3321 = vmatprep.subr.bf16.mxu0 0
        %3322 = vmatpush1.bf16.msra.mxu0 0
        %3323 = vmatprep.subr.bf16.mxu0 0
        %3324 = vmatpush1.bf16.msra.mxu0 0
        %3325 = vmatprep.subr.bf16.mxu0 0
        %3326 = vmatpush1.bf16.msra.mxu0 0
        %3327 = vmatprep.subr.bf16.mxu0 0
        %3328 = vmatpush1.bf16.msra.mxu0 0
        %3329 = vmatprep.subr.bf16.mxu0 0
        %3330 = vmatpush1.bf16.msra.mxu0 0
        %3331 = vmatprep.subr.bf16.mxu0 0
        %3332 = vmatpush1.bf16.msra.mxu0 %v3315
        %3333 = vmatprep.subr.bf16.mxu0 0
        %3334 = vmatpush2.bf16.msra.mxu0 0
        %3335 = vmatprep.subr.bf16.mxu0 0
        %3336 = vmatpush2.bf16.msra.mxu0 0
        %3337 = vmatprep.subr.bf16.mxu0 0
        %3338 = vmatpush2.bf16.msra.mxu0 0
        %3339 = vmatprep.subr.bf16.mxu0 0
        %3340 = vmatpush2.bf16.msra.mxu0 0
        %3341 = vmatprep.subr.bf16.mxu0 0
        %3342 = vmatpush2.bf16.msra.mxu0 0
        %3343 = vmatprep.subr.bf16.mxu0 0
        %3344 = vmatpush2.bf16.msra.mxu0 0
        %3345 = vmatprep.subr.bf16.mxu0 0
        %3346 = vmatpush2.bf16.msra.mxu0 0
        %3347 = vmatprep.subr.bf16.mxu0 0
        %3348 = vmatpush2.bf16.msra.mxu0 0
        %3349 = vmatprep.mubr.bf16.mxu0 0
        %3350 = vmatmul.mubr.bf16.gmra.mxu0 %v3261
        %v3351 = vpop.f32.mrf.mxu0
        %v3352 = vadd.f32 0.0, %v3351
        %v3353 = vpop.f32.mrf.mxu0
        %v3354 = vpop.f32.mrf.mxu0
        %v3355 = vadd.f32 0.0, %v3354
        %v3356 = vpop.f32.mrf.mxu0
        %3357 = vmatprep.mubr.bf16.mxu0 0
        %3358 = vmatmul.mubr.bf16.gmra.mxu0 %v3264
        %v3359 = vpop.f32.mrf.mxu0
        %v3360 = vadd.f32 0.0, %v3359
        %v3361 = vpop.f32.mrf.mxu0
        %v3362 = vpop.f32.mrf.mxu0
        %v3363 = vadd.f32 0.0, %v3362
        %v3364 = vpop.f32.mrf.mxu0
        %3365 = vmatprep.mubr.bf16.mxu0 0
        %3366 = vmatmul.mubr.bf16.gmra.mxu0 %v3267
        %v3367 = vpop.f32.mrf.mxu0
        %v3368 = vadd.f32 0.0, %v3367
        %v3369 = vpop.f32.mrf.mxu0
        %v3370 = vpop.f32.mrf.mxu0
        %v3371 = vadd.f32 0.0, %v3370
        %v3372 = vpop.f32.mrf.mxu0
        %3373 = vmatprep.mubr.bf16.mxu0 0
        %3374 = vmatmul.mubr.bf16.gmra.mxu0 %v3270
        %v3375 = vpop.f32.mrf.mxu0
        %v3376 = vadd.f32 0.0, %v3375
        %v3377 = vpop.f32.mrf.mxu0
        %v3378 = vpop.f32.mrf.mxu0
        %v3379 = vadd.f32 0.0, %v3378
        %v3380 = vpop.f32.mrf.mxu0
        %3381 = vmatprep.mubr.bf16.mxu0 0
        %3382 = vmatmul.mubr.bf16.gmra.mxu0 %v3273
        %v3383 = vpop.f32.mrf.mxu0
        %v3384 = vadd.f32 0.0, %v3383
        %v3385 = vpop.f32.mrf.mxu0
        %v3386 = vpop.f32.mrf.mxu0
        %v3387 = vadd.f32 0.0, %v3386
        %v3388 = vpop.f32.mrf.mxu0
        %3389 = vmatprep.mubr.bf16.mxu0 0
        %3390 = vmatmul.mubr.bf16.gmra.mxu0 %v3276
        %v3391 = vpop.f32.mrf.mxu0
        %v3392 = vadd.f32 0.0, %v3391
        %v3393 = vpop.f32.mrf.mxu0
        %v3394 = vpop.f32.mrf.mxu0
        %v3395 = vadd.f32 0.0, %v3394
        %v3396 = vpop.f32.mrf.mxu0
        %3397 = vmatprep.mubr.bf16.mxu0 0
        %3398 = vmatmul.mubr.bf16.gmra.mxu0 %v3279
        %v3399 = vpop.f32.mrf.mxu0
        %v3400 = vadd.f32 0.0, %v3399
        %v3401 = vpop.f32.mrf.mxu0
        %v3402 = vpop.f32.mrf.mxu0
        %v3403 = vadd.f32 0.0, %v3402
        %v3404 = vpop.f32.mrf.mxu0
        %3405 = vmatprep.mubr.bf16.mxu0 0
        %3406 = vmatmul.mubr.bf16.gmra.mxu0 %v3282
        %v3407 = vpop.f32.mrf.mxu0
        %v3408 = vadd.f32 0.0, %v3407
        %v3409 = vpop.f32.mrf.mxu0
        %v3410 = vpop.f32.mrf.mxu0
        %v3411 = vadd.f32 0.0, %v3410
        %v3412 = vpop.f32.mrf.mxu0
        %3413 = vmatprep.mubr.bf16.mxu0 0
        %3414 = vmatmul.mubr.bf16.gmra.mxu0 %v3285
        %v3415 = vpop.f32.mrf.mxu0
        %v3416 = vadd.f32 0.0, %v3415
        %v3417 = vpop.f32.mrf.mxu0
        %v3418 = vpop.f32.mrf.mxu0
        %v3419 = vadd.f32 0.0, %v3418
        %v3420 = vpop.f32.mrf.mxu0
        %3421 = vmatprep.mubr.bf16.mxu0 0
        %3422 = vmatmul.mubr.bf16.gmra.mxu0 %v3288
        %v3423 = vpop.f32.mrf.mxu0
        %v3424 = vadd.f32 0.0, %v3423
        %v3425 = vpop.f32.mrf.mxu0
        %v3426 = vpop.f32.mrf.mxu0
        %v3427 = vadd.f32 0.0, %v3426
        %v3428 = vpop.f32.mrf.mxu0
        %3429 = vmatprep.mubr.bf16.mxu0 0
        %3430 = vmatmul.mubr.bf16.gmra.mxu0 %v3291
        %v3431 = vpop.f32.mrf.mxu0
        %v3432 = vadd.f32 0.0, %v3431
        %v3433 = vpop.f32.mrf.mxu0
        %v3434 = vpop.f32.mrf.mxu0
        %v3435 = vadd.f32 0.0, %v3434
        %v3436 = vpop.f32.mrf.mxu0
        %3437 = vmatprep.mubr.bf16.mxu0 0
        %3438 = vmatmul.mubr.bf16.gmra.mxu0 %v3294
        %v3439 = vpop.f32.mrf.mxu0
        %v3440 = vadd.f32 0.0, %v3439
        %v3441 = vpop.f32.mrf.mxu0
        %v3442 = vpop.f32.mrf.mxu0
        %v3443 = vadd.f32 0.0, %v3442
        %v3444 = vpop.f32.mrf.mxu0
        %3445 = vmatprep.mubr.bf16.mxu0 0
        %3446 = vmatmul.mubr.bf16.gmra.mxu0 %v3297
        %v3447 = vpop.f32.mrf.mxu0
        %v3448 = vadd.f32 0.0, %v3447
        %v3449 = vpop.f32.mrf.mxu0
        %v3450 = vpop.f32.mrf.mxu0
        %v3451 = vadd.f32 0.0, %v3450
        %v3452 = vpop.f32.mrf.mxu0
        %3453 = vmatprep.mubr.bf16.mxu0 0
        %3454 = vmatmul.mubr.bf16.gmra.mxu0 %v3300
        %v3455 = vpop.f32.mrf.mxu0
        %v3456 = vadd.f32 0.0, %v3455
        %v3457 = vpop.f32.mrf.mxu0
        %v3458 = vpop.f32.mrf.mxu0
        %v3459 = vadd.f32 0.0, %v3458
        %v3460 = vpop.f32.mrf.mxu0
        %3461 = vmatprep.mubr.bf16.mxu0 0
        %3462 = vmatmul.mubr.bf16.gmra.mxu0 %v3303
        %v3463 = vpop.f32.mrf.mxu0
        %v3464 = vadd.f32 0.0, %v3463
        %v3465 = vpop.f32.mrf.mxu0
        %v3466 = vpop.f32.mrf.mxu0
        %v3467 = vadd.f32 0.0, %v3466
        %v3468 = vpop.f32.mrf.mxu0
        %3469 = vmatprep.mubr.bf16.mxu0 0
        %3470 = vmatmul.mubr.bf16.gmra.mxu0 %v3306
        %v3471 = vpop.f32.mrf.mxu0
        %v3472 = vadd.f32 0.0, %v3471
        %v3473 = vpop.f32.mrf.mxu0
        %v3474 = vpop.f32.mrf.mxu0
        %v3475 = vadd.f32 0.0, %v3474
        %v3476 = vpop.f32.mrf.mxu0
        %3477 = vmatprep.mubr.bf16.mxu0 0
        %3478 = vmatmul.mubr.bf16.gmra.mxu0 %v3309
        %v3479 = vpop.f32.mrf.mxu0
        %v3480 = vadd.f32 0.0, %v3479
        %v3481 = vpop.f32.mrf.mxu0
        %v3482 = vpop.f32.mrf.mxu0
        %v3483 = vadd.f32 0.0, %v3482
        %v3484 = vpop.f32.mrf.mxu0
        %3485 = vmatprep.mubr.bf16.mxu0 0
        %3486 = vmatmul.mubr.bf16.gmra.mxu0 %v3312
        %v3487 = vpop.f32.mrf.mxu0
        %v3488 = vadd.f32 0.0, %v3487
        %v3489 = vpop.f32.mrf.mxu0
        %v3490 = vpop.f32.mrf.mxu0
        %v3491 = vadd.f32 0.0, %v3490
        %v3492 = vpop.f32.mrf.mxu0
        %3493 = vdwg.mxu0
        %v3494 = vadd.f32 %v3054, %v3352
        %v3495 = vadd.f32 %v3055, %v3355
        %v3496 = vadd.f32 %v3056, %v3360
        %v3497 = vadd.f32 %v3057, %v3363
        %v3498 = vadd.f32 %v3058, %v3368
        %v3499 = vadd.f32 %v3059, %v3371
        %v3500 = vadd.f32 %v3060, %v3376
        %v3501 = vadd.f32 %v3061, %v3379
        %v3502 = vadd.f32 %v3062, %v3384
        %v3503 = vadd.f32 %v3063, %v3387
        %v3504 = vadd.f32 %v3064, %v3392
        %v3505 = vadd.f32 %v3065, %v3395
        %v3506 = vadd.f32 %v3066, %v3400
        %v3507 = vadd.f32 %v3067, %v3403
        %v3508 = vadd.f32 %v3068, %v3408
        %v3509 = vadd.f32 %v3069, %v3411
        %v3510 = vadd.f32 %v3070, %v3416
        %v3511 = vadd.f32 %v3071, %v3419
        %v3512 = vadd.f32 %v3072, %v3424
        %v3513 = vadd.f32 %v3073, %v3427
        %v3514 = vadd.f32 %v3074, %v3432
        %v3515 = vadd.f32 %v3075, %v3435
        %v3516 = vadd.f32 %v3076, %v3440
        %v3517 = vadd.f32 %v3077, %v3443
        %v3518 = vadd.f32 %v3078, %v3448
        %v3519 = vadd.f32 %v3079, %v3451
        %v3520 = vadd.f32 %v3080, %v3456
        %v3521 = vadd.f32 %v3081, %v3459
        %v3522 = vadd.f32 %v3082, %v3464
        %v3523 = vadd.f32 %v3083, %v3467
        %v3524 = vadd.f32 %v3084, %v3472
        %v3525 = vadd.f32 %v3085, %v3475
        %v3526 = vadd.f32 %v3086, %v3480
        %v3527 = vadd.f32 %v3087, %v3483
        %v3528 = vadd.f32 %v3088, %v3488
        %v3529 = vadd.f32 %v3089, %v3491
        %3530 = vst [vmem:[#allocation2] sm:$0xff] %v3494
        %3531 = vst [vmem:[#allocation2 + $0x8] sm:$0xff] %v3495
        %3532 = vst [vmem:[#allocation2 + $0x10] sm:$0xff] %v3496
        %3533 = vst [vmem:[#allocation2 + $0x18] sm:$0xff] %v3497
        %3534 = vst [vmem:[#allocation2 + $0x20] sm:$0xff] %v3498
        %3535 = vst [vmem:[#allocation2 + $0x28] sm:$0xff] %v3499
        %3536 = vst [vmem:[#allocation2 + $0x30] sm:$0xff] %v3500
        %3537 = vst [vmem:[#allocation2 + $0x38] sm:$0xff] %v3501
        %3538 = vst [vmem:[#allocation2 + $0x40] sm:$0xff] %v3502
        %3539 = vst [vmem:[#allocation2 + $0x48] sm:$0xff] %v3503
        %3540 = vst [vmem:[#allocation2 + $0x50] sm:$0xff] %v3504
        %3541 = vst [vmem:[#allocation2 + $0x58] sm:$0xff] %v3505
        %3542 = vst [vmem:[#allocation2 + $0x60] sm:$0xff] %v3506
        %3543 = vst [vmem:[#allocation2 + $0x68] sm:$0xff] %v3507
        %3544 = vst [vmem:[#allocation2 + $0x70] sm:$0xff] %v3508
        %3545 = vst [vmem:[#allocation2 + $0x78] sm:$0xff] %v3509
        %3546 = vst [vmem:[#allocation2 + $0x80] sm:$0xff] %v3510
        %3547 = vst [vmem:[#allocation2 + $0x88] sm:$0xff] %v3511
        %3548 = vst [vmem:[#allocation2 + $0x90] sm:$0xff] %v3512
        %3549 = vst [vmem:[#allocation2 + $0x98] sm:$0xff] %v3513
        %3550 = vst [vmem:[#allocation2 + $0xa0] sm:$0xff] %v3514
        %3551 = vst [vmem:[#allocation2 + $0xa8] sm:$0xff] %v3515
        %3552 = vst [vmem:[#allocation2 + $0xb0] sm:$0xff] %v3516
        %3553 = vst [vmem:[#allocation2 + $0xb8] sm:$0xff] %v3517
        %3554 = vst [vmem:[#allocation2 + $0xc0] sm:$0xff] %v3518
        %3555 = vst [vmem:[#allocation2 + $0xc8] sm:$0xff] %v3519
        %3556 = vst [vmem:[#allocation2 + $0xd0] sm:$0xff] %v3520
        %3557 = vst [vmem:[#allocation2 + $0xd8] sm:$0xff] %v3521
        %3558 = vst [vmem:[#allocation2 + $0xe0] sm:$0xff] %v3522
        %3559 = vst [vmem:[#allocation2 + $0xe8] sm:$0xff] %v3523
        %3560 = vst [vmem:[#allocation2 + $0xf0] sm:$0xff] %v3524
        %3561 = vst [vmem:[#allocation2 + $0xf8] sm:$0xff] %v3525
        %3562 = vst [vmem:[#allocation2 + $0x100] sm:$0xff] %v3526
        %3563 = vst [vmem:[#allocation2 + $0x108] sm:$0xff] %v3527
        %3564 = vst [vmem:[#allocation2 + $0x110] sm:$0xff] %v3528
        %3565 = vst [vmem:[#allocation2 + $0x118] sm:$0xff] %v3529
        %v3566 = vld [vmem:[#allocation2] sm:$0xff]
        %v3567 = vld [vmem:[#allocation2 + $0x8] sm:$0xff]
        %v3568 = vld [vmem:[#allocation2 + $0x10] sm:$0xff]
        %v3569 = vld [vmem:[#allocation2 + $0x18] sm:$0xff]
        %v3570 = vld [vmem:[#allocation2 + $0x20] sm:$0xff]
        %v3571 = vld [vmem:[#allocation2 + $0x28] sm:$0xff]
        %v3572 = vld [vmem:[#allocation2 + $0x30] sm:$0xff]
        %v3573 = vld [vmem:[#allocation2 + $0x38] sm:$0xff]
        %v3574 = vld [vmem:[#allocation2 + $0x40] sm:$0xff]
        %v3575 = vld [vmem:[#allocation2 + $0x48] sm:$0xff]
        %v3576 = vld [vmem:[#allocation2 + $0x50] sm:$0xff]
        %v3577 = vld [vmem:[#allocation2 + $0x58] sm:$0xff]
        %v3578 = vld [vmem:[#allocation2 + $0x60] sm:$0xff]
        %v3579 = vld [vmem:[#allocation2 + $0x68] sm:$0xff]
        %v3580 = vld [vmem:[#allocation2 + $0x70] sm:$0xff]
        %v3581 = vld [vmem:[#allocation2 + $0x78] sm:$0xff]
        %v3582 = vld [vmem:[#allocation2 + $0x80] sm:$0xff]
        %v3583 = vld [vmem:[#allocation2 + $0x88] sm:$0xff]
        %v3584 = vld [vmem:[#allocation2 + $0x90] sm:$0xff]
        %v3585 = vld [vmem:[#allocation2 + $0x98] sm:$0xff]
        %v3586 = vld [vmem:[#allocation2 + $0xa0] sm:$0xff]
        %v3587 = vld [vmem:[#allocation2 + $0xa8] sm:$0xff]
        %v3588 = vld [vmem:[#allocation2 + $0xb0] sm:$0xff]
        %v3589 = vld [vmem:[#allocation2 + $0xb8] sm:$0xff]
        %v3590 = vld [vmem:[#allocation2 + $0xc0] sm:$0xff]
        %v3591 = vld [vmem:[#allocation2 + $0xc8] sm:$0xff]
        %v3592 = vld [vmem:[#allocation2 + $0xd0] sm:$0xff]
        %v3593 = vld [vmem:[#allocation2 + $0xd8] sm:$0xff]
        %v3594 = vld [vmem:[#allocation2 + $0xe0] sm:$0xff]
        %v3595 = vld [vmem:[#allocation2 + $0xe8] sm:$0xff]
        %v3596 = vld [vmem:[#allocation2 + $0xf0] sm:$0xff]
        %v3597 = vld [vmem:[#allocation2 + $0xf8] sm:$0xff]
        %v3598 = vld [vmem:[#allocation2 + $0x100] sm:$0xff]
        %v3599 = vld [vmem:[#allocation2 + $0x108] sm:$0xff]
        %v3600 = vld [vmem:[#allocation2 + $0x110] sm:$0xff]
        %v3601 = vld [vmem:[#allocation2 + $0x118] sm:$0xff]
        %v3602 = vld [vmem:[%s244 + $0x10] sm:$0xc]
        %v3603 = vld [vmem:[%s244 + $0x14] sm:$0xf]
        %v3604 = vld [vmem:[%s244 + $0x18] sm:$0xf]
        %v3605 = vld [vmem:[%s244 + $0x1c] sm:$0xf]
        %v3606 = vld [vmem:[%s244 + $0x20] sm:$0xf]
        %v3607 = vld [vmem:[%s244 + $0x24] sm:$0xf]
        %v3608 = vld [vmem:[%s244 + $0x28] sm:$0xf]
        %v3609 = vld [vmem:[%s244 + $0x2c] sm:$0xf]
        %v3610 = vld [vmem:[%s244 + $0x30] sm:$0xf]
        %v3611 = vld [vmem:[%s244 + $0x34] sm:$0xf]
        %v3612 = vld [vmem:[%s244 + $0x38] sm:$0xf]
        %v3613 = vld [vmem:[%s244 + $0x3c] sm:$0xf]
        %v3614 = vld [vmem:[%s244 + $0x40] sm:$0xf]
        %v3615 = vld [vmem:[%s244 + $0x44] sm:$0xf]
        %v3616 = vld [vmem:[%s244 + $0x48] sm:$0xf]
        %v3617 = vld [vmem:[%s244 + $0x4c] sm:$0xf]
        %v3618 = vld [vmem:[%s244 + $0x50] sm:$0xf]
        %v3619 = vld [vmem:[%s244 + $0x54] sm:$0xf]
        %v3620 = vld [vmem:[%s244 + $0x58] sm:$0xf]
        %v3621 = vld [vmem:[%s244 + $0x5c] sm:$0xf]
        %v3622 = vld [vmem:[%s244 + $0x60] sm:$0xf]
        %v3623 = vld [vmem:[%s244 + $0x64] sm:$0xf]
        %v3624 = vld [vmem:[%s244 + $0x68] sm:$0xf]
        %v3625 = vld [vmem:[%s244 + $0x6c] sm:$0xf]
        %v3626 = vld [vmem:[%s244 + $0x70] sm:$0xf]
        %v3627 = vld [vmem:[%s244 + $0x74] sm:$0xf]
        %v3628 = vld [vmem:[%s244 + $0x78] sm:$0xf]
        %v3629 = vld [vmem:[%s244 + $0x7c] sm:$0xf]
        %v3630 = vld [vmem:[%s244 + $0x80] sm:$0xf]
        %v3631 = vld [vmem:[%s244 + $0x84] sm:$0xf]
        %v3632 = vld [vmem:[%s244 + $0x88] sm:$0xf]
        %v3633 = vld [vmem:[%s244 + $0x8c] sm:$0xf]
        %v3634 = vld [vmem:[%s244 + $0x90] sm:$0xf]
        %v3635 = vld [vmem:[%s244 + $0x94] sm:$0xf]
        %v3636 = vld [vmem:[%s244 + $0x98] sm:$0xf]
        %v3637 = vld [vmem:[%s244 + $0x9c] sm:$0xf]
        %v3638 = vld [vmem:[%s244 + $0xa0] sm:$0x3]
        %s3639 = scalar_lea.vmem %s248, 24
        %v3640 = vld [vmem:[%s3639] sm:$0xf]
        %v3678 = vunpack.c.l.b16 %v3602
        %v3679 = vunpack.c.l.b16 %v3603
        %v3680 = vunpack.c.l.b16 %v3604
        %v3681 = vunpack.c.l.b16 %v3605
        %v3682 = vunpack.c.l.b16 %v3606
        %v3683 = vunpack.c.l.b16 %v3607
        %v3684 = vunpack.c.l.b16 %v3608
        %v3685 = vunpack.c.l.b16 %v3609
        %v3686 = vunpack.c.l.b16 %v3610
        %v3687 = vunpack.c.l.b16 %v3611
        %v3688 = vunpack.c.l.b16 %v3612
        %v3689 = vunpack.c.l.b16 %v3613
        %v3690 = vunpack.c.l.b16 %v3614
        %v3691 = vunpack.c.l.b16 %v3615
        %v3692 = vunpack.c.l.b16 %v3616
        %v3693 = vunpack.c.l.b16 %v3617
        %v3694 = vunpack.c.l.b16 %v3618
        %v3695 = vunpack.c.l.b16 %v3619
        %v3696 = vunpack.c.l.b16 %v3620
        %v3697 = vunpack.c.l.b16 %v3621
        %v3698 = vunpack.c.l.b16 %v3622
        %v3699 = vunpack.c.l.b16 %v3623
        %v3700 = vunpack.c.l.b16 %v3624
        %v3701 = vunpack.c.l.b16 %v3625
        %v3702 = vunpack.c.l.b16 %v3626
        %v3703 = vunpack.c.l.b16 %v3627
        %v3704 = vunpack.c.l.b16 %v3628
        %v3705 = vunpack.c.l.b16 %v3629
        %v3706 = vunpack.c.l.b16 %v3630
        %v3707 = vunpack.c.l.b16 %v3631
        %v3708 = vunpack.c.l.b16 %v3632
        %v3709 = vunpack.c.l.b16 %v3633
        %v3710 = vunpack.c.l.b16 %v3634
        %v3711 = vunpack.c.l.b16 %v3635
        %v3712 = vunpack.c.l.b16 %v3636
        %v3713 = vunpack.c.l.b16 %v3637
        %v3714 = vunpack.c.l.b16 %v3638
        %v3715 = vpack.c.b16 %v3679, %v3678
        %v3716 = vpack.c.b16 %v3681, %v3680
        %v3717 = vpack.c.b16 %v3683, %v3682
        %v3718 = vpack.c.b16 %v3685, %v3684
        %v3719 = vpack.c.b16 %v3687, %v3686
        %v3720 = vpack.c.b16 %v3689, %v3688
        %v3721 = vpack.c.b16 %v3691, %v3690
        %v3722 = vpack.c.b16 %v3693, %v3692
        %v3723 = vpack.c.b16 %v3695, %v3694
        %v3724 = vpack.c.b16 %v3697, %v3696
        %v3725 = vpack.c.b16 %v3699, %v3698
        %v3726 = vpack.c.b16 %v3701, %v3700
        %v3727 = vpack.c.b16 %v3703, %v3702
        %v3728 = vpack.c.b16 %v3705, %v3704
        %v3729 = vpack.c.b16 %v3707, %v3706
        %v3730 = vpack.c.b16 %v3709, %v3708
        %v3731 = vpack.c.b16 %v3711, %v3710
        %v3732 = vpack.c.b16 %v3713, %v3712
        %v3733 = vpack.c.b16 %v3714, %v3714
        %v3734 = vrot.slane %v3715, 2
        %v3735 = vrot.slane %v3716, 2
        %v3736 = vsel %vm3222, %v3734, %v3735
        %v3737 = vrot.slane %v3717, 2
        %v3738 = vsel %vm3222, %v3735, %v3737
        %v3739 = vrot.slane %v3718, 2
        %v3740 = vsel %vm3222, %v3737, %v3739
        %v3741 = vrot.slane %v3719, 2
        %v3742 = vsel %vm3222, %v3739, %v3741
        %v3743 = vrot.slane %v3720, 2
        %v3744 = vsel %vm3222, %v3741, %v3743
        %v3745 = vrot.slane %v3721, 2
        %v3746 = vsel %vm3222, %v3743, %v3745
        %v3747 = vrot.slane %v3722, 2
        %v3748 = vsel %vm3222, %v3745, %v3747
        %v3749 = vrot.slane %v3723, 2
        %v3750 = vsel %vm3222, %v3747, %v3749
        %v3751 = vrot.slane %v3724, 2
        %v3752 = vsel %vm3222, %v3749, %v3751
        %v3753 = vrot.slane %v3725, 2
        %v3754 = vsel %vm3222, %v3751, %v3753
        %v3755 = vrot.slane %v3726, 2
        %v3756 = vsel %vm3222, %v3753, %v3755
        %v3757 = vrot.slane %v3727, 2
        %v3758 = vsel %vm3222, %v3755, %v3757
        %v3759 = vrot.slane %v3728, 2
        %v3760 = vsel %vm3222, %v3757, %v3759
        %v3761 = vrot.slane %v3729, 2
        %v3762 = vsel %vm3222, %v3759, %v3761
        %v3763 = vrot.slane %v3730, 2
        %v3764 = vsel %vm3222, %v3761, %v3763
        %v3765 = vrot.slane %v3731, 2
        %v3766 = vsel %vm3222, %v3763, %v3765
        %v3767 = vrot.slane %v3732, 2
        %v3768 = vsel %vm3222, %v3765, %v3767
        %v3769 = vrot.slane %v3733, 2
        %v3770 = vsel %vm3222, %v3767, %v3769
        %v3772 = vsel %vm455, %v3736, 0
        %v3775 = vsel %vm455, %v3738, 0
        %v3778 = vsel %vm455, %v3740, 0
        %v3781 = vsel %vm455, %v3742, 0
        %v3784 = vsel %vm455, %v3744, 0
        %v3787 = vsel %vm455, %v3746, 0
        %v3790 = vsel %vm455, %v3748, 0
        %v3793 = vsel %vm455, %v3750, 0
        %v3796 = vsel %vm455, %v3752, 0
        %v3799 = vsel %vm455, %v3754, 0
        %v3802 = vsel %vm455, %v3756, 0
        %v3805 = vsel %vm455, %v3758, 0
        %v3808 = vsel %vm455, %v3760, 0
        %v3811 = vsel %vm455, %v3762, 0
        %v3814 = vsel %vm455, %v3764, 0
        %v3817 = vsel %vm455, %v3766, 0
        %v3820 = vsel %vm455, %v3768, 0
        %v3823 = vsel %vm455, %v3770, 0
        %v3826 = vsel %vm510, %v3640, 0
        %3828 = vmatprep.subr.bf16.mxu0 0
        %3829 = vmatpush1.bf16.msra.mxu0 0
        %3830 = vmatprep.subr.bf16.mxu0 0
        %3831 = vmatpush1.bf16.msra.mxu0 0
        %3832 = vmatprep.subr.bf16.mxu0 0
        %3833 = vmatpush1.bf16.msra.mxu0 0
        %3834 = vmatprep.subr.bf16.mxu0 0
        %3835 = vmatpush1.bf16.msra.mxu0 0
        %3836 = vmatprep.subr.bf16.mxu0 0
        %3837 = vmatpush1.bf16.msra.mxu0 0
        %3838 = vmatprep.subr.bf16.mxu0 0
        %3839 = vmatpush1.bf16.msra.mxu0 0
        %3840 = vmatprep.subr.bf16.mxu0 0
        %3841 = vmatpush1.bf16.msra.mxu0 0
        %3842 = vmatprep.subr.bf16.mxu0 0
        %3843 = vmatpush1.bf16.msra.mxu0 %v3826
        %3844 = vmatprep.subr.bf16.mxu0 0
        %3845 = vmatpush2.bf16.msra.mxu0 0
        %3846 = vmatprep.subr.bf16.mxu0 0
        %3847 = vmatpush2.bf16.msra.mxu0 0
        %3848 = vmatprep.subr.bf16.mxu0 0
        %3849 = vmatpush2.bf16.msra.mxu0 0
        %3850 = vmatprep.subr.bf16.mxu0 0
        %3851 = vmatpush2.bf16.msra.mxu0 0
        %3852 = vmatprep.subr.bf16.mxu0 0
        %3853 = vmatpush2.bf16.msra.mxu0 0
        %3854 = vmatprep.subr.bf16.mxu0 0
        %3855 = vmatpush2.bf16.msra.mxu0 0
        %3856 = vmatprep.subr.bf16.mxu0 0
        %3857 = vmatpush2.bf16.msra.mxu0 0
        %3858 = vmatprep.subr.bf16.mxu0 0
        %3859 = vmatpush2.bf16.msra.mxu0 0
        %3860 = vmatprep.mubr.bf16.mxu0 0
        %3861 = vmatmul.mubr.bf16.gmra.mxu0 %v3772
        %v3862 = vpop.f32.mrf.mxu0
        %v3863 = vadd.f32 0.0, %v3862
        %v3864 = vpop.f32.mrf.mxu0
        %v3865 = vpop.f32.mrf.mxu0
        %v3866 = vadd.f32 0.0, %v3865
        %v3867 = vpop.f32.mrf.mxu0
        %3868 = vmatprep.mubr.bf16.mxu0 0
        %3869 = vmatmul.mubr.bf16.gmra.mxu0 %v3775
        %v3870 = vpop.f32.mrf.mxu0
        %v3871 = vadd.f32 0.0, %v3870
        %v3872 = vpop.f32.mrf.mxu0
        %v3873 = vpop.f32.mrf.mxu0
        %v3874 = vadd.f32 0.0, %v3873
        %v3875 = vpop.f32.mrf.mxu0
        %3876 = vmatprep.mubr.bf16.mxu0 0
        %3877 = vmatmul.mubr.bf16.gmra.mxu0 %v3778
        %v3878 = vpop.f32.mrf.mxu0
        %v3879 = vadd.f32 0.0, %v3878
        %v3880 = vpop.f32.mrf.mxu0
        %v3881 = vpop.f32.mrf.mxu0
        %v3882 = vadd.f32 0.0, %v3881
        %v3883 = vpop.f32.mrf.mxu0
        %3884 = vmatprep.mubr.bf16.mxu0 0
        %3885 = vmatmul.mubr.bf16.gmra.mxu0 %v3781
        %v3886 = vpop.f32.mrf.mxu0
        %v3887 = vadd.f32 0.0, %v3886
        %v3888 = vpop.f32.mrf.mxu0
        %v3889 = vpop.f32.mrf.mxu0
        %v3890 = vadd.f32 0.0, %v3889
        %v3891 = vpop.f32.mrf.mxu0
        %3892 = vmatprep.mubr.bf16.mxu0 0
        %3893 = vmatmul.mubr.bf16.gmra.mxu0 %v3784
        %v3894 = vpop.f32.mrf.mxu0
        %v3895 = vadd.f32 0.0, %v3894
        %v3896 = vpop.f32.mrf.mxu0
        %v3897 = vpop.f32.mrf.mxu0
        %v3898 = vadd.f32 0.0, %v3897
        %v3899 = vpop.f32.mrf.mxu0
        %3900 = vmatprep.mubr.bf16.mxu0 0
        %3901 = vmatmul.mubr.bf16.gmra.mxu0 %v3787
        %v3902 = vpop.f32.mrf.mxu0
        %v3903 = vadd.f32 0.0, %v3902
        %v3904 = vpop.f32.mrf.mxu0
        %v3905 = vpop.f32.mrf.mxu0
        %v3906 = vadd.f32 0.0, %v3905
        %v3907 = vpop.f32.mrf.mxu0
        %3908 = vmatprep.mubr.bf16.mxu0 0
        %3909 = vmatmul.mubr.bf16.gmra.mxu0 %v3790
        %v3910 = vpop.f32.mrf.mxu0
        %v3911 = vadd.f32 0.0, %v3910
        %v3912 = vpop.f32.mrf.mxu0
        %v3913 = vpop.f32.mrf.mxu0
        %v3914 = vadd.f32 0.0, %v3913
        %v3915 = vpop.f32.mrf.mxu0
        %3916 = vmatprep.mubr.bf16.mxu0 0
        %3917 = vmatmul.mubr.bf16.gmra.mxu0 %v3793
        %v3918 = vpop.f32.mrf.mxu0
        %v3919 = vadd.f32 0.0, %v3918
        %v3920 = vpop.f32.mrf.mxu0
        %v3921 = vpop.f32.mrf.mxu0
        %v3922 = vadd.f32 0.0, %v3921
        %v3923 = vpop.f32.mrf.mxu0
        %3924 = vmatprep.mubr.bf16.mxu0 0
        %3925 = vmatmul.mubr.bf16.gmra.mxu0 %v3796
        %v3926 = vpop.f32.mrf.mxu0
        %v3927 = vadd.f32 0.0, %v3926
        %v3928 = vpop.f32.mrf.mxu0
        %v3929 = vpop.f32.mrf.mxu0
        %v3930 = vadd.f32 0.0, %v3929
        %v3931 = vpop.f32.mrf.mxu0
        %3932 = vmatprep.mubr.bf16.mxu0 0
        %3933 = vmatmul.mubr.bf16.gmra.mxu0 %v3799
        %v3934 = vpop.f32.mrf.mxu0
        %v3935 = vadd.f32 0.0, %v3934
        %v3936 = vpop.f32.mrf.mxu0
        %v3937 = vpop.f32.mrf.mxu0
        %v3938 = vadd.f32 0.0, %v3937
        %v3939 = vpop.f32.mrf.mxu0
        %3940 = vmatprep.mubr.bf16.mxu0 0
        %3941 = vmatmul.mubr.bf16.gmra.mxu0 %v3802
        %v3942 = vpop.f32.mrf.mxu0
        %v3943 = vadd.f32 0.0, %v3942
        %v3944 = vpop.f32.mrf.mxu0
        %v3945 = vpop.f32.mrf.mxu0
        %v3946 = vadd.f32 0.0, %v3945
        %v3947 = vpop.f32.mrf.mxu0
        %3948 = vmatprep.mubr.bf16.mxu0 0
        %3949 = vmatmul.mubr.bf16.gmra.mxu0 %v3805
        %v3950 = vpop.f32.mrf.mxu0
        %v3951 = vadd.f32 0.0, %v3950
        %v3952 = vpop.f32.mrf.mxu0
        %v3953 = vpop.f32.mrf.mxu0
        %v3954 = vadd.f32 0.0, %v3953
        %v3955 = vpop.f32.mrf.mxu0
        %3956 = vmatprep.mubr.bf16.mxu0 0
        %3957 = vmatmul.mubr.bf16.gmra.mxu0 %v3808
        %v3958 = vpop.f32.mrf.mxu0
        %v3959 = vadd.f32 0.0, %v3958
        %v3960 = vpop.f32.mrf.mxu0
        %v3961 = vpop.f32.mrf.mxu0
        %v3962 = vadd.f32 0.0, %v3961
        %v3963 = vpop.f32.mrf.mxu0
        %3964 = vmatprep.mubr.bf16.mxu0 0
        %3965 = vmatmul.mubr.bf16.gmra.mxu0 %v3811
        %v3966 = vpop.f32.mrf.mxu0
        %v3967 = vadd.f32 0.0, %v3966
        %v3968 = vpop.f32.mrf.mxu0
        %v3969 = vpop.f32.mrf.mxu0
        %v3970 = vadd.f32 0.0, %v3969
        %v3971 = vpop.f32.mrf.mxu0
        %3972 = vmatprep.mubr.bf16.mxu0 0
        %3973 = vmatmul.mubr.bf16.gmra.mxu0 %v3814
        %v3974 = vpop.f32.mrf.mxu0
        %v3975 = vadd.f32 0.0, %v3974
        %v3976 = vpop.f32.mrf.mxu0
        %v3977 = vpop.f32.mrf.mxu0
        %v3978 = vadd.f32 0.0, %v3977
        %v3979 = vpop.f32.mrf.mxu0
        %3980 = vmatprep.mubr.bf16.mxu0 0
        %3981 = vmatmul.mubr.bf16.gmra.mxu0 %v3817
        %v3982 = vpop.f32.mrf.mxu0
        %v3983 = vadd.f32 0.0, %v3982
        %v3984 = vpop.f32.mrf.mxu0
        %v3985 = vpop.f32.mrf.mxu0
        %v3986 = vadd.f32 0.0, %v3985
        %v3987 = vpop.f32.mrf.mxu0
        %3988 = vmatprep.mubr.bf16.mxu0 0
        %3989 = vmatmul.mubr.bf16.gmra.mxu0 %v3820
        %v3990 = vpop.f32.mrf.mxu0
        %v3991 = vadd.f32 0.0, %v3990
        %v3992 = vpop.f32.mrf.mxu0
        %v3993 = vpop.f32.mrf.mxu0
        %v3994 = vadd.f32 0.0, %v3993
        %v3995 = vpop.f32.mrf.mxu0
        %3996 = vmatprep.mubr.bf16.mxu0 0
        %3997 = vmatmul.mubr.bf16.gmra.mxu0 %v3823
        %v3998 = vpop.f32.mrf.mxu0
        %v3999 = vadd.f32 0.0, %v3998
        %v4000 = vpop.f32.mrf.mxu0
        %v4001 = vpop.f32.mrf.mxu0
        %v4002 = vadd.f32 0.0, %v4001
        %v4003 = vpop.f32.mrf.mxu0
        %4004 = vdwg.mxu0
        %v4005 = vadd.f32 %v3566, %v3863
        %v4006 = vadd.f32 %v3567, %v3866
        %v4007 = vadd.f32 %v3568, %v3871
        %v4008 = vadd.f32 %v3569, %v3874
        %v4009 = vadd.f32 %v3570, %v3879
        %v4010 = vadd.f32 %v3571, %v3882
        %v4011 = vadd.f32 %v3572, %v3887
        %v4012 = vadd.f32 %v3573, %v3890
        %v4013 = vadd.f32 %v3574, %v3895
        %v4014 = vadd.f32 %v3575, %v3898
        %v4015 = vadd.f32 %v3576, %v3903
        %v4016 = vadd.f32 %v3577, %v3906
        %v4017 = vadd.f32 %v3578, %v3911
        %v4018 = vadd.f32 %v3579, %v3914
        %v4019 = vadd.f32 %v3580, %v3919
        %v4020 = vadd.f32 %v3581, %v3922
        %v4021 = vadd.f32 %v3582, %v3927
        %v4022 = vadd.f32 %v3583, %v3930
        %v4023 = vadd.f32 %v3584, %v3935
        %v4024 = vadd.f32 %v3585, %v3938
        %v4025 = vadd.f32 %v3586, %v3943
        %v4026 = vadd.f32 %v3587, %v3946
        %v4027 = vadd.f32 %v3588, %v3951
        %v4028 = vadd.f32 %v3589, %v3954
        %v4029 = vadd.f32 %v3590, %v3959
        %v4030 = vadd.f32 %v3591, %v3962
        %v4031 = vadd.f32 %v3592, %v3967
        %v4032 = vadd.f32 %v3593, %v3970
        %v4033 = vadd.f32 %v3594, %v3975
        %v4034 = vadd.f32 %v3595, %v3978
        %v4035 = vadd.f32 %v3596, %v3983
        %v4036 = vadd.f32 %v3597, %v3986
        %v4037 = vadd.f32 %v3598, %v3991
        %v4038 = vadd.f32 %v3599, %v3994
        %v4039 = vadd.f32 %v3600, %v3999
        %v4040 = vadd.f32 %v3601, %v4002
        %4041 = vst [vmem:[#allocation2] sm:$0xff] %v4005
        %4042 = vst [vmem:[#allocation2 + $0x8] sm:$0xff] %v4006
        %4043 = vst [vmem:[#allocation2 + $0x10] sm:$0xff] %v4007
        %4044 = vst [vmem:[#allocation2 + $0x18] sm:$0xff] %v4008
        %4045 = vst [vmem:[#allocation2 + $0x20] sm:$0xff] %v4009
        %4046 = vst [vmem:[#allocation2 + $0x28] sm:$0xff] %v4010
        %4047 = vst [vmem:[#allocation2 + $0x30] sm:$0xff] %v4011
        %4048 = vst [vmem:[#allocation2 + $0x38] sm:$0xff] %v4012
        %4049 = vst [vmem:[#allocation2 + $0x40] sm:$0xff] %v4013
        %4050 = vst [vmem:[#allocation2 + $0x48] sm:$0xff] %v4014
        %4051 = vst [vmem:[#allocation2 + $0x50] sm:$0xff] %v4015
        %4052 = vst [vmem:[#allocation2 + $0x58] sm:$0xff] %v4016
        %4053 = vst [vmem:[#allocation2 + $0x60] sm:$0xff] %v4017
        %4054 = vst [vmem:[#allocation2 + $0x68] sm:$0xff] %v4018
        %4055 = vst [vmem:[#allocation2 + $0x70] sm:$0xff] %v4019
        %4056 = vst [vmem:[#allocation2 + $0x78] sm:$0xff] %v4020
        %4057 = vst [vmem:[#allocation2 + $0x80] sm:$0xff] %v4021
        %4058 = vst [vmem:[#allocation2 + $0x88] sm:$0xff] %v4022
        %4059 = vst [vmem:[#allocation2 + $0x90] sm:$0xff] %v4023
        %4060 = vst [vmem:[#allocation2 + $0x98] sm:$0xff] %v4024
        %4061 = vst [vmem:[#allocation2 + $0xa0] sm:$0xff] %v4025
        %4062 = vst [vmem:[#allocation2 + $0xa8] sm:$0xff] %v4026
        %4063 = vst [vmem:[#allocation2 + $0xb0] sm:$0xff] %v4027
        %4064 = vst [vmem:[#allocation2 + $0xb8] sm:$0xff] %v4028
        %4065 = vst [vmem:[#allocation2 + $0xc0] sm:$0xff] %v4029
        %4066 = vst [vmem:[#allocation2 + $0xc8] sm:$0xff] %v4030
        %4067 = vst [vmem:[#allocation2 + $0xd0] sm:$0xff] %v4031
        %4068 = vst [vmem:[#allocation2 + $0xd8] sm:$0xff] %v4032
        %4069 = vst [vmem:[#allocation2 + $0xe0] sm:$0xff] %v4033
        %4070 = vst [vmem:[#allocation2 + $0xe8] sm:$0xff] %v4034
        %4071 = vst [vmem:[#allocation2 + $0xf0] sm:$0xff] %v4035
        %4072 = vst [vmem:[#allocation2 + $0xf8] sm:$0xff] %v4036
        %4073 = vst [vmem:[#allocation2 + $0x100] sm:$0xff] %v4037
        %4074 = vst [vmem:[#allocation2 + $0x108] sm:$0xff] %v4038
        %4075 = vst [vmem:[#allocation2 + $0x110] sm:$0xff] %v4039
        %4076 = vst [vmem:[#allocation2 + $0x118] sm:$0xff] %v4040
        %v4077 = vld [vmem:[#allocation2] sm:$0xff]
        %v4078 = vld [vmem:[#allocation2 + $0x8] sm:$0xff]
        %v4079 = vld [vmem:[#allocation2 + $0x10] sm:$0xff]
        %v4080 = vld [vmem:[#allocation2 + $0x18] sm:$0xff]
        %v4081 = vld [vmem:[#allocation2 + $0x20] sm:$0xff]
        %v4082 = vld [vmem:[#allocation2 + $0x28] sm:$0xff]
        %v4083 = vld [vmem:[#allocation2 + $0x30] sm:$0xff]
        %v4084 = vld [vmem:[#allocation2 + $0x38] sm:$0xff]
        %v4085 = vld [vmem:[#allocation2 + $0x40] sm:$0xff]
        %v4086 = vld [vmem:[#allocation2 + $0x48] sm:$0xff]
        %v4087 = vld [vmem:[#allocation2 + $0x50] sm:$0xff]
        %v4088 = vld [vmem:[#allocation2 + $0x58] sm:$0xff]
        %v4089 = vld [vmem:[#allocation2 + $0x60] sm:$0xff]
        %v4090 = vld [vmem:[#allocation2 + $0x68] sm:$0xff]
        %v4091 = vld [vmem:[#allocation2 + $0x70] sm:$0xff]
        %v4092 = vld [vmem:[#allocation2 + $0x78] sm:$0xff]
        %v4093 = vld [vmem:[#allocation2 + $0x80] sm:$0xff]
        %v4094 = vld [vmem:[#allocation2 + $0x88] sm:$0xff]
        %v4095 = vld [vmem:[#allocation2 + $0x90] sm:$0xff]
        %v4096 = vld [vmem:[#allocation2 + $0x98] sm:$0xff]
        %v4097 = vld [vmem:[#allocation2 + $0xa0] sm:$0xff]
        %v4098 = vld [vmem:[#allocation2 + $0xa8] sm:$0xff]
        %v4099 = vld [vmem:[#allocation2 + $0xb0] sm:$0xff]
        %v4100 = vld [vmem:[#allocation2 + $0xb8] sm:$0xff]
        %v4101 = vld [vmem:[#allocation2 + $0xc0] sm:$0xff]
        %v4102 = vld [vmem:[#allocation2 + $0xc8] sm:$0xff]
        %v4103 = vld [vmem:[#allocation2 + $0xd0] sm:$0xff]
        %v4104 = vld [vmem:[#allocation2 + $0xd8] sm:$0xff]
        %v4105 = vld [vmem:[#allocation2 + $0xe0] sm:$0xff]
        %v4106 = vld [vmem:[#allocation2 + $0xe8] sm:$0xff]
        %v4107 = vld [vmem:[#allocation2 + $0xf0] sm:$0xff]
        %v4108 = vld [vmem:[#allocation2 + $0xf8] sm:$0xff]
        %v4109 = vld [vmem:[#allocation2 + $0x100] sm:$0xff]
        %v4110 = vld [vmem:[#allocation2 + $0x108] sm:$0xff]
        %v4111 = vld [vmem:[#allocation2 + $0x110] sm:$0xff]
        %v4112 = vld [vmem:[#allocation2 + $0x118] sm:$0xff]
        %v4113 = vld [vmem:[%s244 + $0x10] sm:$0xc]
        %v4114 = vld [vmem:[%s244 + $0x14] sm:$0xf]
        %v4115 = vld [vmem:[%s244 + $0x18] sm:$0xf]
        %v4116 = vld [vmem:[%s244 + $0x1c] sm:$0xf]
        %v4117 = vld [vmem:[%s244 + $0x20] sm:$0xf]
        %v4118 = vld [vmem:[%s244 + $0x24] sm:$0xf]
        %v4119 = vld [vmem:[%s244 + $0x28] sm:$0xf]
        %v4120 = vld [vmem:[%s244 + $0x2c] sm:$0xf]
        %v4121 = vld [vmem:[%s244 + $0x30] sm:$0xf]
        %v4122 = vld [vmem:[%s244 + $0x34] sm:$0xf]
        %v4123 = vld [vmem:[%s244 + $0x38] sm:$0xf]
        %v4124 = vld [vmem:[%s244 + $0x3c] sm:$0xf]
        %v4125 = vld [vmem:[%s244 + $0x40] sm:$0xf]
        %v4126 = vld [vmem:[%s244 + $0x44] sm:$0xf]
        %v4127 = vld [vmem:[%s244 + $0x48] sm:$0xf]
        %v4128 = vld [vmem:[%s244 + $0x4c] sm:$0xf]
        %v4129 = vld [vmem:[%s244 + $0x50] sm:$0xf]
        %v4130 = vld [vmem:[%s244 + $0x54] sm:$0xf]
        %v4131 = vld [vmem:[%s244 + $0x58] sm:$0xf]
        %v4132 = vld [vmem:[%s244 + $0x5c] sm:$0xf]
        %v4133 = vld [vmem:[%s244 + $0x60] sm:$0xf]
        %v4134 = vld [vmem:[%s244 + $0x64] sm:$0xf]
        %v4135 = vld [vmem:[%s244 + $0x68] sm:$0xf]
        %v4136 = vld [vmem:[%s244 + $0x6c] sm:$0xf]
        %v4137 = vld [vmem:[%s244 + $0x70] sm:$0xf]
        %v4138 = vld [vmem:[%s244 + $0x74] sm:$0xf]
        %v4139 = vld [vmem:[%s244 + $0x78] sm:$0xf]
        %v4140 = vld [vmem:[%s244 + $0x7c] sm:$0xf]
        %v4141 = vld [vmem:[%s244 + $0x80] sm:$0xf]
        %v4142 = vld [vmem:[%s244 + $0x84] sm:$0xf]
        %v4143 = vld [vmem:[%s244 + $0x88] sm:$0xf]
        %v4144 = vld [vmem:[%s244 + $0x8c] sm:$0xf]
        %v4145 = vld [vmem:[%s244 + $0x90] sm:$0xf]
        %v4146 = vld [vmem:[%s244 + $0x94] sm:$0xf]
        %v4147 = vld [vmem:[%s244 + $0x98] sm:$0xf]
        %v4148 = vld [vmem:[%s244 + $0x9c] sm:$0xf]
        %v4149 = vld [vmem:[%s244 + $0xa0] sm:$0x7]
        %s4150 = scalar_lea.vmem %s248, 28
        %v4151 = vld [vmem:[%s4150] sm:$0xf]
        %v4189 = vunpack.c.l.b16 %v4113
        %v4190 = vunpack.c.l.b16 %v4114
        %v4191 = vunpack.c.l.b16 %v4115
        %v4192 = vunpack.c.l.b16 %v4116
        %v4193 = vunpack.c.l.b16 %v4117
        %v4194 = vunpack.c.l.b16 %v4118
        %v4195 = vunpack.c.l.b16 %v4119
        %v4196 = vunpack.c.l.b16 %v4120
        %v4197 = vunpack.c.l.b16 %v4121
        %v4198 = vunpack.c.l.b16 %v4122
        %v4199 = vunpack.c.l.b16 %v4123
        %v4200 = vunpack.c.l.b16 %v4124
        %v4201 = vunpack.c.l.b16 %v4125
        %v4202 = vunpack.c.l.b16 %v4126
        %v4203 = vunpack.c.l.b16 %v4127
        %v4204 = vunpack.c.l.b16 %v4128
        %v4205 = vunpack.c.l.b16 %v4129
        %v4206 = vunpack.c.l.b16 %v4130
        %v4207 = vunpack.c.l.b16 %v4131
        %v4208 = vunpack.c.l.b16 %v4132
        %v4209 = vunpack.c.l.b16 %v4133
        %v4210 = vunpack.c.l.b16 %v4134
        %v4211 = vunpack.c.l.b16 %v4135
        %v4212 = vunpack.c.l.b16 %v4136
        %v4213 = vunpack.c.l.b16 %v4137
        %v4214 = vunpack.c.l.b16 %v4138
        %v4215 = vunpack.c.l.b16 %v4139
        %v4216 = vunpack.c.l.b16 %v4140
        %v4217 = vunpack.c.l.b16 %v4141
        %v4218 = vunpack.c.l.b16 %v4142
        %v4219 = vunpack.c.l.b16 %v4143
        %v4220 = vunpack.c.l.b16 %v4144
        %v4221 = vunpack.c.l.b16 %v4145
        %v4222 = vunpack.c.l.b16 %v4146
        %v4223 = vunpack.c.l.b16 %v4147
        %v4224 = vunpack.c.l.b16 %v4148
        %v4225 = vunpack.c.l.b16 %v4149
        %v4226 = vpack.c.b16 %v4190, %v4189
        %v4227 = vpack.c.b16 %v4192, %v4191
        %v4228 = vpack.c.b16 %v4194, %v4193
        %v4229 = vpack.c.b16 %v4196, %v4195
        %v4230 = vpack.c.b16 %v4198, %v4197
        %v4231 = vpack.c.b16 %v4200, %v4199
        %v4232 = vpack.c.b16 %v4202, %v4201
        %v4233 = vpack.c.b16 %v4204, %v4203
        %v4234 = vpack.c.b16 %v4206, %v4205
        %v4235 = vpack.c.b16 %v4208, %v4207
        %v4236 = vpack.c.b16 %v4210, %v4209
        %v4237 = vpack.c.b16 %v4212, %v4211
        %v4238 = vpack.c.b16 %v4214, %v4213
        %v4239 = vpack.c.b16 %v4216, %v4215
        %v4240 = vpack.c.b16 %v4218, %v4217
        %v4241 = vpack.c.b16 %v4220, %v4219
        %v4242 = vpack.c.b16 %v4222, %v4221
        %v4243 = vpack.c.b16 %v4224, %v4223
        %v4244 = vpack.c.b16 %v4225, %v4225
        %vm4245 = vsmask.f32 5376
        %v4247 = vshrl.u32 %v4226, 16
        %v4249 = vrot.slane %v4247, 2
        %v4250 = vshll.u32 %v4226, 16
        %v4252 = vrot.slane %v4250, 3
        %v4253 = vor.u32 %v4249, %v4252
        %v4255 = vshrl.u32 %v4227, 16
        %v4257 = vrot.slane %v4255, 2
        %v4258 = vshll.u32 %v4227, 16
        %v4260 = vrot.slane %v4258, 3
        %v4261 = vor.u32 %v4257, %v4260
        %v4262 = vsel %vm4245, %v4253, %v4261
        %v4264 = vshrl.u32 %v4228, 16
        %v4266 = vrot.slane %v4264, 2
        %v4267 = vshll.u32 %v4228, 16
        %v4269 = vrot.slane %v4267, 3
        %v4270 = vor.u32 %v4266, %v4269
        %v4271 = vsel %vm4245, %v4261, %v4270
        %v4273 = vshrl.u32 %v4229, 16
        %v4275 = vrot.slane %v4273, 2
        %v4276 = vshll.u32 %v4229, 16
        %v4278 = vrot.slane %v4276, 3
        %v4279 = vor.u32 %v4275, %v4278
        %v4280 = vsel %vm4245, %v4270, %v4279
        %v4282 = vshrl.u32 %v4230, 16
        %v4284 = vrot.slane %v4282, 2
        %v4285 = vshll.u32 %v4230, 16
        %v4287 = vrot.slane %v4285, 3
        %v4288 = vor.u32 %v4284, %v4287
        %v4289 = vsel %vm4245, %v4279, %v4288
        %v4291 = vshrl.u32 %v4231, 16
        %v4293 = vrot.slane %v4291, 2
        %v4294 = vshll.u32 %v4231, 16
        %v4296 = vrot.slane %v4294, 3
        %v4297 = vor.u32 %v4293, %v4296
        %v4298 = vsel %vm4245, %v4288, %v4297
        %v4300 = vshrl.u32 %v4232, 16
        %v4302 = vrot.slane %v4300, 2
        %v4303 = vshll.u32 %v4232, 16
        %v4305 = vrot.slane %v4303, 3
        %v4306 = vor.u32 %v4302, %v4305
        %v4307 = vsel %vm4245, %v4297, %v4306
        %v4309 = vshrl.u32 %v4233, 16
        %v4311 = vrot.slane %v4309, 2
        %v4312 = vshll.u32 %v4233, 16
        %v4314 = vrot.slane %v4312, 3
        %v4315 = vor.u32 %v4311, %v4314
        %v4316 = vsel %vm4245, %v4306, %v4315
        %v4318 = vshrl.u32 %v4234, 16
        %v4320 = vrot.slane %v4318, 2
        %v4321 = vshll.u32 %v4234, 16
        %v4323 = vrot.slane %v4321, 3
        %v4324 = vor.u32 %v4320, %v4323
        %v4325 = vsel %vm4245, %v4315, %v4324
        %v4327 = vshrl.u32 %v4235, 16
        %v4329 = vrot.slane %v4327, 2
        %v4330 = vshll.u32 %v4235, 16
        %v4332 = vrot.slane %v4330, 3
        %v4333 = vor.u32 %v4329, %v4332
        %v4334 = vsel %vm4245, %v4324, %v4333
        %v4336 = vshrl.u32 %v4236, 16
        %v4338 = vrot.slane %v4336, 2
        %v4339 = vshll.u32 %v4236, 16
        %v4341 = vrot.slane %v4339, 3
        %v4342 = vor.u32 %v4338, %v4341
        %v4343 = vsel %vm4245, %v4333, %v4342
        %v4345 = vshrl.u32 %v4237, 16
        %v4347 = vrot.slane %v4345, 2
        %v4348 = vshll.u32 %v4237, 16
        %v4350 = vrot.slane %v4348, 3
        %v4351 = vor.u32 %v4347, %v4350
        %v4352 = vsel %vm4245, %v4342, %v4351
        %v4354 = vshrl.u32 %v4238, 16
        %v4356 = vrot.slane %v4354, 2
        %v4357 = vshll.u32 %v4238, 16
        %v4359 = vrot.slane %v4357, 3
        %v4360 = vor.u32 %v4356, %v4359
        %v4361 = vsel %vm4245, %v4351, %v4360
        %v4363 = vshrl.u32 %v4239, 16
        %v4365 = vrot.slane %v4363, 2
        %v4366 = vshll.u32 %v4239, 16
        %v4368 = vrot.slane %v4366, 3
        %v4369 = vor.u32 %v4365, %v4368
        %v4370 = vsel %vm4245, %v4360, %v4369
        %v4372 = vshrl.u32 %v4240, 16
        %v4374 = vrot.slane %v4372, 2
        %v4375 = vshll.u32 %v4240, 16
        %v4377 = vrot.slane %v4375, 3
        %v4378 = vor.u32 %v4374, %v4377
        %v4379 = vsel %vm4245, %v4369, %v4378
        %v4381 = vshrl.u32 %v4241, 16
        %v4383 = vrot.slane %v4381, 2
        %v4384 = vshll.u32 %v4241, 16
        %v4386 = vrot.slane %v4384, 3
        %v4387 = vor.u32 %v4383, %v4386
        %v4388 = vsel %vm4245, %v4378, %v4387
        %v4390 = vshrl.u32 %v4242, 16
        %v4392 = vrot.slane %v4390, 2
        %v4393 = vshll.u32 %v4242, 16
        %v4395 = vrot.slane %v4393, 3
        %v4396 = vor.u32 %v4392, %v4395
        %v4397 = vsel %vm4245, %v4387, %v4396
        %v4399 = vshrl.u32 %v4243, 16
        %v4401 = vrot.slane %v4399, 2
        %v4402 = vshll.u32 %v4243, 16
        %v4404 = vrot.slane %v4402, 3
        %v4405 = vor.u32 %v4401, %v4404
        %v4406 = vsel %vm4245, %v4396, %v4405
        %v4408 = vshrl.u32 %v4244, 16
        %v4410 = vrot.slane %v4408, 2
        %v4411 = vshll.u32 %v4244, 16
        %v4413 = vrot.slane %v4411, 3
        %v4414 = vor.u32 %v4410, %v4413
        %v4415 = vsel %vm4245, %v4405, %v4414
        %v4417 = vsel %vm455, %v4262, 0
        %v4420 = vsel %vm455, %v4271, 0
        %v4423 = vsel %vm455, %v4280, 0
        %v4426 = vsel %vm455, %v4289, 0
        %v4429 = vsel %vm455, %v4298, 0
        %v4432 = vsel %vm455, %v4307, 0
        %v4435 = vsel %vm455, %v4316, 0
        %v4438 = vsel %vm455, %v4325, 0
        %v4441 = vsel %vm455, %v4334, 0
        %v4444 = vsel %vm455, %v4343, 0
        %v4447 = vsel %vm455, %v4352, 0
        %v4450 = vsel %vm455, %v4361, 0
        %v4453 = vsel %vm455, %v4370, 0
        %v4456 = vsel %vm455, %v4379, 0
        %v4459 = vsel %vm455, %v4388, 0
        %v4462 = vsel %vm455, %v4397, 0
        %v4465 = vsel %vm455, %v4406, 0
        %v4468 = vsel %vm455, %v4415, 0
        %v4471 = vsel %vm510, %v4151, 0
        %4473 = vmatprep.subr.bf16.mxu0 0
        %4474 = vmatpush1.bf16.msra.mxu0 0
        %4475 = vmatprep.subr.bf16.mxu0 0
        %4476 = vmatpush1.bf16.msra.mxu0 0
        %4477 = vmatprep.subr.bf16.mxu0 0
        %4478 = vmatpush1.bf16.msra.mxu0 0
        %4479 = vmatprep.subr.bf16.mxu0 0
        %4480 = vmatpush1.bf16.msra.mxu0 0
        %4481 = vmatprep.subr.bf16.mxu0 0
        %4482 = vmatpush1.bf16.msra.mxu0 0
        %4483 = vmatprep.subr.bf16.mxu0 0
        %4484 = vmatpush1.bf16.msra.mxu0 0
        %4485 = vmatprep.subr.bf16.mxu0 0
        %4486 = vmatpush1.bf16.msra.mxu0 0
        %4487 = vmatprep.subr.bf16.mxu0 0
        %4488 = vmatpush1.bf16.msra.mxu0 %v4471
        %4489 = vmatprep.subr.bf16.mxu0 0
        %4490 = vmatpush2.bf16.msra.mxu0 0
        %4491 = vmatprep.subr.bf16.mxu0 0
        %4492 = vmatpush2.bf16.msra.mxu0 0
        %4493 = vmatprep.subr.bf16.mxu0 0
        %4494 = vmatpush2.bf16.msra.mxu0 0
        %4495 = vmatprep.subr.bf16.mxu0 0
        %4496 = vmatpush2.bf16.msra.mxu0 0
        %4497 = vmatprep.subr.bf16.mxu0 0
        %4498 = vmatpush2.bf16.msra.mxu0 0
        %4499 = vmatprep.subr.bf16.mxu0 0
        %4500 = vmatpush2.bf16.msra.mxu0 0
        %4501 = vmatprep.subr.bf16.mxu0 0
        %4502 = vmatpush2.bf16.msra.mxu0 0
        %4503 = vmatprep.subr.bf16.mxu0 0
        %4504 = vmatpush2.bf16.msra.mxu0 0
        %4505 = vmatprep.mubr.bf16.mxu0 0
        %4506 = vmatmul.mubr.bf16.gmra.mxu0 %v4417
        %v4507 = vpop.f32.mrf.mxu0
        %v4508 = vadd.f32 0.0, %v4507
        %v4509 = vpop.f32.mrf.mxu0
        %v4510 = vpop.f32.mrf.mxu0
        %v4511 = vadd.f32 0.0, %v4510
        %v4512 = vpop.f32.mrf.mxu0
        %4513 = vmatprep.mubr.bf16.mxu0 0
        %4514 = vmatmul.mubr.bf16.gmra.mxu0 %v4420
        %v4515 = vpop.f32.mrf.mxu0
        %v4516 = vadd.f32 0.0, %v4515
        %v4517 = vpop.f32.mrf.mxu0
        %v4518 = vpop.f32.mrf.mxu0
        %v4519 = vadd.f32 0.0, %v4518
        %v4520 = vpop.f32.mrf.mxu0
        %4521 = vmatprep.mubr.bf16.mxu0 0
        %4522 = vmatmul.mubr.bf16.gmra.mxu0 %v4423
        %v4523 = vpop.f32.mrf.mxu0
        %v4524 = vadd.f32 0.0, %v4523
        %v4525 = vpop.f32.mrf.mxu0
        %v4526 = vpop.f32.mrf.mxu0
        %v4527 = vadd.f32 0.0, %v4526
        %v4528 = vpop.f32.mrf.mxu0
        %4529 = vmatprep.mubr.bf16.mxu0 0
        %4530 = vmatmul.mubr.bf16.gmra.mxu0 %v4426
        %v4531 = vpop.f32.mrf.mxu0
        %v4532 = vadd.f32 0.0, %v4531
        %v4533 = vpop.f32.mrf.mxu0
        %v4534 = vpop.f32.mrf.mxu0
        %v4535 = vadd.f32 0.0, %v4534
        %v4536 = vpop.f32.mrf.mxu0
        %4537 = vmatprep.mubr.bf16.mxu0 0
        %4538 = vmatmul.mubr.bf16.gmra.mxu0 %v4429
        %v4539 = vpop.f32.mrf.mxu0
        %v4540 = vadd.f32 0.0, %v4539
        %v4541 = vpop.f32.mrf.mxu0
        %v4542 = vpop.f32.mrf.mxu0
        %v4543 = vadd.f32 0.0, %v4542
        %v4544 = vpop.f32.mrf.mxu0
        %4545 = vmatprep.mubr.bf16.mxu0 0
        %4546 = vmatmul.mubr.bf16.gmra.mxu0 %v4432
        %v4547 = vpop.f32.mrf.mxu0
        %v4548 = vadd.f32 0.0, %v4547
        %v4549 = vpop.f32.mrf.mxu0
        %v4550 = vpop.f32.mrf.mxu0
        %v4551 = vadd.f32 0.0, %v4550
        %v4552 = vpop.f32.mrf.mxu0
        %4553 = vmatprep.mubr.bf16.mxu0 0
        %4554 = vmatmul.mubr.bf16.gmra.mxu0 %v4435
        %v4555 = vpop.f32.mrf.mxu0
        %v4556 = vadd.f32 0.0, %v4555
        %v4557 = vpop.f32.mrf.mxu0
        %v4558 = vpop.f32.mrf.mxu0
        %v4559 = vadd.f32 0.0, %v4558
        %v4560 = vpop.f32.mrf.mxu0
        %4561 = vmatprep.mubr.bf16.mxu0 0
        %4562 = vmatmul.mubr.bf16.gmra.mxu0 %v4438
        %v4563 = vpop.f32.mrf.mxu0
        %v4564 = vadd.f32 0.0, %v4563
        %v4565 = vpop.f32.mrf.mxu0
        %v4566 = vpop.f32.mrf.mxu0
        %v4567 = vadd.f32 0.0, %v4566
        %v4568 = vpop.f32.mrf.mxu0
        %4569 = vmatprep.mubr.bf16.mxu0 0
        %4570 = vmatmul.mubr.bf16.gmra.mxu0 %v4441
        %v4571 = vpop.f32.mrf.mxu0
        %v4572 = vadd.f32 0.0, %v4571
        %v4573 = vpop.f32.mrf.mxu0
        %v4574 = vpop.f32.mrf.mxu0
        %v4575 = vadd.f32 0.0, %v4574
        %v4576 = vpop.f32.mrf.mxu0
        %4577 = vmatprep.mubr.bf16.mxu0 0
        %4578 = vmatmul.mubr.bf16.gmra.mxu0 %v4444
        %v4579 = vpop.f32.mrf.mxu0
        %v4580 = vadd.f32 0.0, %v4579
        %v4581 = vpop.f32.mrf.mxu0
        %v4582 = vpop.f32.mrf.mxu0
        %v4583 = vadd.f32 0.0, %v4582
        %v4584 = vpop.f32.mrf.mxu0
        %4585 = vmatprep.mubr.bf16.mxu0 0
        %4586 = vmatmul.mubr.bf16.gmra.mxu0 %v4447
        %v4587 = vpop.f32.mrf.mxu0
        %v4588 = vadd.f32 0.0, %v4587
        %v4589 = vpop.f32.mrf.mxu0
        %v4590 = vpop.f32.mrf.mxu0
        %v4591 = vadd.f32 0.0, %v4590
        %v4592 = vpop.f32.mrf.mxu0
        %4593 = vmatprep.mubr.bf16.mxu0 0
        %4594 = vmatmul.mubr.bf16.gmra.mxu0 %v4450
        %v4595 = vpop.f32.mrf.mxu0
        %v4596 = vadd.f32 0.0, %v4595
        %v4597 = vpop.f32.mrf.mxu0
        %v4598 = vpop.f32.mrf.mxu0
        %v4599 = vadd.f32 0.0, %v4598
        %v4600 = vpop.f32.mrf.mxu0
        %4601 = vmatprep.mubr.bf16.mxu0 0
        %4602 = vmatmul.mubr.bf16.gmra.mxu0 %v4453
        %v4603 = vpop.f32.mrf.mxu0
        %v4604 = vadd.f32 0.0, %v4603
        %v4605 = vpop.f32.mrf.mxu0
        %v4606 = vpop.f32.mrf.mxu0
        %v4607 = vadd.f32 0.0, %v4606
        %v4608 = vpop.f32.mrf.mxu0
        %4609 = vmatprep.mubr.bf16.mxu0 0
        %4610 = vmatmul.mubr.bf16.gmra.mxu0 %v4456
        %v4611 = vpop.f32.mrf.mxu0
        %v4612 = vadd.f32 0.0, %v4611
        %v4613 = vpop.f32.mrf.mxu0
        %v4614 = vpop.f32.mrf.mxu0
        %v4615 = vadd.f32 0.0, %v4614
        %v4616 = vpop.f32.mrf.mxu0
        %4617 = vmatprep.mubr.bf16.mxu0 0
        %4618 = vmatmul.mubr.bf16.gmra.mxu0 %v4459
        %v4619 = vpop.f32.mrf.mxu0
        %v4620 = vadd.f32 0.0, %v4619
        %v4621 = vpop.f32.mrf.mxu0
        %v4622 = vpop.f32.mrf.mxu0
        %v4623 = vadd.f32 0.0, %v4622
        %v4624 = vpop.f32.mrf.mxu0
        %4625 = vmatprep.mubr.bf16.mxu0 0
        %4626 = vmatmul.mubr.bf16.gmra.mxu0 %v4462
        %v4627 = vpop.f32.mrf.mxu0
        %v4628 = vadd.f32 0.0, %v4627
        %v4629 = vpop.f32.mrf.mxu0
        %v4630 = vpop.f32.mrf.mxu0
        %v4631 = vadd.f32 0.0, %v4630
        %v4632 = vpop.f32.mrf.mxu0
        %4633 = vmatprep.mubr.bf16.mxu0 0
        %4634 = vmatmul.mubr.bf16.gmra.mxu0 %v4465
        %v4635 = vpop.f32.mrf.mxu0
        %v4636 = vadd.f32 0.0, %v4635
        %v4637 = vpop.f32.mrf.mxu0
        %v4638 = vpop.f32.mrf.mxu0
        %v4639 = vadd.f32 0.0, %v4638
        %v4640 = vpop.f32.mrf.mxu0
        %4641 = vmatprep.mubr.bf16.mxu0 0
        %4642 = vmatmul.mubr.bf16.gmra.mxu0 %v4468
        %v4643 = vpop.f32.mrf.mxu0
        %v4644 = vadd.f32 0.0, %v4643
        %v4645 = vpop.f32.mrf.mxu0
        %v4646 = vpop.f32.mrf.mxu0
        %v4647 = vadd.f32 0.0, %v4646
        %v4648 = vpop.f32.mrf.mxu0
        %4649 = vdwg.mxu0
        %v4650 = vadd.f32 %v4077, %v4508
        %v4651 = vadd.f32 %v4078, %v4511
        %v4652 = vadd.f32 %v4079, %v4516
        %v4653 = vadd.f32 %v4080, %v4519
        %v4654 = vadd.f32 %v4081, %v4524
        %v4655 = vadd.f32 %v4082, %v4527
        %v4656 = vadd.f32 %v4083, %v4532
        %v4657 = vadd.f32 %v4084, %v4535
        %v4658 = vadd.f32 %v4085, %v4540
        %v4659 = vadd.f32 %v4086, %v4543
        %v4660 = vadd.f32 %v4087, %v4548
        %v4661 = vadd.f32 %v4088, %v4551
        %v4662 = vadd.f32 %v4089, %v4556
        %v4663 = vadd.f32 %v4090, %v4559
        %v4664 = vadd.f32 %v4091, %v4564
        %v4665 = vadd.f32 %v4092, %v4567
        %v4666 = vadd.f32 %v4093, %v4572
        %v4667 = vadd.f32 %v4094, %v4575
        %v4668 = vadd.f32 %v4095, %v4580
        %v4669 = vadd.f32 %v4096, %v4583
        %v4670 = vadd.f32 %v4097, %v4588
        %v4671 = vadd.f32 %v4098, %v4591
        %v4672 = vadd.f32 %v4099, %v4596
        %v4673 = vadd.f32 %v4100, %v4599
        %v4674 = vadd.f32 %v4101, %v4604
        %v4675 = vadd.f32 %v4102, %v4607
        %v4676 = vadd.f32 %v4103, %v4612
        %v4677 = vadd.f32 %v4104, %v4615
        %v4678 = vadd.f32 %v4105, %v4620
        %v4679 = vadd.f32 %v4106, %v4623
        %v4680 = vadd.f32 %v4107, %v4628
        %v4681 = vadd.f32 %v4108, %v4631
        %v4682 = vadd.f32 %v4109, %v4636
        %v4683 = vadd.f32 %v4110, %v4639
        %v4684 = vadd.f32 %v4111, %v4644
        %v4685 = vadd.f32 %v4112, %v4647
        %4686 = vst [vmem:[#allocation2] sm:$0xff] %v4650
        %4687 = vst [vmem:[#allocation2 + $0x8] sm:$0xff] %v4651
        %4688 = vst [vmem:[#allocation2 + $0x10] sm:$0xff] %v4652
        %4689 = vst [vmem:[#allocation2 + $0x18] sm:$0xff] %v4653
        %4690 = vst [vmem:[#allocation2 + $0x20] sm:$0xff] %v4654
        %4691 = vst [vmem:[#allocation2 + $0x28] sm:$0xff] %v4655
        %4692 = vst [vmem:[#allocation2 + $0x30] sm:$0xff] %v4656
        %4693 = vst [vmem:[#allocation2 + $0x38] sm:$0xff] %v4657
        %4694 = vst [vmem:[#allocation2 + $0x40] sm:$0xff] %v4658
        %4695 = vst [vmem:[#allocation2 + $0x48] sm:$0xff] %v4659
        %4696 = vst [vmem:[#allocation2 + $0x50] sm:$0xff] %v4660
        %4697 = vst [vmem:[#allocation2 + $0x58] sm:$0xff] %v4661
        %4698 = vst [vmem:[#allocation2 + $0x60] sm:$0xff] %v4662
        %4699 = vst [vmem:[#allocation2 + $0x68] sm:$0xff] %v4663
        %4700 = vst [vmem:[#allocation2 + $0x70] sm:$0xff] %v4664
        %4701 = vst [vmem:[#allocation2 + $0x78] sm:$0xff] %v4665
        %4702 = vst [vmem:[#allocation2 + $0x80] sm:$0xff] %v4666
        %4703 = vst [vmem:[#allocation2 + $0x88] sm:$0xff] %v4667
        %4704 = vst [vmem:[#allocation2 + $0x90] sm:$0xff] %v4668
        %4705 = vst [vmem:[#allocation2 + $0x98] sm:$0xff] %v4669
        %4706 = vst [vmem:[#allocation2 + $0xa0] sm:$0xff] %v4670
        %4707 = vst [vmem:[#allocation2 + $0xa8] sm:$0xff] %v4671
        %4708 = vst [vmem:[#allocation2 + $0xb0] sm:$0xff] %v4672
        %4709 = vst [vmem:[#allocation2 + $0xb8] sm:$0xff] %v4673
        %4710 = vst [vmem:[#allocation2 + $0xc0] sm:$0xff] %v4674
        %4711 = vst [vmem:[#allocation2 + $0xc8] sm:$0xff] %v4675
        %4712 = vst [vmem:[#allocation2 + $0xd0] sm:$0xff] %v4676
        %4713 = vst [vmem:[#allocation2 + $0xd8] sm:$0xff] %v4677
        %4714 = vst [vmem:[#allocation2 + $0xe0] sm:$0xff] %v4678
        %4715 = vst [vmem:[#allocation2 + $0xe8] sm:$0xff] %v4679
        %4716 = vst [vmem:[#allocation2 + $0xf0] sm:$0xff] %v4680
        %4717 = vst [vmem:[#allocation2 + $0xf8] sm:$0xff] %v4681
        %4718 = vst [vmem:[#allocation2 + $0x100] sm:$0xff] %v4682
        %4719 = vst [vmem:[#allocation2 + $0x108] sm:$0xff] %v4683
        %4720 = vst [vmem:[#allocation2 + $0x110] sm:$0xff] %v4684
        %4721 = vst [vmem:[#allocation2 + $0x118] sm:$0xff] %v4685
        %v4722 = vld [vmem:[#allocation2] sm:$0xff]
        %v4723 = vld [vmem:[#allocation2 + $0x8] sm:$0xff]
        %v4724 = vld [vmem:[#allocation2 + $0x10] sm:$0xff]
        %v4725 = vld [vmem:[#allocation2 + $0x18] sm:$0xff]
        %v4726 = vld [vmem:[#allocation2 + $0x20] sm:$0xff]
        %v4727 = vld [vmem:[#allocation2 + $0x28] sm:$0xff]
        %v4728 = vld [vmem:[#allocation2 + $0x30] sm:$0xff]
        %v4729 = vld [vmem:[#allocation2 + $0x38] sm:$0xff]
        %v4730 = vld [vmem:[#allocation2 + $0x40] sm:$0xff]
        %v4731 = vld [vmem:[#allocation2 + $0x48] sm:$0xff]
        %v4732 = vld [vmem:[#allocation2 + $0x50] sm:$0xff]
        %v4733 = vld [vmem:[#allocation2 + $0x58] sm:$0xff]
        %v4734 = vld [vmem:[#allocation2 + $0x60] sm:$0xff]
        %v4735 = vld [vmem:[#allocation2 + $0x68] sm:$0xff]
        %v4736 = vld [vmem:[#allocation2 + $0x70] sm:$0xff]
        %v4737 = vld [vmem:[#allocation2 + $0x78] sm:$0xff]
        %v4738 = vld [vmem:[#allocation2 + $0x80] sm:$0xff]
        %v4739 = vld [vmem:[#allocation2 + $0x88] sm:$0xff]
        %v4740 = vld [vmem:[#allocation2 + $0x90] sm:$0xff]
        %v4741 = vld [vmem:[#allocation2 + $0x98] sm:$0xff]
        %v4742 = vld [vmem:[#allocation2 + $0xa0] sm:$0xff]
        %v4743 = vld [vmem:[#allocation2 + $0xa8] sm:$0xff]
        %v4744 = vld [vmem:[#allocation2 + $0xb0] sm:$0xff]
        %v4745 = vld [vmem:[#allocation2 + $0xb8] sm:$0xff]
        %v4746 = vld [vmem:[#allocation2 + $0xc0] sm:$0xff]
        %v4747 = vld [vmem:[#allocation2 + $0xc8] sm:$0xff]
        %v4748 = vld [vmem:[#allocation2 + $0xd0] sm:$0xff]
        %v4749 = vld [vmem:[#allocation2 + $0xd8] sm:$0xff]
        %v4750 = vld [vmem:[#allocation2 + $0xe0] sm:$0xff]
        %v4751 = vld [vmem:[#allocation2 + $0xe8] sm:$0xff]
        %v4752 = vld [vmem:[#allocation2 + $0xf0] sm:$0xff]
        %v4753 = vld [vmem:[#allocation2 + $0xf8] sm:$0xff]
        %v4754 = vld [vmem:[#allocation2 + $0x100] sm:$0xff]
        %v4755 = vld [vmem:[#allocation2 + $0x108] sm:$0xff]
        %v4756 = vld [vmem:[#allocation2 + $0x110] sm:$0xff]
        %v4757 = vld [vmem:[#allocation2 + $0x118] sm:$0xff]
        %v4758 = vld [vmem:[%s244 + $0x10] sm:$0x8]
        %v4759 = vld [vmem:[%s244 + $0x14] sm:$0xf]
        %v4760 = vld [vmem:[%s244 + $0x18] sm:$0xf]
        %v4761 = vld [vmem:[%s244 + $0x1c] sm:$0xf]
        %v4762 = vld [vmem:[%s244 + $0x20] sm:$0xf]
        %v4763 = vld [vmem:[%s244 + $0x24] sm:$0xf]
        %v4764 = vld [vmem:[%s244 + $0x28] sm:$0xf]
        %v4765 = vld [vmem:[%s244 + $0x2c] sm:$0xf]
        %v4766 = vld [vmem:[%s244 + $0x30] sm:$0xf]
        %v4767 = vld [vmem:[%s244 + $0x34] sm:$0xf]
        %v4768 = vld [vmem:[%s244 + $0x38] sm:$0xf]
        %v4769 = vld [vmem:[%s244 + $0x3c] sm:$0xf]
        %v4770 = vld [vmem:[%s244 + $0x40] sm:$0xf]
        %v4771 = vld [vmem:[%s244 + $0x44] sm:$0xf]
        %v4772 = vld [vmem:[%s244 + $0x48] sm:$0xf]
        %v4773 = vld [vmem:[%s244 + $0x4c] sm:$0xf]
        %v4774 = vld [vmem:[%s244 + $0x50] sm:$0xf]
        %v4775 = vld [vmem:[%s244 + $0x54] sm:$0xf]
        %v4776 = vld [vmem:[%s244 + $0x58] sm:$0xf]
        %v4777 = vld [vmem:[%s244 + $0x5c] sm:$0xf]
        %v4778 = vld [vmem:[%s244 + $0x60] sm:$0xf]
        %v4779 = vld [vmem:[%s244 + $0x64] sm:$0xf]
        %v4780 = vld [vmem:[%s244 + $0x68] sm:$0xf]
        %v4781 = vld [vmem:[%s244 + $0x6c] sm:$0xf]
        %v4782 = vld [vmem:[%s244 + $0x70] sm:$0xf]
        %v4783 = vld [vmem:[%s244 + $0x74] sm:$0xf]
        %v4784 = vld [vmem:[%s244 + $0x78] sm:$0xf]
        %v4785 = vld [vmem:[%s244 + $0x7c] sm:$0xf]
        %v4786 = vld [vmem:[%s244 + $0x80] sm:$0xf]
        %v4787 = vld [vmem:[%s244 + $0x84] sm:$0xf]
        %v4788 = vld [vmem:[%s244 + $0x88] sm:$0xf]
        %v4789 = vld [vmem:[%s244 + $0x8c] sm:$0xf]
        %v4790 = vld [vmem:[%s244 + $0x90] sm:$0xf]
        %v4791 = vld [vmem:[%s244 + $0x94] sm:$0xf]
        %v4792 = vld [vmem:[%s244 + $0x98] sm:$0xf]
        %v4793 = vld [vmem:[%s244 + $0x9c] sm:$0xf]
        %v4794 = vld [vmem:[%s244 + $0xa0] sm:$0x7]
        %s4795 = scalar_lea.vmem %s248, 32
        %v4796 = vld [vmem:[%s4795] sm:$0xf]
        %v4834 = vunpack.c.l.b16 %v4758
        %v4835 = vunpack.c.l.b16 %v4759
        %v4836 = vunpack.c.l.b16 %v4760
        %v4837 = vunpack.c.l.b16 %v4761
        %v4838 = vunpack.c.l.b16 %v4762
        %v4839 = vunpack.c.l.b16 %v4763
        %v4840 = vunpack.c.l.b16 %v4764
        %v4841 = vunpack.c.l.b16 %v4765
        %v4842 = vunpack.c.l.b16 %v4766
        %v4843 = vunpack.c.l.b16 %v4767
        %v4844 = vunpack.c.l.b16 %v4768
        %v4845 = vunpack.c.l.b16 %v4769
        %v4846 = vunpack.c.l.b16 %v4770
        %v4847 = vunpack.c.l.b16 %v4771
        %v4848 = vunpack.c.l.b16 %v4772
        %v4849 = vunpack.c.l.b16 %v4773
        %v4850 = vunpack.c.l.b16 %v4774
        %v4851 = vunpack.c.l.b16 %v4775
        %v4852 = vunpack.c.l.b16 %v4776
        %v4853 = vunpack.c.l.b16 %v4777
        %v4854 = vunpack.c.l.b16 %v4778
        %v4855 = vunpack.c.l.b16 %v4779
        %v4856 = vunpack.c.l.b16 %v4780
        %v4857 = vunpack.c.l.b16 %v4781
        %v4858 = vunpack.c.l.b16 %v4782
        %v4859 = vunpack.c.l.b16 %v4783
        %v4860 = vunpack.c.l.b16 %v4784
        %v4861 = vunpack.c.l.b16 %v4785
        %v4862 = vunpack.c.l.b16 %v4786
        %v4863 = vunpack.c.l.b16 %v4787
        %v4864 = vunpack.c.l.b16 %v4788
        %v4865 = vunpack.c.l.b16 %v4789
        %v4866 = vunpack.c.l.b16 %v4790
        %v4867 = vunpack.c.l.b16 %v4791
        %v4868 = vunpack.c.l.b16 %v4792
        %v4869 = vunpack.c.l.b16 %v4793
        %v4870 = vunpack.c.l.b16 %v4794
        %v4871 = vpack.c.b16 %v4835, %v4834
        %v4872 = vpack.c.b16 %v4837, %v4836
        %v4873 = vpack.c.b16 %v4839, %v4838
        %v4874 = vpack.c.b16 %v4841, %v4840
        %v4875 = vpack.c.b16 %v4843, %v4842
        %v4876 = vpack.c.b16 %v4845, %v4844
        %v4877 = vpack.c.b16 %v4847, %v4846
        %v4878 = vpack.c.b16 %v4849, %v4848
        %v4879 = vpack.c.b16 %v4851, %v4850
        %v4880 = vpack.c.b16 %v4853, %v4852
        %v4881 = vpack.c.b16 %v4855, %v4854
        %v4882 = vpack.c.b16 %v4857, %v4856
        %v4883 = vpack.c.b16 %v4859, %v4858
        %v4884 = vpack.c.b16 %v4861, %v4860
        %v4885 = vpack.c.b16 %v4863, %v4862
        %v4886 = vpack.c.b16 %v4865, %v4864
        %v4887 = vpack.c.b16 %v4867, %v4866
        %v4888 = vpack.c.b16 %v4869, %v4868
        %v4889 = vpack.c.b16 %v4870, %v4870
        %vm4890 = vcmask 1044480
        %v4891 = vrot.slane %v4871, 3
        %v4892 = vrot.slane %v4872, 3
        %v4893 = vsel %vm4890, %v4891, %v4892
        %v4894 = vrot.slane %v4873, 3
        %v4895 = vsel %vm4890, %v4892, %v4894
        %v4896 = vrot.slane %v4874, 3
        %v4897 = vsel %vm4890, %v4894, %v4896
        %v4898 = vrot.slane %v4875, 3
        %v4899 = vsel %vm4890, %v4896, %v4898
        %v4900 = vrot.slane %v4876, 3
        %v4901 = vsel %vm4890, %v4898, %v4900
        %v4902 = vrot.slane %v4877, 3
        %v4903 = vsel %vm4890, %v4900, %v4902
        %v4904 = vrot.slane %v4878, 3
        %v4905 = vsel %vm4890, %v4902, %v4904
        %v4906 = vrot.slane %v4879, 3
        %v4907 = vsel %vm4890, %v4904, %v4906
        %v4908 = vrot.slane %v4880, 3
        %v4909 = vsel %vm4890, %v4906, %v4908
        %v4910 = vrot.slane %v4881, 3
        %v4911 = vsel %vm4890, %v4908, %v4910
        %v4912 = vrot.slane %v4882, 3
        %v4913 = vsel %vm4890, %v4910, %v4912
        %v4914 = vrot.slane %v4883, 3
        %v4915 = vsel %vm4890, %v4912, %v4914
        %v4916 = vrot.slane %v4884, 3
        %v4917 = vsel %vm4890, %v4914, %v4916
        %v4918 = vrot.slane %v4885, 3
        %v4919 = vsel %vm4890, %v4916, %v4918
        %v4920 = vrot.slane %v4886, 3
        %v4921 = vsel %vm4890, %v4918, %v4920
        %v4922 = vrot.slane %v4887, 3
        %v4923 = vsel %vm4890, %v4920, %v4922
        %v4924 = vrot.slane %v4888, 3
        %v4925 = vsel %vm4890, %v4922, %v4924
        %v4926 = vrot.slane %v4889, 3
        %v4927 = vsel %vm4890, %v4924, %v4926
        %v4929 = vsel %vm455, %v4893, 0
        %v4932 = vsel %vm455, %v4895, 0
        %v4935 = vsel %vm455, %v4897, 0
        %v4938 = vsel %vm455, %v4899, 0
        %v4941 = vsel %vm455, %v4901, 0
        %v4944 = vsel %vm455, %v4903, 0
        %v4947 = vsel %vm455, %v4905, 0
        %v4950 = vsel %vm455, %v4907, 0
        %v4953 = vsel %vm455, %v4909, 0
        %v4956 = vsel %vm455, %v4911, 0
        %v4959 = vsel %vm455, %v4913, 0
        %v4962 = vsel %vm455, %v4915, 0
        %v4965 = vsel %vm455, %v4917, 0
        %v4968 = vsel %vm455, %v4919, 0
        %v4971 = vsel %vm455, %v4921, 0
        %v4974 = vsel %vm455, %v4923, 0
        %v4977 = vsel %vm455, %v4925, 0
        %v4980 = vsel %vm455, %v4927, 0
        %v4983 = vsel %vm510, %v4796, 0
        %4985 = vmatprep.subr.bf16.mxu0 0
        %4986 = vmatpush1.bf16.msra.mxu0 0
        %4987 = vmatprep.subr.bf16.mxu0 0
        %4988 = vmatpush1.bf16.msra.mxu0 0
        %4989 = vmatprep.subr.bf16.mxu0 0
        %4990 = vmatpush1.bf16.msra.mxu0 0
        %4991 = vmatprep.subr.bf16.mxu0 0
        %4992 = vmatpush1.bf16.msra.mxu0 0
        %4993 = vmatprep.subr.bf16.mxu0 0
        %4994 = vmatpush1.bf16.msra.mxu0 0
        %4995 = vmatprep.subr.bf16.mxu0 0
        %4996 = vmatpush1.bf16.msra.mxu0 0
        %4997 = vmatprep.subr.bf16.mxu0 0
        %4998 = vmatpush1.bf16.msra.mxu0 0
        %4999 = vmatprep.subr.bf16.mxu0 0
        %5000 = vmatpush1.bf16.msra.mxu0 %v4983
        %5001 = vmatprep.subr.bf16.mxu0 0
        %5002 = vmatpush2.bf16.msra.mxu0 0
        %5003 = vmatprep.subr.bf16.mxu0 0
        %5004 = vmatpush2.bf16.msra.mxu0 0
        %5005 = vmatprep.subr.bf16.mxu0 0
        %5006 = vmatpush2.bf16.msra.mxu0 0
        %5007 = vmatprep.subr.bf16.mxu0 0
        %5008 = vmatpush2.bf16.msra.mxu0 0
        %5009 = vmatprep.subr.bf16.mxu0 0
        %5010 = vmatpush2.bf16.msra.mxu0 0
        %5011 = vmatprep.subr.bf16.mxu0 0
        %5012 = vmatpush2.bf16.msra.mxu0 0
        %5013 = vmatprep.subr.bf16.mxu0 0
        %5014 = vmatpush2.bf16.msra.mxu0 0
        %5015 = vmatprep.subr.bf16.mxu0 0
        %5016 = vmatpush2.bf16.msra.mxu0 0
        %5017 = vmatprep.mubr.bf16.mxu0 0
        %5018 = vmatmul.mubr.bf16.gmra.mxu0 %v4929
        %v5019 = vpop.f32.mrf.mxu0
        %v5020 = vadd.f32 0.0, %v5019
        %v5021 = vpop.f32.mrf.mxu0
        %v5022 = vpop.f32.mrf.mxu0
        %v5023 = vadd.f32 0.0, %v5022
        %v5024 = vpop.f32.mrf.mxu0
        %5025 = vmatprep.mubr.bf16.mxu0 0
        %5026 = vmatmul.mubr.bf16.gmra.mxu0 %v4932
        %v5027 = vpop.f32.mrf.mxu0
        %v5028 = vadd.f32 0.0, %v5027
        %v5029 = vpop.f32.mrf.mxu0
        %v5030 = vpop.f32.mrf.mxu0
        %v5031 = vadd.f32 0.0, %v5030
        %v5032 = vpop.f32.mrf.mxu0
        %5033 = vmatprep.mubr.bf16.mxu0 0
        %5034 = vmatmul.mubr.bf16.gmra.mxu0 %v4935
        %v5035 = vpop.f32.mrf.mxu0
        %v5036 = vadd.f32 0.0, %v5035
        %v5037 = vpop.f32.mrf.mxu0
        %v5038 = vpop.f32.mrf.mxu0
        %v5039 = vadd.f32 0.0, %v5038
        %v5040 = vpop.f32.mrf.mxu0
        %5041 = vmatprep.mubr.bf16.mxu0 0
        %5042 = vmatmul.mubr.bf16.gmra.mxu0 %v4938
        %v5043 = vpop.f32.mrf.mxu0
        %v5044 = vadd.f32 0.0, %v5043
        %v5045 = vpop.f32.mrf.mxu0
        %v5046 = vpop.f32.mrf.mxu0
        %v5047 = vadd.f32 0.0, %v5046
        %v5048 = vpop.f32.mrf.mxu0
        %5049 = vmatprep.mubr.bf16.mxu0 0
        %5050 = vmatmul.mubr.bf16.gmra.mxu0 %v4941
        %v5051 = vpop.f32.mrf.mxu0
        %v5052 = vadd.f32 0.0, %v5051
        %v5053 = vpop.f32.mrf.mxu0
        %v5054 = vpop.f32.mrf.mxu0
        %v5055 = vadd.f32 0.0, %v5054
        %v5056 = vpop.f32.mrf.mxu0
        %5057 = vmatprep.mubr.bf16.mxu0 0
        %5058 = vmatmul.mubr.bf16.gmra.mxu0 %v4944
        %v5059 = vpop.f32.mrf.mxu0
        %v5060 = vadd.f32 0.0, %v5059
        %v5061 = vpop.f32.mrf.mxu0
        %v5062 = vpop.f32.mrf.mxu0
        %v5063 = vadd.f32 0.0, %v5062
        %v5064 = vpop.f32.mrf.mxu0
        %5065 = vmatprep.mubr.bf16.mxu0 0
        %5066 = vmatmul.mubr.bf16.gmra.mxu0 %v4947
        %v5067 = vpop.f32.mrf.mxu0
        %v5068 = vadd.f32 0.0, %v5067
        %v5069 = vpop.f32.mrf.mxu0
        %v5070 = vpop.f32.mrf.mxu0
        %v5071 = vadd.f32 0.0, %v5070
        %v5072 = vpop.f32.mrf.mxu0
        %5073 = vmatprep.mubr.bf16.mxu0 0
        %5074 = vmatmul.mubr.bf16.gmra.mxu0 %v4950
        %v5075 = vpop.f32.mrf.mxu0
        %v5076 = vadd.f32 0.0, %v5075
        %v5077 = vpop.f32.mrf.mxu0
        %v5078 = vpop.f32.mrf.mxu0
        %v5079 = vadd.f32 0.0, %v5078
        %v5080 = vpop.f32.mrf.mxu0
        %5081 = vmatprep.mubr.bf16.mxu0 0
        %5082 = vmatmul.mubr.bf16.gmra.mxu0 %v4953
        %v5083 = vpop.f32.mrf.mxu0
        %v5084 = vadd.f32 0.0, %v5083
        %v5085 = vpop.f32.mrf.mxu0
        %v5086 = vpop.f32.mrf.mxu0
        %v5087 = vadd.f32 0.0, %v5086
        %v5088 = vpop.f32.mrf.mxu0
        %5089 = vmatprep.mubr.bf16.mxu0 0
        %5090 = vmatmul.mubr.bf16.gmra.mxu0 %v4956
        %v5091 = vpop.f32.mrf.mxu0
        %v5092 = vadd.f32 0.0, %v5091
        %v5093 = vpop.f32.mrf.mxu0
        %v5094 = vpop.f32.mrf.mxu0
        %v5095 = vadd.f32 0.0, %v5094
        %v5096 = vpop.f32.mrf.mxu0
        %5097 = vmatprep.mubr.bf16.mxu0 0
        %5098 = vmatmul.mubr.bf16.gmra.mxu0 %v4959
        %v5099 = vpop.f32.mrf.mxu0
        %v5100 = vadd.f32 0.0, %v5099
        %v5101 = vpop.f32.mrf.mxu0
        %v5102 = vpop.f32.mrf.mxu0
        %v5103 = vadd.f32 0.0, %v5102
        %v5104 = vpop.f32.mrf.mxu0
        %5105 = vmatprep.mubr.bf16.mxu0 0
        %5106 = vmatmul.mubr.bf16.gmra.mxu0 %v4962
        %v5107 = vpop.f32.mrf.mxu0
        %v5108 = vadd.f32 0.0, %v5107
        %v5109 = vpop.f32.mrf.mxu0
        %v5110 = vpop.f32.mrf.mxu0
        %v5111 = vadd.f32 0.0, %v5110
        %v5112 = vpop.f32.mrf.mxu0
        %5113 = vmatprep.mubr.bf16.mxu0 0
        %5114 = vmatmul.mubr.bf16.gmra.mxu0 %v4965
        %v5115 = vpop.f32.mrf.mxu0
        %v5116 = vadd.f32 0.0, %v5115
        %v5117 = vpop.f32.mrf.mxu0
        %v5118 = vpop.f32.mrf.mxu0
        %v5119 = vadd.f32 0.0, %v5118
        %v5120 = vpop.f32.mrf.mxu0
        %5121 = vmatprep.mubr.bf16.mxu0 0
        %5122 = vmatmul.mubr.bf16.gmra.mxu0 %v4968
        %v5123 = vpop.f32.mrf.mxu0
        %v5124 = vadd.f32 0.0, %v5123
        %v5125 = vpop.f32.mrf.mxu0
        %v5126 = vpop.f32.mrf.mxu0
        %v5127 = vadd.f32 0.0, %v5126
        %v5128 = vpop.f32.mrf.mxu0
        %5129 = vmatprep.mubr.bf16.mxu0 0
        %5130 = vmatmul.mubr.bf16.gmra.mxu0 %v4971
        %v5131 = vpop.f32.mrf.mxu0
        %v5132 = vadd.f32 0.0, %v5131
        %v5133 = vpop.f32.mrf.mxu0
        %v5134 = vpop.f32.mrf.mxu0
        %v5135 = vadd.f32 0.0, %v5134
        %v5136 = vpop.f32.mrf.mxu0
        %5137 = vmatprep.mubr.bf16.mxu0 0
        %5138 = vmatmul.mubr.bf16.gmra.mxu0 %v4974
        %v5139 = vpop.f32.mrf.mxu0
        %v5140 = vadd.f32 0.0, %v5139
        %v5141 = vpop.f32.mrf.mxu0
        %v5142 = vpop.f32.mrf.mxu0
        %v5143 = vadd.f32 0.0, %v5142
        %v5144 = vpop.f32.mrf.mxu0
        %5145 = vmatprep.mubr.bf16.mxu0 0
        %5146 = vmatmul.mubr.bf16.gmra.mxu0 %v4977
        %v5147 = vpop.f32.mrf.mxu0
        %v5148 = vadd.f32 0.0, %v5147
        %v5149 = vpop.f32.mrf.mxu0
        %v5150 = vpop.f32.mrf.mxu0
        %v5151 = vadd.f32 0.0, %v5150
        %v5152 = vpop.f32.mrf.mxu0
        %5153 = vmatprep.mubr.bf16.mxu0 0
        %5154 = vmatmul.mubr.bf16.gmra.mxu0 %v4980
        %v5155 = vpop.f32.mrf.mxu0
        %v5156 = vadd.f32 0.0, %v5155
        %v5157 = vpop.f32.mrf.mxu0
        %v5158 = vpop.f32.mrf.mxu0
        %v5159 = vadd.f32 0.0, %v5158
        %v5160 = vpop.f32.mrf.mxu0
        %5161 = vdwg.mxu0
        %v5162 = vadd.f32 %v4722, %v5020
        %v5163 = vadd.f32 %v4723, %v5023
        %v5164 = vadd.f32 %v4724, %v5028
        %v5165 = vadd.f32 %v4725, %v5031
        %v5166 = vadd.f32 %v4726, %v5036
        %v5167 = vadd.f32 %v4727, %v5039
        %v5168 = vadd.f32 %v4728, %v5044
        %v5169 = vadd.f32 %v4729, %v5047
        %v5170 = vadd.f32 %v4730, %v5052
        %v5171 = vadd.f32 %v4731, %v5055
        %v5172 = vadd.f32 %v4732, %v5060
        %v5173 = vadd.f32 %v4733, %v5063
        %v5174 = vadd.f32 %v4734, %v5068
        %v5175 = vadd.f32 %v4735, %v5071
        %v5176 = vadd.f32 %v4736, %v5076
        %v5177 = vadd.f32 %v4737, %v5079
        %v5178 = vadd.f32 %v4738, %v5084
        %v5179 = vadd.f32 %v4739, %v5087
        %v5180 = vadd.f32 %v4740, %v5092
        %v5181 = vadd.f32 %v4741, %v5095
        %v5182 = vadd.f32 %v4742, %v5100
        %v5183 = vadd.f32 %v4743, %v5103
        %v5184 = vadd.f32 %v4744, %v5108
        %v5185 = vadd.f32 %v4745, %v5111
        %v5186 = vadd.f32 %v4746, %v5116
        %v5187 = vadd.f32 %v4747, %v5119
        %v5188 = vadd.f32 %v4748, %v5124
        %v5189 = vadd.f32 %v4749, %v5127
        %v5190 = vadd.f32 %v4750, %v5132
        %v5191 = vadd.f32 %v4751, %v5135
        %v5192 = vadd.f32 %v4752, %v5140
        %v5193 = vadd.f32 %v4753, %v5143
        %v5194 = vadd.f32 %v4754, %v5148
        %v5195 = vadd.f32 %v4755, %v5151
        %v5196 = vadd.f32 %v4756, %v5156
        %v5197 = vadd.f32 %v4757, %v5159
        %5198 = vst [vmem:[#allocation2] sm:$0xff] %v5162
        %5199 = vst [vmem:[#allocation2 + $0x8] sm:$0xff] %v5163
        %5200 = vst [vmem:[#allocation2 + $0x10] sm:$0xff] %v5164
        %5201 = vst [vmem:[#allocation2 + $0x18] sm:$0xff] %v5165
        %5202 = vst [vmem:[#allocation2 + $0x20] sm:$0xff] %v5166
        %5203 = vst [vmem:[#allocation2 + $0x28] sm:$0xff] %v5167
        %5204 = vst [vmem:[#allocation2 + $0x30] sm:$0xff] %v5168
        %5205 = vst [vmem:[#allocation2 + $0x38] sm:$0xff] %v5169
        %5206 = vst [vmem:[#allocation2 + $0x40] sm:$0xff] %v5170
        %5207 = vst [vmem:[#allocation2 + $0x48] sm:$0xff] %v5171
        %5208 = vst [vmem:[#allocation2 + $0x50] sm:$0xff] %v5172
        %5209 = vst [vmem:[#allocation2 + $0x58] sm:$0xff] %v5173
        %5210 = vst [vmem:[#allocation2 + $0x60] sm:$0xff] %v5174
        %5211 = vst [vmem:[#allocation2 + $0x68] sm:$0xff] %v5175
        %5212 = vst [vmem:[#allocation2 + $0x70] sm:$0xff] %v5176
        %5213 = vst [vmem:[#allocation2 + $0x78] sm:$0xff] %v5177
        %5214 = vst [vmem:[#allocation2 + $0x80] sm:$0xff] %v5178
        %5215 = vst [vmem:[#allocation2 + $0x88] sm:$0xff] %v5179
        %5216 = vst [vmem:[#allocation2 + $0x90] sm:$0xff] %v5180
        %5217 = vst [vmem:[#allocation2 + $0x98] sm:$0xff] %v5181
        %5218 = vst [vmem:[#allocation2 + $0xa0] sm:$0xff] %v5182
        %5219 = vst [vmem:[#allocation2 + $0xa8] sm:$0xff] %v5183
        %5220 = vst [vmem:[#allocation2 + $0xb0] sm:$0xff] %v5184
        %5221 = vst [vmem:[#allocation2 + $0xb8] sm:$0xff] %v5185
        %5222 = vst [vmem:[#allocation2 + $0xc0] sm:$0xff] %v5186
        %5223 = vst [vmem:[#allocation2 + $0xc8] sm:$0xff] %v5187
        %5224 = vst [vmem:[#allocation2 + $0xd0] sm:$0xff] %v5188
        %5225 = vst [vmem:[#allocation2 + $0xd8] sm:$0xff] %v5189
        %5226 = vst [vmem:[#allocation2 + $0xe0] sm:$0xff] %v5190
        %5227 = vst [vmem:[#allocation2 + $0xe8] sm:$0xff] %v5191
        %5228 = vst [vmem:[#allocation2 + $0xf0] sm:$0xff] %v5192
        %5229 = vst [vmem:[#allocation2 + $0xf8] sm:$0xff] %v5193
        %5230 = vst [vmem:[#allocation2 + $0x100] sm:$0xff] %v5194
        %5231 = vst [vmem:[#allocation2 + $0x108] sm:$0xff] %v5195
        %5232 = vst [vmem:[#allocation2 + $0x110] sm:$0xff] %v5196
        %5233 = vst [vmem:[#allocation2 + $0x118] sm:$0xff] %v5197
        %v5234 = vld [vmem:[#allocation2] sm:$0xff]
        %v5235 = vld [vmem:[#allocation2 + $0x8] sm:$0xff]
        %v5236 = vld [vmem:[#allocation2 + $0x10] sm:$0xff]
        %v5237 = vld [vmem:[#allocation2 + $0x18] sm:$0xff]
        %v5238 = vld [vmem:[#allocation2 + $0x20] sm:$0xff]
        %v5239 = vld [vmem:[#allocation2 + $0x28] sm:$0xff]
        %v5240 = vld [vmem:[#allocation2 + $0x30] sm:$0xff]
        %v5241 = vld [vmem:[#allocation2 + $0x38] sm:$0xff]
        %v5242 = vld [vmem:[#allocation2 + $0x40] sm:$0xff]
        %v5243 = vld [vmem:[#allocation2 + $0x48] sm:$0xff]
        %v5244 = vld [vmem:[#allocation2 + $0x50] sm:$0xff]
        %v5245 = vld [vmem:[#allocation2 + $0x58] sm:$0xff]
        %v5246 = vld [vmem:[#allocation2 + $0x60] sm:$0xff]
        %v5247 = vld [vmem:[#allocation2 + $0x68] sm:$0xff]
        %v5248 = vld [vmem:[#allocation2 + $0x70] sm:$0xff]
        %v5249 = vld [vmem:[#allocation2 + $0x78] sm:$0xff]
        %v5250 = vld [vmem:[#allocation2 + $0x80] sm:$0xff]
        %v5251 = vld [vmem:[#allocation2 + $0x88] sm:$0xff]
        %v5252 = vld [vmem:[#allocation2 + $0x90] sm:$0xff]
        %v5253 = vld [vmem:[#allocation2 + $0x98] sm:$0xff]
        %v5254 = vld [vmem:[#allocation2 + $0xa0] sm:$0xff]
        %v5255 = vld [vmem:[#allocation2 + $0xa8] sm:$0xff]
        %v5256 = vld [vmem:[#allocation2 + $0xb0] sm:$0xff]
        %v5257 = vld [vmem:[#allocation2 + $0xb8] sm:$0xff]
        %v5258 = vld [vmem:[#allocation2 + $0xc0] sm:$0xff]
        %v5259 = vld [vmem:[#allocation2 + $0xc8] sm:$0xff]
        %v5260 = vld [vmem:[#allocation2 + $0xd0] sm:$0xff]
        %v5261 = vld [vmem:[#allocation2 + $0xd8] sm:$0xff]
        %v5262 = vld [vmem:[#allocation2 + $0xe0] sm:$0xff]
        %v5263 = vld [vmem:[#allocation2 + $0xe8] sm:$0xff]
        %v5264 = vld [vmem:[#allocation2 + $0xf0] sm:$0xff]
        %v5265 = vld [vmem:[#allocation2 + $0xf8] sm:$0xff]
        %v5266 = vld [vmem:[#allocation2 + $0x100] sm:$0xff]
        %v5267 = vld [vmem:[#allocation2 + $0x108] sm:$0xff]
        %v5268 = vld [vmem:[#allocation2 + $0x110] sm:$0xff]
        %v5269 = vld [vmem:[#allocation2 + $0x118] sm:$0xff]
        %v5270 = vld [vmem:[%s251] sm:$0x1]
        %v5272 = vlaneseq
        %v5273 = vshrl.u32 %v5272, 7
        %v5274 = vsub.s32 0, %v5273
        %v5275 = vrot.slane %v5270, %v5274
        %v5277 = vmul.f32 %v5234, %v5275
        %v5278 = vmul.f32 %v5235, %v5275
        %v5279 = vmul.f32 %v5236, %v5275
        %v5280 = vmul.f32 %v5237, %v5275
        %v5281 = vmul.f32 %v5238, %v5275
        %v5282 = vmul.f32 %v5239, %v5275
        %v5283 = vmul.f32 %v5240, %v5275
        %v5284 = vmul.f32 %v5241, %v5275
        %v5285 = vmul.f32 %v5242, %v5275
        %v5286 = vmul.f32 %v5243, %v5275
        %v5287 = vmul.f32 %v5244, %v5275
        %v5288 = vmul.f32 %v5245, %v5275
        %v5289 = vmul.f32 %v5246, %v5275
        %v5290 = vmul.f32 %v5247, %v5275
        %v5291 = vmul.f32 %v5248, %v5275
        %v5292 = vmul.f32 %v5249, %v5275
        %v5293 = vmul.f32 %v5250, %v5275
        %v5294 = vmul.f32 %v5251, %v5275
        %v5295 = vmul.f32 %v5252, %v5275
        %v5296 = vmul.f32 %v5253, %v5275
        %v5297 = vmul.f32 %v5254, %v5275
        %v5298 = vmul.f32 %v5255, %v5275
        %v5299 = vmul.f32 %v5256, %v5275
        %v5300 = vmul.f32 %v5257, %v5275
        %v5301 = vmul.f32 %v5258, %v5275
        %v5302 = vmul.f32 %v5259, %v5275
        %v5303 = vmul.f32 %v5260, %v5275
        %v5304 = vmul.f32 %v5261, %v5275
        %v5305 = vmul.f32 %v5262, %v5275
        %v5306 = vmul.f32 %v5263, %v5275
        %v5307 = vmul.f32 %v5264, %v5275
        %v5308 = vmul.f32 %v5265, %v5275
        %v5309 = vmul.f32 %v5266, %v5275
        %v5310 = vmul.f32 %v5267, %v5275
        %v5311 = vmul.f32 %v5268, %v5275
        %v5312 = vmul.f32 %v5269, %v5275
        %v5313 = vld [vmem:[%s254] sm:$0x1]
        %v5315 = vlaneseq
        %v5316 = vshrl.u32 %v5315, 7
        %v5317 = vsub.s32 0, %v5316
        %v5318 = vrot.slane %v5313, %v5317
        %v5320 = vadd.f32 %v5277, %v5318
        %v5321 = vadd.f32 %v5278, %v5318
        %v5322 = vadd.f32 %v5279, %v5318
        %v5323 = vadd.f32 %v5280, %v5318
        %v5324 = vadd.f32 %v5281, %v5318
        %v5325 = vadd.f32 %v5282, %v5318
        %v5326 = vadd.f32 %v5283, %v5318
        %v5327 = vadd.f32 %v5284, %v5318
        %v5328 = vadd.f32 %v5285, %v5318
        %v5329 = vadd.f32 %v5286, %v5318
        %v5330 = vadd.f32 %v5287, %v5318
        %v5331 = vadd.f32 %v5288, %v5318
        %v5332 = vadd.f32 %v5289, %v5318
        %v5333 = vadd.f32 %v5290, %v5318
        %v5334 = vadd.f32 %v5291, %v5318
        %v5335 = vadd.f32 %v5292, %v5318
        %v5336 = vadd.f32 %v5293, %v5318
        %v5337 = vadd.f32 %v5294, %v5318
        %v5338 = vadd.f32 %v5295, %v5318
        %v5339 = vadd.f32 %v5296, %v5318
        %v5340 = vadd.f32 %v5297, %v5318
        %v5341 = vadd.f32 %v5298, %v5318
        %v5342 = vadd.f32 %v5299, %v5318
        %v5343 = vadd.f32 %v5300, %v5318
        %v5344 = vadd.f32 %v5301, %v5318
        %v5345 = vadd.f32 %v5302, %v5318
        %v5346 = vadd.f32 %v5303, %v5318
        %v5347 = vadd.f32 %v5304, %v5318
        %v5348 = vadd.f32 %v5305, %v5318
        %v5349 = vadd.f32 %v5306, %v5318
        %v5350 = vadd.f32 %v5307, %v5318
        %v5351 = vadd.f32 %v5308, %v5318
        %v5352 = vadd.f32 %v5309, %v5318
        %v5353 = vadd.f32 %v5310, %v5318
        %v5354 = vadd.f32 %v5311, %v5318
        %v5355 = vadd.f32 %v5312, %v5318
        %v5356 = vmax.f32 %v5320, 0.0
        %v5357 = vmax.f32 %v5321, 0.0
        %v5358 = vmax.f32 %v5322, 0.0
        %v5359 = vmax.f32 %v5323, 0.0
        %v5360 = vmax.f32 %v5324, 0.0
        %v5361 = vmax.f32 %v5325, 0.0
        %v5362 = vmax.f32 %v5326, 0.0
        %v5363 = vmax.f32 %v5327, 0.0
        %v5364 = vmax.f32 %v5328, 0.0
        %v5365 = vmax.f32 %v5329, 0.0
        %v5366 = vmax.f32 %v5330, 0.0
        %v5367 = vmax.f32 %v5331, 0.0
        %v5368 = vmax.f32 %v5332, 0.0
        %v5369 = vmax.f32 %v5333, 0.0
        %v5370 = vmax.f32 %v5334, 0.0
        %v5371 = vmax.f32 %v5335, 0.0
        %v5372 = vmax.f32 %v5336, 0.0
        %v5373 = vmax.f32 %v5337, 0.0
        %v5374 = vmax.f32 %v5338, 0.0
        %v5375 = vmax.f32 %v5339, 0.0
        %v5376 = vmax.f32 %v5340, 0.0
        %v5377 = vmax.f32 %v5341, 0.0
        %v5378 = vmax.f32 %v5342, 0.0
        %v5379 = vmax.f32 %v5343, 0.0
        %v5380 = vmax.f32 %v5344, 0.0
        %v5381 = vmax.f32 %v5345, 0.0
        %v5382 = vmax.f32 %v5346, 0.0
        %v5383 = vmax.f32 %v5347, 0.0
        %v5384 = vmax.f32 %v5348, 0.0
        %v5385 = vmax.f32 %v5349, 0.0
        %v5386 = vmax.f32 %v5350, 0.0
        %v5387 = vmax.f32 %v5351, 0.0
        %v5388 = vmax.f32 %v5352, 0.0
        %v5389 = vmax.f32 %v5353, 0.0
        %v5390 = vmax.f32 %v5354, 0.0
        %v5391 = vmax.f32 %v5355, 0.0
        %v5392 = vpack.c.bf16 %v5357, %v5356
        %v5393 = vpack.c.bf16 %v5359, %v5358
        %v5394 = vpack.c.bf16 %v5361, %v5360
        %v5395 = vpack.c.bf16 %v5363, %v5362
        %v5396 = vpack.c.bf16 %v5365, %v5364
        %v5397 = vpack.c.bf16 %v5367, %v5366
        %v5398 = vpack.c.bf16 %v5369, %v5368
        %v5399 = vpack.c.bf16 %v5371, %v5370
        %v5400 = vpack.c.bf16 %v5373, %v5372
        %v5401 = vpack.c.bf16 %v5375, %v5374
        %v5402 = vpack.c.bf16 %v5377, %v5376
        %v5403 = vpack.c.bf16 %v5379, %v5378
        %v5404 = vpack.c.bf16 %v5381, %v5380
        %v5405 = vpack.c.bf16 %v5383, %v5382
        %v5406 = vpack.c.bf16 %v5385, %v5384
        %v5407 = vpack.c.bf16 %v5387, %v5386
        %v5408 = vpack.c.bf16 %v5389, %v5388
        %v5409 = vpack.c.bf16 %v5391, %v5390
        %v5428 = vunpack.c.l.b16 %v5392
        %v5429 = vunpack.c.h.b16 %v5392
        %v5430 = vunpack.c.l.b16 %v5393
        %v5431 = vunpack.c.h.b16 %v5393
        %v5432 = vunpack.c.l.b16 %v5394
        %v5433 = vunpack.c.h.b16 %v5394
        %v5434 = vunpack.c.l.b16 %v5395
        %v5435 = vunpack.c.h.b16 %v5395
        %v5436 = vunpack.c.l.b16 %v5396
        %v5437 = vunpack.c.h.b16 %v5396
        %v5438 = vunpack.c.l.b16 %v5397
        %v5439 = vunpack.c.h.b16 %v5397
        %v5440 = vunpack.c.l.b16 %v5398
        %v5441 = vunpack.c.h.b16 %v5398
        %v5442 = vunpack.c.l.b16 %v5399
        %v5443 = vunpack.c.h.b16 %v5399
        %v5444 = vunpack.c.l.b16 %v5400
        %v5445 = vunpack.c.h.b16 %v5400
        %v5446 = vunpack.c.l.b16 %v5401
        %v5447 = vunpack.c.h.b16 %v5401
        %v5448 = vunpack.c.l.b16 %v5402
        %v5449 = vunpack.c.h.b16 %v5402
        %v5450 = vunpack.c.l.b16 %v5403
        %v5451 = vunpack.c.h.b16 %v5403
        %v5452 = vunpack.c.l.b16 %v5404
        %v5453 = vunpack.c.h.b16 %v5404
        %v5454 = vunpack.c.l.b16 %v5405
        %v5455 = vunpack.c.h.b16 %v5405
        %v5456 = vunpack.c.l.b16 %v5406
        %v5457 = vunpack.c.h.b16 %v5406
        %v5458 = vunpack.c.l.b16 %v5407
        %v5459 = vunpack.c.h.b16 %v5407
        %v5460 = vunpack.c.l.b16 %v5408
        %v5461 = vunpack.c.h.b16 %v5408
        %v5462 = vunpack.c.l.b16 %v5409
        %v5463 = vunpack.c.h.b16 %v5409
        %v5464 = vpack.c.b16 %v5428, %v5428
        %v5465 = vpack.c.b16 %v5429, %v5429
        %v5466 = vpack.c.b16 %v5430, %v5430
        %v5467 = vpack.c.b16 %v5431, %v5431
        %v5468 = vpack.c.b16 %v5432, %v5432
        %v5469 = vpack.c.b16 %v5433, %v5433
        %v5470 = vpack.c.b16 %v5434, %v5434
        %v5471 = vpack.c.b16 %v5435, %v5435
        %v5472 = vpack.c.b16 %v5436, %v5436
        %v5473 = vpack.c.b16 %v5437, %v5437
        %v5474 = vpack.c.b16 %v5438, %v5438
        %v5475 = vpack.c.b16 %v5439, %v5439
        %v5476 = vpack.c.b16 %v5440, %v5440
        %v5477 = vpack.c.b16 %v5441, %v5441
        %v5478 = vpack.c.b16 %v5442, %v5442
        %v5479 = vpack.c.b16 %v5443, %v5443
        %v5480 = vpack.c.b16 %v5444, %v5444
        %v5481 = vpack.c.b16 %v5445, %v5445
        %v5482 = vpack.c.b16 %v5446, %v5446
        %v5483 = vpack.c.b16 %v5447, %v5447
        %v5484 = vpack.c.b16 %v5448, %v5448
        %v5485 = vpack.c.b16 %v5449, %v5449
        %v5486 = vpack.c.b16 %v5450, %v5450
        %v5487 = vpack.c.b16 %v5451, %v5451
        %v5488 = vpack.c.b16 %v5452, %v5452
        %v5489 = vpack.c.b16 %v5453, %v5453
        %v5490 = vpack.c.b16 %v5454, %v5454
        %v5491 = vpack.c.b16 %v5455, %v5455
        %v5492 = vpack.c.b16 %v5456, %v5456
        %v5493 = vpack.c.b16 %v5457, %v5457
        %v5494 = vpack.c.b16 %v5458, %v5458
        %v5495 = vpack.c.b16 %v5459, %v5459
        %v5496 = vpack.c.b16 %v5460, %v5460
        %v5497 = vpack.c.b16 %v5461, %v5461
        %v5498 = vpack.c.b16 %v5462, %v5462
        %v5499 = vpack.c.b16 %v5463, %v5463
        %5536 = vst [vmem:[%s239] sm:$0xf] %v5464
        %5537 = vst [vmem:[%s239 + $0x4] sm:$0xf] %v5465
        %5538 = vst [vmem:[%s239 + $0x8] sm:$0xf] %v5466
        %5539 = vst [vmem:[%s239 + $0xc] sm:$0xf] %v5467
        %5540 = vst [vmem:[%s239 + $0x10] sm:$0xf] %v5468
        %5541 = vst [vmem:[%s239 + $0x14] sm:$0xf] %v5469
        %5542 = vst [vmem:[%s239 + $0x18] sm:$0xf] %v5470
        %5543 = vst [vmem:[%s239 + $0x1c] sm:$0xf] %v5471
        %5544 = vst [vmem:[%s239 + $0x20] sm:$0xf] %v5472
        %5545 = vst [vmem:[%s239 + $0x24] sm:$0xf] %v5473
        %5546 = vst [vmem:[%s239 + $0x28] sm:$0xf] %v5474
        %5547 = vst [vmem:[%s239 + $0x2c] sm:$0xf] %v5475
        %5548 = vst [vmem:[%s239 + $0x30] sm:$0xf] %v5476
        %5549 = vst [vmem:[%s239 + $0x34] sm:$0xf] %v5477
        %5550 = vst [vmem:[%s239 + $0x38] sm:$0xf] %v5478
        %5551 = vst [vmem:[%s239 + $0x3c] sm:$0xf] %v5479
        %5552 = vst [vmem:[%s239 + $0x40] sm:$0xf] %v5480
        %5553 = vst [vmem:[%s239 + $0x44] sm:$0xf] %v5481
        %5554 = vst [vmem:[%s239 + $0x48] sm:$0xf] %v5482
        %5555 = vst [vmem:[%s239 + $0x4c] sm:$0xf] %v5483
        %5556 = vst [vmem:[%s239 + $0x50] sm:$0xf] %v5484
        %5557 = vst [vmem:[%s239 + $0x54] sm:$0xf] %v5485
        %5558 = vst [vmem:[%s239 + $0x58] sm:$0xf] %v5486
        %5559 = vst [vmem:[%s239 + $0x5c] sm:$0xf] %v5487
        %5560 = vst [vmem:[%s239 + $0x60] sm:$0xf] %v5488
        %5561 = vst [vmem:[%s239 + $0x64] sm:$0xf] %v5489
        %5562 = vst [vmem:[%s239 + $0x68] sm:$0xf] %v5490
        %5563 = vst [vmem:[%s239 + $0x6c] sm:$0xf] %v5491
        %5564 = vst [vmem:[%s239 + $0x70] sm:$0xf] %v5492
        %5565 = vst [vmem:[%s239 + $0x74] sm:$0xf] %v5493
        %5566 = vst [vmem:[%s239 + $0x78] sm:$0xf] %v5494
        %5567 = vst [vmem:[%s239 + $0x7c] sm:$0xf] %v5495
        %5568 = vst [vmem:[%s239 + $0x80] sm:$0xf] %v5496
        %5569 = vst [vmem:[%s239 + $0x84] sm:$0xf] %v5497
        %5570 = vst [vmem:[%s239 + $0x88] sm:$0xf] %v5498
        %5571 = vst [vmem:[%s239 + $0x8c] sm:$0xf] %v5499
        %s5572 = sand.u32 %s144, 1
        %s5573 = scalar_lea.sflag [#allocation4], %s5572
        %s5574 = sand.u32 %s144, 1
        %s5575 = smul.addr %s5574, 144
        %s5576 = scalar_lea.vmem [#allocation3], %s5575
        // Predicated region
        $region37: #{tpu_custom_call.1} parent=35 // pred_check
          %p5577 = pneg %p154
        $region38: #{tpu_custom_call.1} parent=35 // pred_check_branch
          %5579 = sbr.rel (%p5577) target = $region40
        $region39: #{tpu_custom_call.1} parent=35 // pred_region
          %s5581 = ssub.s32 2304, 2304
          %5582 = vsyncadd %s5573, %s5581
          %s5583 = smul.addr %s22, 36
          %s5584 = sadd.s32 %s23, %s5583
          %s5585 = smul.addr %s5584, 64
          %s5586 = scalar_lea.hbm %s4, %s5585
          %s5587 = sshll.u32 %s5576, 4
          %s5588 = int_to_ptr.vmem [resolvable:$true] %s5587
          %5593 = dma.vmem_to_hbm [thread:$0]  %s5588, 2304, %s5586, %s5573, 64, 64, 4
        $region40: #{tpu_custom_call.1} parent=35 // pred_fallthru
          _
      $region36: #{tpu_custom_call.1} parent=5 // pred_fallthru
        _
      %p5594 = scmp.le.s32.totalorder 2, %s13
      // Predicated region
      $region41: #{tpu_custom_call.1} parent=5 // pred_check
        %p5595 = pneg %p5594
      $region42: #{tpu_custom_call.1} parent=5 // pred_check_branch
        %5597 = sbr.rel (%p5595) target = $region44
      $region43: #{tpu_custom_call.1} parent=5 // pred_region
        %s5598 = ssub.s32 %s13, 2
        // Predicated region
        $region45: #{tpu_custom_call.1} parent=43 // pred_check
          %p5599 = pneg %p160
        $region46: #{tpu_custom_call.1} parent=43 // pred_check_branch
          %5601 = sbr.rel (%p5599) target = $region48
        $region47: #{tpu_custom_call.1} parent=43 // pred_region
          %s5602 = sand.u32 %s145, 1
          %s5603 = scalar_lea.sflag [#allocation4], %s5602
          %s5604 = sand.u32 %s145, 1
          %s5605 = smul.addr %s5604, 144
          %s5606 = scalar_lea.vmem [#allocation3], %s5605
          %5607 = dma.done %s5603, 2304
        $region48: #{tpu_custom_call.1} parent=43 // pred_fallthru
          _
      $region44: #{tpu_custom_call.1} parent=5 // pred_fallthru
        _
    $region6: #{tpu_custom_call.1} parent=1 // loop_footer
      %s17 = sadd.s32 1, %s13
    $region7: #{tpu_custom_call.1} parent=1 // loop_footer_branch
      %12 = sbr.rel target = $region3
    $region8: #{tpu_custom_call.1} parent=1 // loop_exit
      _
    %5608 = vsyncpa [#allocation4], 1
    %s5609 = scalar_lea.sflag [#allocation4], 1
    %5610 = vsyncpa %s5609, 1

</llo_original>
